<compile_context>
chip_gen: v6e
topology: v6e:2x2x1
jax: 0.10.0
libtpu: 0.0.40
codegen_flags: <defaults>
</compile_context>

<pallas_src>
import functools

import jax
import jax.numpy as jnp
from jax import lax
from jax.experimental import pallas as pl
from jax.experimental.pallas import tpu as pltpu


def _pick_fold(n, wp, d):
    """How many padded images to fold side-by-side onto the lane axis per grid step.

    Pick the smallest divisor of the batch that makes the live lane width >= 128
    (keeps the remaining batch as parallel grid steps); otherwise the largest divisor
    under a slab-width cap that keeps the accumulators comfortably in vregs.
    """
    best = 1
    for f in range(1, n + 1):
        if n % f:
            continue
        if f * wp > 512:            # cap slab width -> bound live accumulator vregs
            break
        best = f
        if f * wp - 2 * d >= 128:   # lane-dense enough
            break
    return best


def _gated_dilation_conv_kernel(w_ref, b_ref, x_ref, o_ref, *, chan, dilation, fold, wp):
    """Fused dilated-conv + folded-BN + gated activation for one image group.

    w_ref: SMEM (2*chan*chan*9,)        BN-folded conv weights, [co, ci, kh, kw] flat
    b_ref: SMEM (2*chan,)               BN-folded bias
    x_ref: VMEM (1, chan, Hp, F*Wp)     F zero-padded images concatenated on the lane axis
    o_ref: VMEM (F, cg, H, W)           gated output for this (group, channel-group) step
    """
    d = dilation
    c_in = chan
    F = fold
    cg = o_ref.shape[1]                     # gated output channels computed this step
    H, W = o_ref.shape[2], o_ref.shape[3]
    L = F * wp - 2 * d                      # live lane width of the accumulators
    cg0 = pl.program_id(1) * cg             # first gated channel of this channel group

    # All 2*cg conv-output accumulators stay live (review: hoist windows, keep accs in
    # vregs).  Bias is folded into the init via jnp.full (no zeros + add).
    accs = [None] * (2 * cg)
    for j in range(cg):
        accs[j] = jnp.full((H, L), b_ref[cg0 + j], jnp.float32)            # act half
        accs[cg + j] = jnp.full((H, L), b_ref[chan + cg0 + j], jnp.float32)  # gate half

    for ci in range(c_in):
        for kw in range(3):
            # One lane-unaligned extraction per (ci, kw) = 12/image-group; the kh taps
            # below are cheap sublane-only slices of this already-loaded plane.
            plane = x_ref[0, ci, :, kw * d:kw * d + L].astype(jnp.float32)   # (Hp, L)
            for kh in range(3):
                win = plane[kh * d:kh * d + H]                               # (H, L)
                tap = ci * 9 + kh * 3 + kw
                for j in range(cg):
                    wa = w_ref[(cg0 + j) * (c_in * 9) + tap]          # SMEM scalars
                    wg = w_ref[(chan + cg0 + j) * (c_in * 9) + tap]
                    accs[j] = accs[j] + wa * win                      # VPU FMA
                    accs[cg + j] = accs[cg + j] + wg * win

    for j in range(cg):
        a = accs[j]
        g = accs[cg + j]
        act = jnp.maximum(a, 0.2 * a)                 # LeakyReLU(0.2): mul + vmax
        den = 1.0 + jnp.exp(-g)                       # exp -> EUP slot
        r = pl.reciprocal(den, approx=True)           # EUP vrcp (off the VALU)
        gate = r * (2.0 - den * r)                    # one Newton step -> f32-accurate
        y = (act * gate).astype(o_ref.dtype)          # (H, L) lane-dense compute
        for n in range(F):                            # unfold images back to NCHW
            o_ref[n, j, :, :] = y[:, n * wp:n * wp + W]


def gated_dilation_conv(x, conv_w, conv_b, bn_gamma, bn_beta, bn_mean, bn_var,
                        *, dilation, eps=1e-5):
    """Forward pass of GatedDilationConv (BatchNorm in eval mode, folded)."""
    N, chan, H, W = x.shape
    c_out = conv_w.shape[0]
    assert c_out == 2 * chan and conv_w.shape[1:] == (chan, 3, 3)
    d = int(dilation)
    Hp, Wp = H + 2 * d, W + 2 * d

    # Fold eval-mode BN (running stats) into the conv weights/bias — free, in the wrapper.
    scale = bn_gamma / jnp.sqrt(bn_var + eps)                           # (2*chan,)
    w_eff = (conv_w * scale[:, None, None, None]).astype(jnp.float32)  # (2C, C, 3, 3)
    b_eff = ((conv_b - bn_mean) * scale + bn_beta).astype(jnp.float32) # (2*chan,)
    w_flat = w_eff.reshape(-1)                                         # SMEM scalar table

    # Lane-density / step-amortization: fold F padded images onto the lane axis.
    F = _pick_fold(N, Wp, d)
    G = N // F
    Wc = F * Wp

    # Keep the parallel grid >= 2 steps for v7x's two TensorCores: if the batch-group
    # axis collapses to one step, split the gated channels into two parallel groups.
    n_cgroups = 1 if G >= 2 else (2 if chan % 2 == 0 else 1)
    cg = chan // n_cgroups

    # Pad spatially (padding == dilation) and lay the F images of each group
    # side-by-side along the lane axis; their zero padding separates the interiors.
    # (Layout plumbing only; when F == 1 this is a plain reshape.)
    x_pad = jnp.pad(x, ((0, 0), (0, 0), (d, d), (d, d)))
    x_lanes = jnp.transpose(
        x_pad.reshape(G, F, chan, Hp, Wp), (0, 2, 3, 1, 4)).reshape(G, chan, Hp, Wc)

    kernel = functools.partial(_gated_dilation_conv_kernel,
                               chan=chan, dilation=d, fold=F, wp=Wp)

    # Explicit VMEM budget (double-buffered in + out blocks plus headroom); the v5e
    # scoped default is only 16 MiB and v7x has 64 MiB physical.
    in_block = chan * Hp * Wc * 4
    out_block = F * cg * H * W * 4
    vmem_limit = int(min(96 << 20, max(8 << 20, 4 * (in_block + out_block) + (2 << 20))))

    flops = 2 * N * H * W * c_out * chan * 9
    bytes_accessed = 4 * (N * chan * Hp * Wp + N * chan * H * W
                          + int(w_flat.size) + int(b_eff.size))

    return pl.pallas_call(
        kernel,
        out_shape=jax.ShapeDtypeStruct((N, chan, H, W), x.dtype),
        grid_spec=pltpu.PrefetchScalarGridSpec(
            num_scalar_prefetch=0,
            grid=(G, n_cgroups),
            in_specs=[
                pl.BlockSpec(memory_space=pltpu.MemorySpace.SMEM),   # folded weights
                pl.BlockSpec(memory_space=pltpu.MemorySpace.SMEM),   # folded bias
                # One image group; identical block index across the channel-group axis
                # (fastest-varying), so it is not re-fetched between channel groups.
                pl.BlockSpec((1, chan, Hp, Wc), lambda g, c: (g, 0, 0, 0)),
            ],
            out_specs=pl.BlockSpec((F, cg, H, W), lambda g, c: (g, c, 0, 0)),
        ),
        compiler_params=pltpu.CompilerParams(
            dimension_semantics=("parallel", "parallel"),
            vmem_limit_bytes=vmem_limit,
        ),
        cost_estimate=pl.CostEstimate(
            flops=flops,
            transcendentals=N * chan * H * W,
            bytes_accessed=int(bytes_accessed),
        ),
    )(w_flat, b_eff, x_lanes)


if __name__ == "__main__":
    key = jax.random.PRNGKey(0)
    kx, kw, kb, kg, kbeta, km, kv = jax.random.split(key, 7)

    N, chan, H, W, dilation = 2, 4, 16, 16, 2
    c_out = 2 * chan

    x = jax.random.normal(kx, (N, chan, H, W), dtype=jnp.float32)

    # PyTorch-style Conv2d init: uniform(+/- 1/sqrt(fan_in)), fan_in = chan*3*3.
    bound = 1.0 / (chan * 9) ** 0.5
    conv_w = jax.random.uniform(kw, (c_out, chan, 3, 3), jnp.float32, -bound, bound)
    conv_b = jax.random.uniform(kb, (c_out,), jnp.float32, -bound, bound)

    # BatchNorm2d (eval mode) parameters + running stats (non-trivial values).
    bn_gamma = jax.random.uniform(kg, (c_out,), jnp.float32, 0.5, 1.5)
    bn_beta = jax.random.uniform(kbeta, (c_out,), jnp.float32, -0.5, 0.5)
    bn_mean = 0.1 * jax.random.normal(km, (c_out,), jnp.float32)
    bn_var = jax.random.uniform(kv, (c_out,), jnp.float32, 0.5, 1.5)

    y = gated_dilation_conv(x, conv_w, conv_b, bn_gamma, bn_beta, bn_mean, bn_var,
                            dilation=dilation)
    y = jax.block_until_ready(y)

    # Pure-JAX reference: conv -> BN(eval) -> split -> LeakyReLU / sigmoid -> gate.
    conv = lax.conv_general_dilated(
        x, conv_w, window_strides=(1, 1),
        padding=((dilation, dilation), (dilation, dilation)),
        rhs_dilation=(dilation, dilation),
        dimension_numbers=("NCHW", "OIHW", "NCHW"),
        precision=lax.Precision.HIGHEST) + conv_b[None, :, None, None]
    ref_scale = bn_gamma / jnp.sqrt(bn_var + 1e-5)
    bn = (conv - bn_mean[None, :, None, None]) * ref_scale[None, :, None, None] \
        + bn_beta[None, :, None, None]
    a_ref, g_ref = bn[:, :chan], bn[:, chan:]
    ref = jnp.where(a_ref >= 0.0, a_ref, 0.2 * a_ref) * jax.nn.sigmoid(g_ref)

    assert y.shape == (N, chan, H, W)
    max_err = float(jnp.max(jnp.abs(y - ref)))
    assert jnp.allclose(y, ref, atol=1e-4, rtol=1e-4), f"max abs err {max_err}"
    print("KERNEL_OK")
</pallas_src>

<mosaic_0001>
module attributes {stable_mosaic.version = 11 : i64} {
  func.func @_gated_dilation_conv_kernel(%arg0: i32, %arg1: i32, %arg2: memref<288xf32, #tpu.memory_space<smem>>, %arg3: memref<8xf32, #tpu.memory_space<smem>>, %arg4: memref<1x4x20x40xf32, #tpu.memory_space<vmem>>, %arg5: memref<2x2x16x16xf32, #tpu.memory_space<vmem>>) attributes {dimension_semantics = [#tpu.dimension_semantics<parallel>, #tpu.dimension_semantics<parallel>], iteration_bounds = array<i64: 1, 2>, scalar_prefetch = 0 : i64, scratch_operands = 0 : i64, tpu.core_type = #tpu.core_type<tc>, window_params = [{transform_indices = @transform_0, window_bounds = array<i64: 288>}, {transform_indices = @transform_1, window_bounds = array<i64: 8>}, {transform_indices = @transform_2, window_bounds = array<i64: 1, 4, 20, 40>}, {transform_indices = @transform_3, window_bounds = array<i64: 2, 2, 16, 16>}]} {
    %c2_i32 = arith.constant 2 : i32
    %0 = arith.muli %arg1, %c2_i32 : i32
    %c0_i32 = arith.constant 0 : i32
    %1 = arith.addi %0, %c0_i32 : i32
    %2 = arith.index_cast %1 : i32 to index
    %3 = memref.load %arg3[%2] : memref<8xf32, #tpu.memory_space<smem>>
    %4 = vector.broadcast %3 : f32 to vector<16x36xf32>
    %c4_i32 = arith.constant 4 : i32
    %5 = arith.addi %c4_i32, %0 : i32
    %c0_i32_0 = arith.constant 0 : i32
    %6 = arith.addi %5, %c0_i32_0 : i32
    %7 = arith.index_cast %6 : i32 to index
    %8 = memref.load %arg3[%7] : memref<8xf32, #tpu.memory_space<smem>>
    %9 = vector.broadcast %8 : f32 to vector<16x36xf32>
    %c1_i32 = arith.constant 1 : i32
    %10 = arith.addi %0, %c1_i32 : i32
    %11 = arith.index_cast %10 : i32 to index
    %12 = memref.load %arg3[%11] : memref<8xf32, #tpu.memory_space<smem>>
    %13 = vector.broadcast %12 : f32 to vector<16x36xf32>
    %c4_i32_1 = arith.constant 4 : i32
    %14 = arith.addi %c4_i32_1, %0 : i32
    %c1_i32_2 = arith.constant 1 : i32
    %15 = arith.addi %14, %c1_i32_2 : i32
    %16 = arith.index_cast %15 : i32 to index
    %17 = memref.load %arg3[%16] : memref<8xf32, #tpu.memory_space<smem>>
    %18 = vector.broadcast %17 : f32 to vector<16x36xf32>
    %c0 = arith.constant 0 : index
    %c0_3 = arith.constant 0 : index
    %c0_4 = arith.constant 0 : index
    %c0_5 = arith.constant 0 : index
    %19 = vector.load %arg4[%c0, %c0_3, %c0_4, %c0_5] : memref<1x4x20x40xf32, #tpu.memory_space<vmem>>, vector<1x1x20x36xf32>
    %20 = vector.shape_cast %19 : vector<1x1x20x36xf32> to vector<20x36xf32>
    %21 = vector.extract_strided_slice %20 {offsets = [0, 0], sizes = [16, 36], strides = [1, 1]} : vector<20x36xf32> to vector<16x36xf32>
    %c0_i32_6 = arith.constant 0 : i32
    %22 = arith.addi %0, %c0_i32_6 : i32
    %c36_i32 = arith.constant 36 : i32
    %23 = arith.muli %22, %c36_i32 : i32
    %c0_i32_7 = arith.constant 0 : i32
    %24 = arith.addi %23, %c0_i32_7 : i32
    %25 = arith.index_cast %24 : i32 to index
    %26 = memref.load %arg2[%25] : memref<288xf32, #tpu.memory_space<smem>>
    %c4_i32_8 = arith.constant 4 : i32
    %27 = arith.addi %c4_i32_8, %0 : i32
    %c0_i32_9 = arith.constant 0 : i32
    %28 = arith.addi %27, %c0_i32_9 : i32
    %c36_i32_10 = arith.constant 36 : i32
    %29 = arith.muli %28, %c36_i32_10 : i32
    %c0_i32_11 = arith.constant 0 : i32
    %30 = arith.addi %29, %c0_i32_11 : i32
    %31 = arith.index_cast %30 : i32 to index
    %32 = memref.load %arg2[%31] : memref<288xf32, #tpu.memory_space<smem>>
    %33 = vector.broadcast %26 : f32 to vector<16x36xf32>
    %34 = arith.mulf %33, %21 : vector<16x36xf32>
    %35 = arith.addf %4, %34 : vector<16x36xf32>
    %36 = vector.broadcast %32 : f32 to vector<16x36xf32>
    %37 = arith.mulf %36, %21 : vector<16x36xf32>
    %38 = arith.addf %9, %37 : vector<16x36xf32>
    %c1_i32_12 = arith.constant 1 : i32
    %39 = arith.addi %0, %c1_i32_12 : i32
    %c36_i32_13 = arith.constant 36 : i32
    %40 = arith.muli %39, %c36_i32_13 : i32
    %c0_i32_14 = arith.constant 0 : i32
    %41 = arith.addi %40, %c0_i32_14 : i32
    %42 = arith.index_cast %41 : i32 to index
    %43 = memref.load %arg2[%42] : memref<288xf32, #tpu.memory_space<smem>>
    %c4_i32_15 = arith.constant 4 : i32
    %44 = arith.addi %c4_i32_15, %0 : i32
    %c1_i32_16 = arith.constant 1 : i32
    %45 = arith.addi %44, %c1_i32_16 : i32
    %c36_i32_17 = arith.constant 36 : i32
    %46 = arith.muli %45, %c36_i32_17 : i32
    %c0_i32_18 = arith.constant 0 : i32
    %47 = arith.addi %46, %c0_i32_18 : i32
    %48 = arith.index_cast %47 : i32 to index
    %49 = memref.load %arg2[%48] : memref<288xf32, #tpu.memory_space<smem>>
    %50 = vector.broadcast %43 : f32 to vector<16x36xf32>
    %51 = arith.mulf %50, %21 : vector<16x36xf32>
    %52 = arith.addf %13, %51 : vector<16x36xf32>
    %53 = vector.broadcast %49 : f32 to vector<16x36xf32>
    %54 = arith.mulf %53, %21 : vector<16x36xf32>
    %55 = arith.addf %18, %54 : vector<16x36xf32>
    %56 = vector.extract_strided_slice %20 {offsets = [2, 0], sizes = [16, 36], strides = [1, 1]} : vector<20x36xf32> to vector<16x36xf32>
    %c0_i32_19 = arith.constant 0 : i32
    %57 = arith.addi %0, %c0_i32_19 : i32
    %c36_i32_20 = arith.constant 36 : i32
    %58 = arith.muli %57, %c36_i32_20 : i32
    %c3_i32 = arith.constant 3 : i32
    %59 = arith.addi %58, %c3_i32 : i32
    %60 = arith.index_cast %59 : i32 to index
    %61 = memref.load %arg2[%60] : memref<288xf32, #tpu.memory_space<smem>>
    %c4_i32_21 = arith.constant 4 : i32
    %62 = arith.addi %c4_i32_21, %0 : i32
    %c0_i32_22 = arith.constant 0 : i32
    %63 = arith.addi %62, %c0_i32_22 : i32
    %c36_i32_23 = arith.constant 36 : i32
    %64 = arith.muli %63, %c36_i32_23 : i32
    %c3_i32_24 = arith.constant 3 : i32
    %65 = arith.addi %64, %c3_i32_24 : i32
    %66 = arith.index_cast %65 : i32 to index
    %67 = memref.load %arg2[%66] : memref<288xf32, #tpu.memory_space<smem>>
    %68 = vector.broadcast %61 : f32 to vector<16x36xf32>
    %69 = arith.mulf %68, %56 : vector<16x36xf32>
    %70 = arith.addf %35, %69 : vector<16x36xf32>
    %71 = vector.broadcast %67 : f32 to vector<16x36xf32>
    %72 = arith.mulf %71, %56 : vector<16x36xf32>
    %73 = arith.addf %38, %72 : vector<16x36xf32>
    %c1_i32_25 = arith.constant 1 : i32
    %74 = arith.addi %0, %c1_i32_25 : i32
    %c36_i32_26 = arith.constant 36 : i32
    %75 = arith.muli %74, %c36_i32_26 : i32
    %c3_i32_27 = arith.constant 3 : i32
    %76 = arith.addi %75, %c3_i32_27 : i32
    %77 = arith.index_cast %76 : i32 to index
    %78 = memref.load %arg2[%77] : memref<288xf32, #tpu.memory_space<smem>>
    %c4_i32_28 = arith.constant 4 : i32
    %79 = arith.addi %c4_i32_28, %0 : i32
    %c1_i32_29 = arith.constant 1 : i32
    %80 = arith.addi %79, %c1_i32_29 : i32
    %c36_i32_30 = arith.constant 36 : i32
    %81 = arith.muli %80, %c36_i32_30 : i32
    %c3_i32_31 = arith.constant 3 : i32
    %82 = arith.addi %81, %c3_i32_31 : i32
    %83 = arith.index_cast %82 : i32 to index
    %84 = memref.load %arg2[%83] : memref<288xf32, #tpu.memory_space<smem>>
    %85 = vector.broadcast %78 : f32 to vector<16x36xf32>
    %86 = arith.mulf %85, %56 : vector<16x36xf32>
    %87 = arith.addf %52, %86 : vector<16x36xf32>
    %88 = vector.broadcast %84 : f32 to vector<16x36xf32>
    %89 = arith.mulf %88, %56 : vector<16x36xf32>
    %90 = arith.addf %55, %89 : vector<16x36xf32>
    %91 = vector.extract_strided_slice %20 {offsets = [4, 0], sizes = [16, 36], strides = [1, 1]} : vector<20x36xf32> to vector<16x36xf32>
    %c0_i32_32 = arith.constant 0 : i32
    %92 = arith.addi %0, %c0_i32_32 : i32
    %c36_i32_33 = arith.constant 36 : i32
    %93 = arith.muli %92, %c36_i32_33 : i32
    %c6_i32 = arith.constant 6 : i32
    %94 = arith.addi %93, %c6_i32 : i32
    %95 = arith.index_cast %94 : i32 to index
    %96 = memref.load %arg2[%95] : memref<288xf32, #tpu.memory_space<smem>>
    %c4_i32_34 = arith.constant 4 : i32
    %97 = arith.addi %c4_i32_34, %0 : i32
    %c0_i32_35 = arith.constant 0 : i32
    %98 = arith.addi %97, %c0_i32_35 : i32
    %c36_i32_36 = arith.constant 36 : i32
    %99 = arith.muli %98, %c36_i32_36 : i32
    %c6_i32_37 = arith.constant 6 : i32
    %100 = arith.addi %99, %c6_i32_37 : i32
    %101 = arith.index_cast %100 : i32 to index
    %102 = memref.load %arg2[%101] : memref<288xf32, #tpu.memory_space<smem>>
    %103 = vector.broadcast %96 : f32 to vector<16x36xf32>
    %104 = arith.mulf %103, %91 : vector<16x36xf32>
    %105 = arith.addf %70, %104 : vector<16x36xf32>
    %106 = vector.broadcast %102 : f32 to vector<16x36xf32>
    %107 = arith.mulf %106, %91 : vector<16x36xf32>
    %108 = arith.addf %73, %107 : vector<16x36xf32>
    %c1_i32_38 = arith.constant 1 : i32
    %109 = arith.addi %0, %c1_i32_38 : i32
    %c36_i32_39 = arith.constant 36 : i32
    %110 = arith.muli %109, %c36_i32_39 : i32
    %c6_i32_40 = arith.constant 6 : i32
    %111 = arith.addi %110, %c6_i32_40 : i32
    %112 = arith.index_cast %111 : i32 to index
    %113 = memref.load %arg2[%112] : memref<288xf32, #tpu.memory_space<smem>>
    %c4_i32_41 = arith.constant 4 : i32
    %114 = arith.addi %c4_i32_41, %0 : i32
    %c1_i32_42 = arith.constant 1 : i32
    %115 = arith.addi %114, %c1_i32_42 : i32
    %c36_i32_43 = arith.constant 36 : i32
    %116 = arith.muli %115, %c36_i32_43 : i32
    %c6_i32_44 = arith.constant 6 : i32
    %117 = arith.addi %116, %c6_i32_44 : i32
    %118 = arith.index_cast %117 : i32 to index
    %119 = memref.load %arg2[%118] : memref<288xf32, #tpu.memory_space<smem>>
    %120 = vector.broadcast %113 : f32 to vector<16x36xf32>
    %121 = arith.mulf %120, %91 : vector<16x36xf32>
    %122 = arith.addf %87, %121 : vector<16x36xf32>
    %123 = vector.broadcast %119 : f32 to vector<16x36xf32>
    %124 = arith.mulf %123, %91 : vector<16x36xf32>
    %125 = arith.addf %90, %124 : vector<16x36xf32>
    %c0_45 = arith.constant 0 : index
    %c0_46 = arith.constant 0 : index
    %c0_47 = arith.constant 0 : index
    %c2 = arith.constant 2 : index
    %126 = vector.load %arg4[%c0_45, %c0_46, %c0_47, %c2] : memref<1x4x20x40xf32, #tpu.memory_space<vmem>>, vector<1x1x20x36xf32>
    %127 = vector.shape_cast %126 : vector<1x1x20x36xf32> to vector<20x36xf32>
    %128 = vector.extract_strided_slice %127 {offsets = [0, 0], sizes = [16, 36], strides = [1, 1]} : vector<20x36xf32> to vector<16x36xf32>
    %c0_i32_48 = arith.constant 0 : i32
    %129 = arith.addi %0, %c0_i32_48 : i32
    %c36_i32_49 = arith.constant 36 : i32
    %130 = arith.muli %129, %c36_i32_49 : i32
    %c1_i32_50 = arith.constant 1 : i32
    %131 = arith.addi %130, %c1_i32_50 : i32
    %132 = arith.index_cast %131 : i32 to index
    %133 = memref.load %arg2[%132] : memref<288xf32, #tpu.memory_space<smem>>
    %c4_i32_51 = arith.constant 4 : i32
    %134 = arith.addi %c4_i32_51, %0 : i32
    %c0_i32_52 = arith.constant 0 : i32
    %135 = arith.addi %134, %c0_i32_52 : i32
    %c36_i32_53 = arith.constant 36 : i32
    %136 = arith.muli %135, %c36_i32_53 : i32
    %c1_i32_54 = arith.constant 1 : i32
    %137 = arith.addi %136, %c1_i32_54 : i32
    %138 = arith.index_cast %137 : i32 to index
    %139 = memref.load %arg2[%138] : memref<288xf32, #tpu.memory_space<smem>>
    %140 = vector.broadcast %133 : f32 to vector<16x36xf32>
    %141 = arith.mulf %140, %128 : vector<16x36xf32>
    %142 = arith.addf %105, %141 : vector<16x36xf32>
    %143 = vector.broadcast %139 : f32 to vector<16x36xf32>
    %144 = arith.mulf %143, %128 : vector<16x36xf32>
    %145 = arith.addf %108, %144 : vector<16x36xf32>
    %c1_i32_55 = arith.constant 1 : i32
    %146 = arith.addi %0, %c1_i32_55 : i32
    %c36_i32_56 = arith.constant 36 : i32
    %147 = arith.muli %146, %c36_i32_56 : i32
    %c1_i32_57 = arith.constant 1 : i32
    %148 = arith.addi %147, %c1_i32_57 : i32
    %149 = arith.index_cast %148 : i32 to index
    %150 = memref.load %arg2[%149] : memref<288xf32, #tpu.memory_space<smem>>
    %c4_i32_58 = arith.constant 4 : i32
    %151 = arith.addi %c4_i32_58, %0 : i32
    %c1_i32_59 = arith.constant 1 : i32
    %152 = arith.addi %151, %c1_i32_59 : i32
    %c36_i32_60 = arith.constant 36 : i32
    %153 = arith.muli %152, %c36_i32_60 : i32
    %c1_i32_61 = arith.constant 1 : i32
    %154 = arith.addi %153, %c1_i32_61 : i32
    %155 = arith.index_cast %154 : i32 to index
    %156 = memref.load %arg2[%155] : memref<288xf32, #tpu.memory_space<smem>>
    %157 = vector.broadcast %150 : f32 to vector<16x36xf32>
    %158 = arith.mulf %157, %128 : vector<16x36xf32>
    %159 = arith.addf %122, %158 : vector<16x36xf32>
    %160 = vector.broadcast %156 : f32 to vector<16x36xf32>
    %161 = arith.mulf %160, %128 : vector<16x36xf32>
    %162 = arith.addf %125, %161 : vector<16x36xf32>
    %163 = vector.extract_strided_slice %127 {offsets = [2, 0], sizes = [16, 36], strides = [1, 1]} : vector<20x36xf32> to vector<16x36xf32>
    %c0_i32_62 = arith.constant 0 : i32
    %164 = arith.addi %0, %c0_i32_62 : i32
    %c36_i32_63 = arith.constant 36 : i32
    %165 = arith.muli %164, %c36_i32_63 : i32
    %c4_i32_64 = arith.constant 4 : i32
    %166 = arith.addi %165, %c4_i32_64 : i32
    %167 = arith.index_cast %166 : i32 to index
    %168 = memref.load %arg2[%167] : memref<288xf32, #tpu.memory_space<smem>>
    %c4_i32_65 = arith.constant 4 : i32
    %169 = arith.addi %c4_i32_65, %0 : i32
    %c0_i32_66 = arith.constant 0 : i32
    %170 = arith.addi %169, %c0_i32_66 : i32
    %c36_i32_67 = arith.constant 36 : i32
    %171 = arith.muli %170, %c36_i32_67 : i32
    %c4_i32_68 = arith.constant 4 : i32
    %172 = arith.addi %171, %c4_i32_68 : i32
    %173 = arith.index_cast %172 : i32 to index
    %174 = memref.load %arg2[%173] : memref<288xf32, #tpu.memory_space<smem>>
    %175 = vector.broadcast %168 : f32 to vector<16x36xf32>
    %176 = arith.mulf %175, %163 : vector<16x36xf32>
    %177 = arith.addf %142, %176 : vector<16x36xf32>
    %178 = vector.broadcast %174 : f32 to vector<16x36xf32>
    %179 = arith.mulf %178, %163 : vector<16x36xf32>
    %180 = arith.addf %145, %179 : vector<16x36xf32>
    %c1_i32_69 = arith.constant 1 : i32
    %181 = arith.addi %0, %c1_i32_69 : i32
    %c36_i32_70 = arith.constant 36 : i32
    %182 = arith.muli %181, %c36_i32_70 : i32
    %c4_i32_71 = arith.constant 4 : i32
    %183 = arith.addi %182, %c4_i32_71 : i32
    %184 = arith.index_cast %183 : i32 to index
    %185 = memref.load %arg2[%184] : memref<288xf32, #tpu.memory_space<smem>>
    %c4_i32_72 = arith.constant 4 : i32
    %186 = arith.addi %c4_i32_72, %0 : i32
    %c1_i32_73 = arith.constant 1 : i32
    %187 = arith.addi %186, %c1_i32_73 : i32
    %c36_i32_74 = arith.constant 36 : i32
    %188 = arith.muli %187, %c36_i32_74 : i32
    %c4_i32_75 = arith.constant 4 : i32
    %189 = arith.addi %188, %c4_i32_75 : i32
    %190 = arith.index_cast %189 : i32 to index
    %191 = memref.load %arg2[%190] : memref<288xf32, #tpu.memory_space<smem>>
    %192 = vector.broadcast %185 : f32 to vector<16x36xf32>
    %193 = arith.mulf %192, %163 : vector<16x36xf32>
    %194 = arith.addf %159, %193 : vector<16x36xf32>
    %195 = vector.broadcast %191 : f32 to vector<16x36xf32>
    %196 = arith.mulf %195, %163 : vector<16x36xf32>
    %197 = arith.addf %162, %196 : vector<16x36xf32>
    %198 = vector.extract_strided_slice %127 {offsets = [4, 0], sizes = [16, 36], strides = [1, 1]} : vector<20x36xf32> to vector<16x36xf32>
    %c0_i32_76 = arith.constant 0 : i32
    %199 = arith.addi %0, %c0_i32_76 : i32
    %c36_i32_77 = arith.constant 36 : i32
    %200 = arith.muli %199, %c36_i32_77 : i32
    %c7_i32 = arith.constant 7 : i32
    %201 = arith.addi %200, %c7_i32 : i32
    %202 = arith.index_cast %201 : i32 to index
    %203 = memref.load %arg2[%202] : memref<288xf32, #tpu.memory_space<smem>>
    %c4_i32_78 = arith.constant 4 : i32
    %204 = arith.addi %c4_i32_78, %0 : i32
    %c0_i32_79 = arith.constant 0 : i32
    %205 = arith.addi %204, %c0_i32_79 : i32
    %c36_i32_80 = arith.constant 36 : i32
    %206 = arith.muli %205, %c36_i32_80 : i32
    %c7_i32_81 = arith.constant 7 : i32
    %207 = arith.addi %206, %c7_i32_81 : i32
    %208 = arith.index_cast %207 : i32 to index
    %209 = memref.load %arg2[%208] : memref<288xf32, #tpu.memory_space<smem>>
    %210 = vector.broadcast %203 : f32 to vector<16x36xf32>
    %211 = arith.mulf %210, %198 : vector<16x36xf32>
    %212 = arith.addf %177, %211 : vector<16x36xf32>
    %213 = vector.broadcast %209 : f32 to vector<16x36xf32>
    %214 = arith.mulf %213, %198 : vector<16x36xf32>
    %215 = arith.addf %180, %214 : vector<16x36xf32>
    %c1_i32_82 = arith.constant 1 : i32
    %216 = arith.addi %0, %c1_i32_82 : i32
    %c36_i32_83 = arith.constant 36 : i32
    %217 = arith.muli %216, %c36_i32_83 : i32
    %c7_i32_84 = arith.constant 7 : i32
    %218 = arith.addi %217, %c7_i32_84 : i32
    %219 = arith.index_cast %218 : i32 to index
    %220 = memref.load %arg2[%219] : memref<288xf32, #tpu.memory_space<smem>>
    %c4_i32_85 = arith.constant 4 : i32
    %221 = arith.addi %c4_i32_85, %0 : i32
    %c1_i32_86 = arith.constant 1 : i32
    %222 = arith.addi %221, %c1_i32_86 : i32
    %c36_i32_87 = arith.constant 36 : i32
    %223 = arith.muli %222, %c36_i32_87 : i32
    %c7_i32_88 = arith.constant 7 : i32
    %224 = arith.addi %223, %c7_i32_88 : i32
    %225 = arith.index_cast %224 : i32 to index
    %226 = memref.load %arg2[%225] : memref<288xf32, #tpu.memory_space<smem>>
    %227 = vector.broadcast %220 : f32 to vector<16x36xf32>
    %228 = arith.mulf %227, %198 : vector<16x36xf32>
    %229 = arith.addf %194, %228 : vector<16x36xf32>
    %230 = vector.broadcast %226 : f32 to vector<16x36xf32>
    %231 = arith.mulf %230, %198 : vector<16x36xf32>
    %232 = arith.addf %197, %231 : vector<16x36xf32>
    %c0_89 = arith.constant 0 : index
    %c0_90 = arith.constant 0 : index
    %c0_91 = arith.constant 0 : index
    %c4 = arith.constant 4 : index
    %233 = vector.load %arg4[%c0_89, %c0_90, %c0_91, %c4] : memref<1x4x20x40xf32, #tpu.memory_space<vmem>>, vector<1x1x20x36xf32>
    %234 = vector.shape_cast %233 : vector<1x1x20x36xf32> to vector<20x36xf32>
    %235 = vector.extract_strided_slice %234 {offsets = [0, 0], sizes = [16, 36], strides = [1, 1]} : vector<20x36xf32> to vector<16x36xf32>
    %c0_i32_92 = arith.constant 0 : i32
    %236 = arith.addi %0, %c0_i32_92 : i32
    %c36_i32_93 = arith.constant 36 : i32
    %237 = arith.muli %236, %c36_i32_93 : i32
    %c2_i32_94 = arith.constant 2 : i32
    %238 = arith.addi %237, %c2_i32_94 : i32
    %239 = arith.index_cast %238 : i32 to index
    %240 = memref.load %arg2[%239] : memref<288xf32, #tpu.memory_space<smem>>
    %c4_i32_95 = arith.constant 4 : i32
    %241 = arith.addi %c4_i32_95, %0 : i32
    %c0_i32_96 = arith.constant 0 : i32
    %242 = arith.addi %241, %c0_i32_96 : i32
    %c36_i32_97 = arith.constant 36 : i32
    %243 = arith.muli %242, %c36_i32_97 : i32
    %c2_i32_98 = arith.constant 2 : i32
    %244 = arith.addi %243, %c2_i32_98 : i32
    %245 = arith.index_cast %244 : i32 to index
    %246 = memref.load %arg2[%245] : memref<288xf32, #tpu.memory_space<smem>>
    %247 = vector.broadcast %240 : f32 to vector<16x36xf32>
    %248 = arith.mulf %247, %235 : vector<16x36xf32>
    %249 = arith.addf %212, %248 : vector<16x36xf32>
    %250 = vector.broadcast %246 : f32 to vector<16x36xf32>
    %251 = arith.mulf %250, %235 : vector<16x36xf32>
    %252 = arith.addf %215, %251 : vector<16x36xf32>
    %c1_i32_99 = arith.constant 1 : i32
    %253 = arith.addi %0, %c1_i32_99 : i32
    %c36_i32_100 = arith.constant 36 : i32
    %254 = arith.muli %253, %c36_i32_100 : i32
    %c2_i32_101 = arith.constant 2 : i32
    %255 = arith.addi %254, %c2_i32_101 : i32
    %256 = arith.index_cast %255 : i32 to index
    %257 = memref.load %arg2[%256] : memref<288xf32, #tpu.memory_space<smem>>
    %c4_i32_102 = arith.constant 4 : i32
    %258 = arith.addi %c4_i32_102, %0 : i32
    %c1_i32_103 = arith.constant 1 : i32
    %259 = arith.addi %258, %c1_i32_103 : i32
    %c36_i32_104 = arith.constant 36 : i32
    %260 = arith.muli %259, %c36_i32_104 : i32
    %c2_i32_105 = arith.constant 2 : i32
    %261 = arith.addi %260, %c2_i32_105 : i32
    %262 = arith.index_cast %261 : i32 to index
    %263 = memref.load %arg2[%262] : memref<288xf32, #tpu.memory_space<smem>>
    %264 = vector.broadcast %257 : f32 to vector<16x36xf32>
    %265 = arith.mulf %264, %235 : vector<16x36xf32>
    %266 = arith.addf %229, %265 : vector<16x36xf32>
    %267 = vector.broadcast %263 : f32 to vector<16x36xf32>
    %268 = arith.mulf %267, %235 : vector<16x36xf32>
    %269 = arith.addf %232, %268 : vector<16x36xf32>
    %270 = vector.extract_strided_slice %234 {offsets = [2, 0], sizes = [16, 36], strides = [1, 1]} : vector<20x36xf32> to vector<16x36xf32>
    %c0_i32_106 = arith.constant 0 : i32
    %271 = arith.addi %0, %c0_i32_106 : i32
    %c36_i32_107 = arith.constant 36 : i32
    %272 = arith.muli %271, %c36_i32_107 : i32
    %c5_i32 = arith.constant 5 : i32
    %273 = arith.addi %272, %c5_i32 : i32
    %274 = arith.index_cast %273 : i32 to index
    %275 = memref.load %arg2[%274] : memref<288xf32, #tpu.memory_space<smem>>
    %c4_i32_108 = arith.constant 4 : i32
    %276 = arith.addi %c4_i32_108, %0 : i32
    %c0_i32_109 = arith.constant 0 : i32
    %277 = arith.addi %276, %c0_i32_109 : i32
    %c36_i32_110 = arith.constant 36 : i32
    %278 = arith.muli %277, %c36_i32_110 : i32
    %c5_i32_111 = arith.constant 5 : i32
    %279 = arith.addi %278, %c5_i32_111 : i32
    %280 = arith.index_cast %279 : i32 to index
    %281 = memref.load %arg2[%280] : memref<288xf32, #tpu.memory_space<smem>>
    %282 = vector.broadcast %275 : f32 to vector<16x36xf32>
    %283 = arith.mulf %282, %270 : vector<16x36xf32>
    %284 = arith.addf %249, %283 : vector<16x36xf32>
    %285 = vector.broadcast %281 : f32 to vector<16x36xf32>
    %286 = arith.mulf %285, %270 : vector<16x36xf32>
    %287 = arith.addf %252, %286 : vector<16x36xf32>
    %c1_i32_112 = arith.constant 1 : i32
    %288 = arith.addi %0, %c1_i32_112 : i32
    %c36_i32_113 = arith.constant 36 : i32
    %289 = arith.muli %288, %c36_i32_113 : i32
    %c5_i32_114 = arith.constant 5 : i32
    %290 = arith.addi %289, %c5_i32_114 : i32
    %291 = arith.index_cast %290 : i32 to index
    %292 = memref.load %arg2[%291] : memref<288xf32, #tpu.memory_space<smem>>
    %c4_i32_115 = arith.constant 4 : i32
    %293 = arith.addi %c4_i32_115, %0 : i32
    %c1_i32_116 = arith.constant 1 : i32
    %294 = arith.addi %293, %c1_i32_116 : i32
    %c36_i32_117 = arith.constant 36 : i32
    %295 = arith.muli %294, %c36_i32_117 : i32
    %c5_i32_118 = arith.constant 5 : i32
    %296 = arith.addi %295, %c5_i32_118 : i32
    %297 = arith.index_cast %296 : i32 to index
    %298 = memref.load %arg2[%297] : memref<288xf32, #tpu.memory_space<smem>>
    %299 = vector.broadcast %292 : f32 to vector<16x36xf32>
    %300 = arith.mulf %299, %270 : vector<16x36xf32>
    %301 = arith.addf %266, %300 : vector<16x36xf32>
    %302 = vector.broadcast %298 : f32 to vector<16x36xf32>
    %303 = arith.mulf %302, %270 : vector<16x36xf32>
    %304 = arith.addf %269, %303 : vector<16x36xf32>
    %305 = vector.extract_strided_slice %234 {offsets = [4, 0], sizes = [16, 36], strides = [1, 1]} : vector<20x36xf32> to vector<16x36xf32>
    %c0_i32_119 = arith.constant 0 : i32
    %306 = arith.addi %0, %c0_i32_119 : i32
    %c36_i32_120 = arith.constant 36 : i32
    %307 = arith.muli %306, %c36_i32_120 : i32
    %c8_i32 = arith.constant 8 : i32
    %308 = arith.addi %307, %c8_i32 : i32
    %309 = arith.index_cast %308 : i32 to index
    %310 = memref.load %arg2[%309] : memref<288xf32, #tpu.memory_space<smem>>
    %c4_i32_121 = arith.constant 4 : i32
    %311 = arith.addi %c4_i32_121, %0 : i32
    %c0_i32_122 = arith.constant 0 : i32
    %312 = arith.addi %311, %c0_i32_122 : i32
    %c36_i32_123 = arith.constant 36 : i32
    %313 = arith.muli %312, %c36_i32_123 : i32
    %c8_i32_124 = arith.constant 8 : i32
    %314 = arith.addi %313, %c8_i32_124 : i32
    %315 = arith.index_cast %314 : i32 to index
    %316 = memref.load %arg2[%315] : memref<288xf32, #tpu.memory_space<smem>>
    %317 = vector.broadcast %310 : f32 to vector<16x36xf32>
    %318 = arith.mulf %317, %305 : vector<16x36xf32>
    %319 = arith.addf %284, %318 : vector<16x36xf32>
    %320 = vector.broadcast %316 : f32 to vector<16x36xf32>
    %321 = arith.mulf %320, %305 : vector<16x36xf32>
    %322 = arith.addf %287, %321 : vector<16x36xf32>
    %c1_i32_125 = arith.constant 1 : i32
    %323 = arith.addi %0, %c1_i32_125 : i32
    %c36_i32_126 = arith.constant 36 : i32
    %324 = arith.muli %323, %c36_i32_126 : i32
    %c8_i32_127 = arith.constant 8 : i32
    %325 = arith.addi %324, %c8_i32_127 : i32
    %326 = arith.index_cast %325 : i32 to index
    %327 = memref.load %arg2[%326] : memref<288xf32, #tpu.memory_space<smem>>
    %c4_i32_128 = arith.constant 4 : i32
    %328 = arith.addi %c4_i32_128, %0 : i32
    %c1_i32_129 = arith.constant 1 : i32
    %329 = arith.addi %328, %c1_i32_129 : i32
    %c36_i32_130 = arith.constant 36 : i32
    %330 = arith.muli %329, %c36_i32_130 : i32
    %c8_i32_131 = arith.constant 8 : i32
    %331 = arith.addi %330, %c8_i32_131 : i32
    %332 = arith.index_cast %331 : i32 to index
    %333 = memref.load %arg2[%332] : memref<288xf32, #tpu.memory_space<smem>>
    %334 = vector.broadcast %327 : f32 to vector<16x36xf32>
    %335 = arith.mulf %334, %305 : vector<16x36xf32>
    %336 = arith.addf %301, %335 : vector<16x36xf32>
    %337 = vector.broadcast %333 : f32 to vector<16x36xf32>
    %338 = arith.mulf %337, %305 : vector<16x36xf32>
    %339 = arith.addf %304, %338 : vector<16x36xf32>
    %c0_132 = arith.constant 0 : index
    %c1 = arith.constant 1 : index
    %c0_133 = arith.constant 0 : index
    %c0_134 = arith.constant 0 : index
    %340 = vector.load %arg4[%c0_132, %c1, %c0_133, %c0_134] : memref<1x4x20x40xf32, #tpu.memory_space<vmem>>, vector<1x1x20x36xf32>
    %341 = vector.shape_cast %340 : vector<1x1x20x36xf32> to vector<20x36xf32>
    %342 = vector.extract_strided_slice %341 {offsets = [0, 0], sizes = [16, 36], strides = [1, 1]} : vector<20x36xf32> to vector<16x36xf32>
    %c0_i32_135 = arith.constant 0 : i32
    %343 = arith.addi %0, %c0_i32_135 : i32
    %c36_i32_136 = arith.constant 36 : i32
    %344 = arith.muli %343, %c36_i32_136 : i32
    %c9_i32 = arith.constant 9 : i32
    %345 = arith.addi %344, %c9_i32 : i32
    %346 = arith.index_cast %345 : i32 to index
    %347 = memref.load %arg2[%346] : memref<288xf32, #tpu.memory_space<smem>>
    %c4_i32_137 = arith.constant 4 : i32
    %348 = arith.addi %c4_i32_137, %0 : i32
    %c0_i32_138 = arith.constant 0 : i32
    %349 = arith.addi %348, %c0_i32_138 : i32
    %c36_i32_139 = arith.constant 36 : i32
    %350 = arith.muli %349, %c36_i32_139 : i32
    %c9_i32_140 = arith.constant 9 : i32
    %351 = arith.addi %350, %c9_i32_140 : i32
    %352 = arith.index_cast %351 : i32 to index
    %353 = memref.load %arg2[%352] : memref<288xf32, #tpu.memory_space<smem>>
    %354 = vector.broadcast %347 : f32 to vector<16x36xf32>
    %355 = arith.mulf %354, %342 : vector<16x36xf32>
    %356 = arith.addf %319, %355 : vector<16x36xf32>
    %357 = vector.broadcast %353 : f32 to vector<16x36xf32>
    %358 = arith.mulf %357, %342 : vector<16x36xf32>
    %359 = arith.addf %322, %358 : vector<16x36xf32>
    %c1_i32_141 = arith.constant 1 : i32
    %360 = arith.addi %0, %c1_i32_141 : i32
    %c36_i32_142 = arith.constant 36 : i32
    %361 = arith.muli %360, %c36_i32_142 : i32
    %c9_i32_143 = arith.constant 9 : i32
    %362 = arith.addi %361, %c9_i32_143 : i32
    %363 = arith.index_cast %362 : i32 to index
    %364 = memref.load %arg2[%363] : memref<288xf32, #tpu.memory_space<smem>>
    %c4_i32_144 = arith.constant 4 : i32
    %365 = arith.addi %c4_i32_144, %0 : i32
    %c1_i32_145 = arith.constant 1 : i32
    %366 = arith.addi %365, %c1_i32_145 : i32
    %c36_i32_146 = arith.constant 36 : i32
    %367 = arith.muli %366, %c36_i32_146 : i32
    %c9_i32_147 = arith.constant 9 : i32
    %368 = arith.addi %367, %c9_i32_147 : i32
    %369 = arith.index_cast %368 : i32 to index
    %370 = memref.load %arg2[%369] : memref<288xf32, #tpu.memory_space<smem>>
    %371 = vector.broadcast %364 : f32 to vector<16x36xf32>
    %372 = arith.mulf %371, %342 : vector<16x36xf32>
    %373 = arith.addf %336, %372 : vector<16x36xf32>
    %374 = vector.broadcast %370 : f32 to vector<16x36xf32>
    %375 = arith.mulf %374, %342 : vector<16x36xf32>
    %376 = arith.addf %339, %375 : vector<16x36xf32>
    %377 = vector.extract_strided_slice %341 {offsets = [2, 0], sizes = [16, 36], strides = [1, 1]} : vector<20x36xf32> to vector<16x36xf32>
    %c0_i32_148 = arith.constant 0 : i32
    %378 = arith.addi %0, %c0_i32_148 : i32
    %c36_i32_149 = arith.constant 36 : i32
    %379 = arith.muli %378, %c36_i32_149 : i32
    %c12_i32 = arith.constant 12 : i32
    %380 = arith.addi %379, %c12_i32 : i32
    %381 = arith.index_cast %380 : i32 to index
    %382 = memref.load %arg2[%381] : memref<288xf32, #tpu.memory_space<smem>>
    %c4_i32_150 = arith.constant 4 : i32
    %383 = arith.addi %c4_i32_150, %0 : i32
    %c0_i32_151 = arith.constant 0 : i32
    %384 = arith.addi %383, %c0_i32_151 : i32
    %c36_i32_152 = arith.constant 36 : i32
    %385 = arith.muli %384, %c36_i32_152 : i32
    %c12_i32_153 = arith.constant 12 : i32
    %386 = arith.addi %385, %c12_i32_153 : i32
    %387 = arith.index_cast %386 : i32 to index
    %388 = memref.load %arg2[%387] : memref<288xf32, #tpu.memory_space<smem>>
    %389 = vector.broadcast %382 : f32 to vector<16x36xf32>
    %390 = arith.mulf %389, %377 : vector<16x36xf32>
    %391 = arith.addf %356, %390 : vector<16x36xf32>
    %392 = vector.broadcast %388 : f32 to vector<16x36xf32>
    %393 = arith.mulf %392, %377 : vector<16x36xf32>
    %394 = arith.addf %359, %393 : vector<16x36xf32>
    %c1_i32_154 = arith.constant 1 : i32
    %395 = arith.addi %0, %c1_i32_154 : i32
    %c36_i32_155 = arith.constant 36 : i32
    %396 = arith.muli %395, %c36_i32_155 : i32
    %c12_i32_156 = arith.constant 12 : i32
    %397 = arith.addi %396, %c12_i32_156 : i32
    %398 = arith.index_cast %397 : i32 to index
    %399 = memref.load %arg2[%398] : memref<288xf32, #tpu.memory_space<smem>>
    %c4_i32_157 = arith.constant 4 : i32
    %400 = arith.addi %c4_i32_157, %0 : i32
    %c1_i32_158 = arith.constant 1 : i32
    %401 = arith.addi %400, %c1_i32_158 : i32
    %c36_i32_159 = arith.constant 36 : i32
    %402 = arith.muli %401, %c36_i32_159 : i32
    %c12_i32_160 = arith.constant 12 : i32
    %403 = arith.addi %402, %c12_i32_160 : i32
    %404 = arith.index_cast %403 : i32 to index
    %405 = memref.load %arg2[%404] : memref<288xf32, #tpu.memory_space<smem>>
    %406 = vector.broadcast %399 : f32 to vector<16x36xf32>
    %407 = arith.mulf %406, %377 : vector<16x36xf32>
    %408 = arith.addf %373, %407 : vector<16x36xf32>
    %409 = vector.broadcast %405 : f32 to vector<16x36xf32>
    %410 = arith.mulf %409, %377 : vector<16x36xf32>
    %411 = arith.addf %376, %410 : vector<16x36xf32>
    %412 = vector.extract_strided_slice %341 {offsets = [4, 0], sizes = [16, 36], strides = [1, 1]} : vector<20x36xf32> to vector<16x36xf32>
    %c0_i32_161 = arith.constant 0 : i32
    %413 = arith.addi %0, %c0_i32_161 : i32
    %c36_i32_162 = arith.constant 36 : i32
    %414 = arith.muli %413, %c36_i32_162 : i32
    %c15_i32 = arith.constant 15 : i32
    %415 = arith.addi %414, %c15_i32 : i32
    %416 = arith.index_cast %415 : i32 to index
    %417 = memref.load %arg2[%416] : memref<288xf32, #tpu.memory_space<smem>>
    %c4_i32_163 = arith.constant 4 : i32
    %418 = arith.addi %c4_i32_163, %0 : i32
    %c0_i32_164 = arith.constant 0 : i32
    %419 = arith.addi %418, %c0_i32_164 : i32
    %c36_i32_165 = arith.constant 36 : i32
    %420 = arith.muli %419, %c36_i32_165 : i32
    %c15_i32_166 = arith.constant 15 : i32
    %421 = arith.addi %420, %c15_i32_166 : i32
    %422 = arith.index_cast %421 : i32 to index
    %423 = memref.load %arg2[%422] : memref<288xf32, #tpu.memory_space<smem>>
    %424 = vector.broadcast %417 : f32 to vector<16x36xf32>
    %425 = arith.mulf %424, %412 : vector<16x36xf32>
    %426 = arith.addf %391, %425 : vector<16x36xf32>
    %427 = vector.broadcast %423 : f32 to vector<16x36xf32>
    %428 = arith.mulf %427, %412 : vector<16x36xf32>
    %429 = arith.addf %394, %428 : vector<16x36xf32>
    %c1_i32_167 = arith.constant 1 : i32
    %430 = arith.addi %0, %c1_i32_167 : i32
    %c36_i32_168 = arith.constant 36 : i32
    %431 = arith.muli %430, %c36_i32_168 : i32
    %c15_i32_169 = arith.constant 15 : i32
    %432 = arith.addi %431, %c15_i32_169 : i32
    %433 = arith.index_cast %432 : i32 to index
    %434 = memref.load %arg2[%433] : memref<288xf32, #tpu.memory_space<smem>>
    %c4_i32_170 = arith.constant 4 : i32
    %435 = arith.addi %c4_i32_170, %0 : i32
    %c1_i32_171 = arith.constant 1 : i32
    %436 = arith.addi %435, %c1_i32_171 : i32
    %c36_i32_172 = arith.constant 36 : i32
    %437 = arith.muli %436, %c36_i32_172 : i32
    %c15_i32_173 = arith.constant 15 : i32
    %438 = arith.addi %437, %c15_i32_173 : i32
    %439 = arith.index_cast %438 : i32 to index
    %440 = memref.load %arg2[%439] : memref<288xf32, #tpu.memory_space<smem>>
    %441 = vector.broadcast %434 : f32 to vector<16x36xf32>
    %442 = arith.mulf %441, %412 : vector<16x36xf32>
    %443 = arith.addf %408, %442 : vector<16x36xf32>
    %444 = vector.broadcast %440 : f32 to vector<16x36xf32>
    %445 = arith.mulf %444, %412 : vector<16x36xf32>
    %446 = arith.addf %411, %445 : vector<16x36xf32>
    %c0_174 = arith.constant 0 : index
    %c1_175 = arith.constant 1 : index
    %c0_176 = arith.constant 0 : index
    %c2_177 = arith.constant 2 : index
    %447 = vector.load %arg4[%c0_174, %c1_175, %c0_176, %c2_177] : memref<1x4x20x40xf32, #tpu.memory_space<vmem>>, vector<1x1x20x36xf32>
    %448 = vector.shape_cast %447 : vector<1x1x20x36xf32> to vector<20x36xf32>
    %449 = vector.extract_strided_slice %448 {offsets = [0, 0], sizes = [16, 36], strides = [1, 1]} : vector<20x36xf32> to vector<16x36xf32>
    %c0_i32_178 = arith.constant 0 : i32
    %450 = arith.addi %0, %c0_i32_178 : i32
    %c36_i32_179 = arith.constant 36 : i32
    %451 = arith.muli %450, %c36_i32_179 : i32
    %c10_i32 = arith.constant 10 : i32
    %452 = arith.addi %451, %c10_i32 : i32
    %453 = arith.index_cast %452 : i32 to index
    %454 = memref.load %arg2[%453] : memref<288xf32, #tpu.memory_space<smem>>
    %c4_i32_180 = arith.constant 4 : i32
    %455 = arith.addi %c4_i32_180, %0 : i32
    %c0_i32_181 = arith.constant 0 : i32
    %456 = arith.addi %455, %c0_i32_181 : i32
    %c36_i32_182 = arith.constant 36 : i32
    %457 = arith.muli %456, %c36_i32_182 : i32
    %c10_i32_183 = arith.constant 10 : i32
    %458 = arith.addi %457, %c10_i32_183 : i32
    %459 = arith.index_cast %458 : i32 to index
    %460 = memref.load %arg2[%459] : memref<288xf32, #tpu.memory_space<smem>>
    %461 = vector.broadcast %454 : f32 to vector<16x36xf32>
    %462 = arith.mulf %461, %449 : vector<16x36xf32>
    %463 = arith.addf %426, %462 : vector<16x36xf32>
    %464 = vector.broadcast %460 : f32 to vector<16x36xf32>
    %465 = arith.mulf %464, %449 : vector<16x36xf32>
    %466 = arith.addf %429, %465 : vector<16x36xf32>
    %c1_i32_184 = arith.constant 1 : i32
    %467 = arith.addi %0, %c1_i32_184 : i32
    %c36_i32_185 = arith.constant 36 : i32
    %468 = arith.muli %467, %c36_i32_185 : i32
    %c10_i32_186 = arith.constant 10 : i32
    %469 = arith.addi %468, %c10_i32_186 : i32
    %470 = arith.index_cast %469 : i32 to index
    %471 = memref.load %arg2[%470] : memref<288xf32, #tpu.memory_space<smem>>
    %c4_i32_187 = arith.constant 4 : i32
    %472 = arith.addi %c4_i32_187, %0 : i32
    %c1_i32_188 = arith.constant 1 : i32
    %473 = arith.addi %472, %c1_i32_188 : i32
    %c36_i32_189 = arith.constant 36 : i32
    %474 = arith.muli %473, %c36_i32_189 : i32
    %c10_i32_190 = arith.constant 10 : i32
    %475 = arith.addi %474, %c10_i32_190 : i32
    %476 = arith.index_cast %475 : i32 to index
    %477 = memref.load %arg2[%476] : memref<288xf32, #tpu.memory_space<smem>>
    %478 = vector.broadcast %471 : f32 to vector<16x36xf32>
    %479 = arith.mulf %478, %449 : vector<16x36xf32>
    %480 = arith.addf %443, %479 : vector<16x36xf32>
    %481 = vector.broadcast %477 : f32 to vector<16x36xf32>
    %482 = arith.mulf %481, %449 : vector<16x36xf32>
    %483 = arith.addf %446, %482 : vector<16x36xf32>
    %484 = vector.extract_strided_slice %448 {offsets = [2, 0], sizes = [16, 36], strides = [1, 1]} : vector<20x36xf32> to vector<16x36xf32>
    %c0_i32_191 = arith.constant 0 : i32
    %485 = arith.addi %0, %c0_i32_191 : i32
    %c36_i32_192 = arith.constant 36 : i32
    %486 = arith.muli %485, %c36_i32_192 : i32
    %c13_i32 = arith.constant 13 : i32
    %487 = arith.addi %486, %c13_i32 : i32
    %488 = arith.index_cast %487 : i32 to index
    %489 = memref.load %arg2[%488] : memref<288xf32, #tpu.memory_space<smem>>
    %c4_i32_193 = arith.constant 4 : i32
    %490 = arith.addi %c4_i32_193, %0 : i32
    %c0_i32_194 = arith.constant 0 : i32
    %491 = arith.addi %490, %c0_i32_194 : i32
    %c36_i32_195 = arith.constant 36 : i32
    %492 = arith.muli %491, %c36_i32_195 : i32
    %c13_i32_196 = arith.constant 13 : i32
    %493 = arith.addi %492, %c13_i32_196 : i32
    %494 = arith.index_cast %493 : i32 to index
    %495 = memref.load %arg2[%494] : memref<288xf32, #tpu.memory_space<smem>>
    %496 = vector.broadcast %489 : f32 to vector<16x36xf32>
    %497 = arith.mulf %496, %484 : vector<16x36xf32>
    %498 = arith.addf %463, %497 : vector<16x36xf32>
    %499 = vector.broadcast %495 : f32 to vector<16x36xf32>
    %500 = arith.mulf %499, %484 : vector<16x36xf32>
    %501 = arith.addf %466, %500 : vector<16x36xf32>
    %c1_i32_197 = arith.constant 1 : i32
    %502 = arith.addi %0, %c1_i32_197 : i32
    %c36_i32_198 = arith.constant 36 : i32
    %503 = arith.muli %502, %c36_i32_198 : i32
    %c13_i32_199 = arith.constant 13 : i32
    %504 = arith.addi %503, %c13_i32_199 : i32
    %505 = arith.index_cast %504 : i32 to index
    %506 = memref.load %arg2[%505] : memref<288xf32, #tpu.memory_space<smem>>
    %c4_i32_200 = arith.constant 4 : i32
    %507 = arith.addi %c4_i32_200, %0 : i32
    %c1_i32_201 = arith.constant 1 : i32
    %508 = arith.addi %507, %c1_i32_201 : i32
    %c36_i32_202 = arith.constant 36 : i32
    %509 = arith.muli %508, %c36_i32_202 : i32
    %c13_i32_203 = arith.constant 13 : i32
    %510 = arith.addi %509, %c13_i32_203 : i32
    %511 = arith.index_cast %510 : i32 to index
    %512 = memref.load %arg2[%511] : memref<288xf32, #tpu.memory_space<smem>>
    %513 = vector.broadcast %506 : f32 to vector<16x36xf32>
    %514 = arith.mulf %513, %484 : vector<16x36xf32>
    %515 = arith.addf %480, %514 : vector<16x36xf32>
    %516 = vector.broadcast %512 : f32 to vector<16x36xf32>
    %517 = arith.mulf %516, %484 : vector<16x36xf32>
    %518 = arith.addf %483, %517 : vector<16x36xf32>
    %519 = vector.extract_strided_slice %448 {offsets = [4, 0], sizes = [16, 36], strides = [1, 1]} : vector<20x36xf32> to vector<16x36xf32>
    %c0_i32_204 = arith.constant 0 : i32
    %520 = arith.addi %0, %c0_i32_204 : i32
    %c36_i32_205 = arith.constant 36 : i32
    %521 = arith.muli %520, %c36_i32_205 : i32
    %c16_i32 = arith.constant 16 : i32
    %522 = arith.addi %521, %c16_i32 : i32
    %523 = arith.index_cast %522 : i32 to index
    %524 = memref.load %arg2[%523] : memref<288xf32, #tpu.memory_space<smem>>
    %c4_i32_206 = arith.constant 4 : i32
    %525 = arith.addi %c4_i32_206, %0 : i32
    %c0_i32_207 = arith.constant 0 : i32
    %526 = arith.addi %525, %c0_i32_207 : i32
    %c36_i32_208 = arith.constant 36 : i32
    %527 = arith.muli %526, %c36_i32_208 : i32
    %c16_i32_209 = arith.constant 16 : i32
    %528 = arith.addi %527, %c16_i32_209 : i32
    %529 = arith.index_cast %528 : i32 to index
    %530 = memref.load %arg2[%529] : memref<288xf32, #tpu.memory_space<smem>>
    %531 = vector.broadcast %524 : f32 to vector<16x36xf32>
    %532 = arith.mulf %531, %519 : vector<16x36xf32>
    %533 = arith.addf %498, %532 : vector<16x36xf32>
    %534 = vector.broadcast %530 : f32 to vector<16x36xf32>
    %535 = arith.mulf %534, %519 : vector<16x36xf32>
    %536 = arith.addf %501, %535 : vector<16x36xf32>
    %c1_i32_210 = arith.constant 1 : i32
    %537 = arith.addi %0, %c1_i32_210 : i32
    %c36_i32_211 = arith.constant 36 : i32
    %538 = arith.muli %537, %c36_i32_211 : i32
    %c16_i32_212 = arith.constant 16 : i32
    %539 = arith.addi %538, %c16_i32_212 : i32
    %540 = arith.index_cast %539 : i32 to index
    %541 = memref.load %arg2[%540] : memref<288xf32, #tpu.memory_space<smem>>
    %c4_i32_213 = arith.constant 4 : i32
    %542 = arith.addi %c4_i32_213, %0 : i32
    %c1_i32_214 = arith.constant 1 : i32
    %543 = arith.addi %542, %c1_i32_214 : i32
    %c36_i32_215 = arith.constant 36 : i32
    %544 = arith.muli %543, %c36_i32_215 : i32
    %c16_i32_216 = arith.constant 16 : i32
    %545 = arith.addi %544, %c16_i32_216 : i32
    %546 = arith.index_cast %545 : i32 to index
    %547 = memref.load %arg2[%546] : memref<288xf32, #tpu.memory_space<smem>>
    %548 = vector.broadcast %541 : f32 to vector<16x36xf32>
    %549 = arith.mulf %548, %519 : vector<16x36xf32>
    %550 = arith.addf %515, %549 : vector<16x36xf32>
    %551 = vector.broadcast %547 : f32 to vector<16x36xf32>
    %552 = arith.mulf %551, %519 : vector<16x36xf32>
    %553 = arith.addf %518, %552 : vector<16x36xf32>
    %c0_217 = arith.constant 0 : index
    %c1_218 = arith.constant 1 : index
    %c0_219 = arith.constant 0 : index
    %c4_220 = arith.constant 4 : index
    %554 = vector.load %arg4[%c0_217, %c1_218, %c0_219, %c4_220] : memref<1x4x20x40xf32, #tpu.memory_space<vmem>>, vector<1x1x20x36xf32>
    %555 = vector.shape_cast %554 : vector<1x1x20x36xf32> to vector<20x36xf32>
    %556 = vector.extract_strided_slice %555 {offsets = [0, 0], sizes = [16, 36], strides = [1, 1]} : vector<20x36xf32> to vector<16x36xf32>
    %c0_i32_221 = arith.constant 0 : i32
    %557 = arith.addi %0, %c0_i32_221 : i32
    %c36_i32_222 = arith.constant 36 : i32
    %558 = arith.muli %557, %c36_i32_222 : i32
    %c11_i32 = arith.constant 11 : i32
    %559 = arith.addi %558, %c11_i32 : i32
    %560 = arith.index_cast %559 : i32 to index
    %561 = memref.load %arg2[%560] : memref<288xf32, #tpu.memory_space<smem>>
    %c4_i32_223 = arith.constant 4 : i32
    %562 = arith.addi %c4_i32_223, %0 : i32
    %c0_i32_224 = arith.constant 0 : i32
    %563 = arith.addi %562, %c0_i32_224 : i32
    %c36_i32_225 = arith.constant 36 : i32
    %564 = arith.muli %563, %c36_i32_225 : i32
    %c11_i32_226 = arith.constant 11 : i32
    %565 = arith.addi %564, %c11_i32_226 : i32
    %566 = arith.index_cast %565 : i32 to index
    %567 = memref.load %arg2[%566] : memref<288xf32, #tpu.memory_space<smem>>
    %568 = vector.broadcast %561 : f32 to vector<16x36xf32>
    %569 = arith.mulf %568, %556 : vector<16x36xf32>
    %570 = arith.addf %533, %569 : vector<16x36xf32>
    %571 = vector.broadcast %567 : f32 to vector<16x36xf32>
    %572 = arith.mulf %571, %556 : vector<16x36xf32>
    %573 = arith.addf %536, %572 : vector<16x36xf32>
    %c1_i32_227 = arith.constant 1 : i32
    %574 = arith.addi %0, %c1_i32_227 : i32
    %c36_i32_228 = arith.constant 36 : i32
    %575 = arith.muli %574, %c36_i32_228 : i32
    %c11_i32_229 = arith.constant 11 : i32
    %576 = arith.addi %575, %c11_i32_229 : i32
    %577 = arith.index_cast %576 : i32 to index
    %578 = memref.load %arg2[%577] : memref<288xf32, #tpu.memory_space<smem>>
    %c4_i32_230 = arith.constant 4 : i32
    %579 = arith.addi %c4_i32_230, %0 : i32
    %c1_i32_231 = arith.constant 1 : i32
    %580 = arith.addi %579, %c1_i32_231 : i32
    %c36_i32_232 = arith.constant 36 : i32
    %581 = arith.muli %580, %c36_i32_232 : i32
    %c11_i32_233 = arith.constant 11 : i32
    %582 = arith.addi %581, %c11_i32_233 : i32
    %583 = arith.index_cast %582 : i32 to index
    %584 = memref.load %arg2[%583] : memref<288xf32, #tpu.memory_space<smem>>
    %585 = vector.broadcast %578 : f32 to vector<16x36xf32>
    %586 = arith.mulf %585, %556 : vector<16x36xf32>
    %587 = arith.addf %550, %586 : vector<16x36xf32>
    %588 = vector.broadcast %584 : f32 to vector<16x36xf32>
    %589 = arith.mulf %588, %556 : vector<16x36xf32>
    %590 = arith.addf %553, %589 : vector<16x36xf32>
    %591 = vector.extract_strided_slice %555 {offsets = [2, 0], sizes = [16, 36], strides = [1, 1]} : vector<20x36xf32> to vector<16x36xf32>
    %c0_i32_234 = arith.constant 0 : i32
    %592 = arith.addi %0, %c0_i32_234 : i32
    %c36_i32_235 = arith.constant 36 : i32
    %593 = arith.muli %592, %c36_i32_235 : i32
    %c14_i32 = arith.constant 14 : i32
    %594 = arith.addi %593, %c14_i32 : i32
    %595 = arith.index_cast %594 : i32 to index
    %596 = memref.load %arg2[%595] : memref<288xf32, #tpu.memory_space<smem>>
    %c4_i32_236 = arith.constant 4 : i32
    %597 = arith.addi %c4_i32_236, %0 : i32
    %c0_i32_237 = arith.constant 0 : i32
    %598 = arith.addi %597, %c0_i32_237 : i32
    %c36_i32_238 = arith.constant 36 : i32
    %599 = arith.muli %598, %c36_i32_238 : i32
    %c14_i32_239 = arith.constant 14 : i32
    %600 = arith.addi %599, %c14_i32_239 : i32
    %601 = arith.index_cast %600 : i32 to index
    %602 = memref.load %arg2[%601] : memref<288xf32, #tpu.memory_space<smem>>
    %603 = vector.broadcast %596 : f32 to vector<16x36xf32>
    %604 = arith.mulf %603, %591 : vector<16x36xf32>
    %605 = arith.addf %570, %604 : vector<16x36xf32>
    %606 = vector.broadcast %602 : f32 to vector<16x36xf32>
    %607 = arith.mulf %606, %591 : vector<16x36xf32>
    %608 = arith.addf %573, %607 : vector<16x36xf32>
    %c1_i32_240 = arith.constant 1 : i32
    %609 = arith.addi %0, %c1_i32_240 : i32
    %c36_i32_241 = arith.constant 36 : i32
    %610 = arith.muli %609, %c36_i32_241 : i32
    %c14_i32_242 = arith.constant 14 : i32
    %611 = arith.addi %610, %c14_i32_242 : i32
    %612 = arith.index_cast %611 : i32 to index
    %613 = memref.load %arg2[%612] : memref<288xf32, #tpu.memory_space<smem>>
    %c4_i32_243 = arith.constant 4 : i32
    %614 = arith.addi %c4_i32_243, %0 : i32
    %c1_i32_244 = arith.constant 1 : i32
    %615 = arith.addi %614, %c1_i32_244 : i32
    %c36_i32_245 = arith.constant 36 : i32
    %616 = arith.muli %615, %c36_i32_245 : i32
    %c14_i32_246 = arith.constant 14 : i32
    %617 = arith.addi %616, %c14_i32_246 : i32
    %618 = arith.index_cast %617 : i32 to index
    %619 = memref.load %arg2[%618] : memref<288xf32, #tpu.memory_space<smem>>
    %620 = vector.broadcast %613 : f32 to vector<16x36xf32>
    %621 = arith.mulf %620, %591 : vector<16x36xf32>
    %622 = arith.addf %587, %621 : vector<16x36xf32>
    %623 = vector.broadcast %619 : f32 to vector<16x36xf32>
    %624 = arith.mulf %623, %591 : vector<16x36xf32>
    %625 = arith.addf %590, %624 : vector<16x36xf32>
    %626 = vector.extract_strided_slice %555 {offsets = [4, 0], sizes = [16, 36], strides = [1, 1]} : vector<20x36xf32> to vector<16x36xf32>
    %c0_i32_247 = arith.constant 0 : i32
    %627 = arith.addi %0, %c0_i32_247 : i32
    %c36_i32_248 = arith.constant 36 : i32
    %628 = arith.muli %627, %c36_i32_248 : i32
    %c17_i32 = arith.constant 17 : i32
    %629 = arith.addi %628, %c17_i32 : i32
    %630 = arith.index_cast %629 : i32 to index
    %631 = memref.load %arg2[%630] : memref<288xf32, #tpu.memory_space<smem>>
    %c4_i32_249 = arith.constant 4 : i32
    %632 = arith.addi %c4_i32_249, %0 : i32
    %c0_i32_250 = arith.constant 0 : i32
    %633 = arith.addi %632, %c0_i32_250 : i32
    %c36_i32_251 = arith.constant 36 : i32
    %634 = arith.muli %633, %c36_i32_251 : i32
    %c17_i32_252 = arith.constant 17 : i32
    %635 = arith.addi %634, %c17_i32_252 : i32
    %636 = arith.index_cast %635 : i32 to index
    %637 = memref.load %arg2[%636] : memref<288xf32, #tpu.memory_space<smem>>
    %638 = vector.broadcast %631 : f32 to vector<16x36xf32>
    %639 = arith.mulf %638, %626 : vector<16x36xf32>
    %640 = arith.addf %605, %639 : vector<16x36xf32>
    %641 = vector.broadcast %637 : f32 to vector<16x36xf32>
    %642 = arith.mulf %641, %626 : vector<16x36xf32>
    %643 = arith.addf %608, %642 : vector<16x36xf32>
    %c1_i32_253 = arith.constant 1 : i32
    %644 = arith.addi %0, %c1_i32_253 : i32
    %c36_i32_254 = arith.constant 36 : i32
    %645 = arith.muli %644, %c36_i32_254 : i32
    %c17_i32_255 = arith.constant 17 : i32
    %646 = arith.addi %645, %c17_i32_255 : i32
    %647 = arith.index_cast %646 : i32 to index
    %648 = memref.load %arg2[%647] : memref<288xf32, #tpu.memory_space<smem>>
    %c4_i32_256 = arith.constant 4 : i32
    %649 = arith.addi %c4_i32_256, %0 : i32
    %c1_i32_257 = arith.constant 1 : i32
    %650 = arith.addi %649, %c1_i32_257 : i32
    %c36_i32_258 = arith.constant 36 : i32
    %651 = arith.muli %650, %c36_i32_258 : i32
    %c17_i32_259 = arith.constant 17 : i32
    %652 = arith.addi %651, %c17_i32_259 : i32
    %653 = arith.index_cast %652 : i32 to index
    %654 = memref.load %arg2[%653] : memref<288xf32, #tpu.memory_space<smem>>
    %655 = vector.broadcast %648 : f32 to vector<16x36xf32>
    %656 = arith.mulf %655, %626 : vector<16x36xf32>
    %657 = arith.addf %622, %656 : vector<16x36xf32>
    %658 = vector.broadcast %654 : f32 to vector<16x36xf32>
    %659 = arith.mulf %658, %626 : vector<16x36xf32>
    %660 = arith.addf %625, %659 : vector<16x36xf32>
    %c0_260 = arith.constant 0 : index
    %c2_261 = arith.constant 2 : index
    %c0_262 = arith.constant 0 : index
    %c0_263 = arith.constant 0 : index
    %661 = vector.load %arg4[%c0_260, %c2_261, %c0_262, %c0_263] : memref<1x4x20x40xf32, #tpu.memory_space<vmem>>, vector<1x1x20x36xf32>
    %662 = vector.shape_cast %661 : vector<1x1x20x36xf32> to vector<20x36xf32>
    %663 = vector.extract_strided_slice %662 {offsets = [0, 0], sizes = [16, 36], strides = [1, 1]} : vector<20x36xf32> to vector<16x36xf32>
    %c0_i32_264 = arith.constant 0 : i32
    %664 = arith.addi %0, %c0_i32_264 : i32
    %c36_i32_265 = arith.constant 36 : i32
    %665 = arith.muli %664, %c36_i32_265 : i32
    %c18_i32 = arith.constant 18 : i32
    %666 = arith.addi %665, %c18_i32 : i32
    %667 = arith.index_cast %666 : i32 to index
    %668 = memref.load %arg2[%667] : memref<288xf32, #tpu.memory_space<smem>>
    %c4_i32_266 = arith.constant 4 : i32
    %669 = arith.addi %c4_i32_266, %0 : i32
    %c0_i32_267 = arith.constant 0 : i32
    %670 = arith.addi %669, %c0_i32_267 : i32
    %c36_i32_268 = arith.constant 36 : i32
    %671 = arith.muli %670, %c36_i32_268 : i32
    %c18_i32_269 = arith.constant 18 : i32
    %672 = arith.addi %671, %c18_i32_269 : i32
    %673 = arith.index_cast %672 : i32 to index
    %674 = memref.load %arg2[%673] : memref<288xf32, #tpu.memory_space<smem>>
    %675 = vector.broadcast %668 : f32 to vector<16x36xf32>
    %676 = arith.mulf %675, %663 : vector<16x36xf32>
    %677 = arith.addf %640, %676 : vector<16x36xf32>
    %678 = vector.broadcast %674 : f32 to vector<16x36xf32>
    %679 = arith.mulf %678, %663 : vector<16x36xf32>
    %680 = arith.addf %643, %679 : vector<16x36xf32>
    %c1_i32_270 = arith.constant 1 : i32
    %681 = arith.addi %0, %c1_i32_270 : i32
    %c36_i32_271 = arith.constant 36 : i32
    %682 = arith.muli %681, %c36_i32_271 : i32
    %c18_i32_272 = arith.constant 18 : i32
    %683 = arith.addi %682, %c18_i32_272 : i32
    %684 = arith.index_cast %683 : i32 to index
    %685 = memref.load %arg2[%684] : memref<288xf32, #tpu.memory_space<smem>>
    %c4_i32_273 = arith.constant 4 : i32
    %686 = arith.addi %c4_i32_273, %0 : i32
    %c1_i32_274 = arith.constant 1 : i32
    %687 = arith.addi %686, %c1_i32_274 : i32
    %c36_i32_275 = arith.constant 36 : i32
    %688 = arith.muli %687, %c36_i32_275 : i32
    %c18_i32_276 = arith.constant 18 : i32
    %689 = arith.addi %688, %c18_i32_276 : i32
    %690 = arith.index_cast %689 : i32 to index
    %691 = memref.load %arg2[%690] : memref<288xf32, #tpu.memory_space<smem>>
    %692 = vector.broadcast %685 : f32 to vector<16x36xf32>
    %693 = arith.mulf %692, %663 : vector<16x36xf32>
    %694 = arith.addf %657, %693 : vector<16x36xf32>
    %695 = vector.broadcast %691 : f32 to vector<16x36xf32>
    %696 = arith.mulf %695, %663 : vector<16x36xf32>
    %697 = arith.addf %660, %696 : vector<16x36xf32>
    %698 = vector.extract_strided_slice %662 {offsets = [2, 0], sizes = [16, 36], strides = [1, 1]} : vector<20x36xf32> to vector<16x36xf32>
    %c0_i32_277 = arith.constant 0 : i32
    %699 = arith.addi %0, %c0_i32_277 : i32
    %c36_i32_278 = arith.constant 36 : i32
    %700 = arith.muli %699, %c36_i32_278 : i32
    %c21_i32 = arith.constant 21 : i32
    %701 = arith.addi %700, %c21_i32 : i32
    %702 = arith.index_cast %701 : i32 to index
    %703 = memref.load %arg2[%702] : memref<288xf32, #tpu.memory_space<smem>>
    %c4_i32_279 = arith.constant 4 : i32
    %704 = arith.addi %c4_i32_279, %0 : i32
    %c0_i32_280 = arith.constant 0 : i32
    %705 = arith.addi %704, %c0_i32_280 : i32
    %c36_i32_281 = arith.constant 36 : i32
    %706 = arith.muli %705, %c36_i32_281 : i32
    %c21_i32_282 = arith.constant 21 : i32
    %707 = arith.addi %706, %c21_i32_282 : i32
    %708 = arith.index_cast %707 : i32 to index
    %709 = memref.load %arg2[%708] : memref<288xf32, #tpu.memory_space<smem>>
    %710 = vector.broadcast %703 : f32 to vector<16x36xf32>
    %711 = arith.mulf %710, %698 : vector<16x36xf32>
    %712 = arith.addf %677, %711 : vector<16x36xf32>
    %713 = vector.broadcast %709 : f32 to vector<16x36xf32>
    %714 = arith.mulf %713, %698 : vector<16x36xf32>
    %715 = arith.addf %680, %714 : vector<16x36xf32>
    %c1_i32_283 = arith.constant 1 : i32
    %716 = arith.addi %0, %c1_i32_283 : i32
    %c36_i32_284 = arith.constant 36 : i32
    %717 = arith.muli %716, %c36_i32_284 : i32
    %c21_i32_285 = arith.constant 21 : i32
    %718 = arith.addi %717, %c21_i32_285 : i32
    %719 = arith.index_cast %718 : i32 to index
    %720 = memref.load %arg2[%719] : memref<288xf32, #tpu.memory_space<smem>>
    %c4_i32_286 = arith.constant 4 : i32
    %721 = arith.addi %c4_i32_286, %0 : i32
    %c1_i32_287 = arith.constant 1 : i32
    %722 = arith.addi %721, %c1_i32_287 : i32
    %c36_i32_288 = arith.constant 36 : i32
    %723 = arith.muli %722, %c36_i32_288 : i32
    %c21_i32_289 = arith.constant 21 : i32
    %724 = arith.addi %723, %c21_i32_289 : i32
    %725 = arith.index_cast %724 : i32 to index
    %726 = memref.load %arg2[%725] : memref<288xf32, #tpu.memory_space<smem>>
    %727 = vector.broadcast %720 : f32 to vector<16x36xf32>
    %728 = arith.mulf %727, %698 : vector<16x36xf32>
    %729 = arith.addf %694, %728 : vector<16x36xf32>
    %730 = vector.broadcast %726 : f32 to vector<16x36xf32>
    %731 = arith.mulf %730, %698 : vector<16x36xf32>
    %732 = arith.addf %697, %731 : vector<16x36xf32>
    %733 = vector.extract_strided_slice %662 {offsets = [4, 0], sizes = [16, 36], strides = [1, 1]} : vector<20x36xf32> to vector<16x36xf32>
    %c0_i32_290 = arith.constant 0 : i32
    %734 = arith.addi %0, %c0_i32_290 : i32
    %c36_i32_291 = arith.constant 36 : i32
    %735 = arith.muli %734, %c36_i32_291 : i32
    %c24_i32 = arith.constant 24 : i32
    %736 = arith.addi %735, %c24_i32 : i32
    %737 = arith.index_cast %736 : i32 to index
    %738 = memref.load %arg2[%737] : memref<288xf32, #tpu.memory_space<smem>>
    %c4_i32_292 = arith.constant 4 : i32
    %739 = arith.addi %c4_i32_292, %0 : i32
    %c0_i32_293 = arith.constant 0 : i32
    %740 = arith.addi %739, %c0_i32_293 : i32
    %c36_i32_294 = arith.constant 36 : i32
    %741 = arith.muli %740, %c36_i32_294 : i32
    %c24_i32_295 = arith.constant 24 : i32
    %742 = arith.addi %741, %c24_i32_295 : i32
    %743 = arith.index_cast %742 : i32 to index
    %744 = memref.load %arg2[%743] : memref<288xf32, #tpu.memory_space<smem>>
    %745 = vector.broadcast %738 : f32 to vector<16x36xf32>
    %746 = arith.mulf %745, %733 : vector<16x36xf32>
    %747 = arith.addf %712, %746 : vector<16x36xf32>
    %748 = vector.broadcast %744 : f32 to vector<16x36xf32>
    %749 = arith.mulf %748, %733 : vector<16x36xf32>
    %750 = arith.addf %715, %749 : vector<16x36xf32>
    %c1_i32_296 = arith.constant 1 : i32
    %751 = arith.addi %0, %c1_i32_296 : i32
    %c36_i32_297 = arith.constant 36 : i32
    %752 = arith.muli %751, %c36_i32_297 : i32
    %c24_i32_298 = arith.constant 24 : i32
    %753 = arith.addi %752, %c24_i32_298 : i32
    %754 = arith.index_cast %753 : i32 to index
    %755 = memref.load %arg2[%754] : memref<288xf32, #tpu.memory_space<smem>>
    %c4_i32_299 = arith.constant 4 : i32
    %756 = arith.addi %c4_i32_299, %0 : i32
    %c1_i32_300 = arith.constant 1 : i32
    %757 = arith.addi %756, %c1_i32_300 : i32
    %c36_i32_301 = arith.constant 36 : i32
    %758 = arith.muli %757, %c36_i32_301 : i32
    %c24_i32_302 = arith.constant 24 : i32
    %759 = arith.addi %758, %c24_i32_302 : i32
    %760 = arith.index_cast %759 : i32 to index
    %761 = memref.load %arg2[%760] : memref<288xf32, #tpu.memory_space<smem>>
    %762 = vector.broadcast %755 : f32 to vector<16x36xf32>
    %763 = arith.mulf %762, %733 : vector<16x36xf32>
    %764 = arith.addf %729, %763 : vector<16x36xf32>
    %765 = vector.broadcast %761 : f32 to vector<16x36xf32>
    %766 = arith.mulf %765, %733 : vector<16x36xf32>
    %767 = arith.addf %732, %766 : vector<16x36xf32>
    %c0_303 = arith.constant 0 : index
    %c2_304 = arith.constant 2 : index
    %c0_305 = arith.constant 0 : index
    %c2_306 = arith.constant 2 : index
    %768 = vector.load %arg4[%c0_303, %c2_304, %c0_305, %c2_306] : memref<1x4x20x40xf32, #tpu.memory_space<vmem>>, vector<1x1x20x36xf32>
    %769 = vector.shape_cast %768 : vector<1x1x20x36xf32> to vector<20x36xf32>
    %770 = vector.extract_strided_slice %769 {offsets = [0, 0], sizes = [16, 36], strides = [1, 1]} : vector<20x36xf32> to vector<16x36xf32>
    %c0_i32_307 = arith.constant 0 : i32
    %771 = arith.addi %0, %c0_i32_307 : i32
    %c36_i32_308 = arith.constant 36 : i32
    %772 = arith.muli %771, %c36_i32_308 : i32
    %c19_i32 = arith.constant 19 : i32
    %773 = arith.addi %772, %c19_i32 : i32
    %774 = arith.index_cast %773 : i32 to index
    %775 = memref.load %arg2[%774] : memref<288xf32, #tpu.memory_space<smem>>
    %c4_i32_309 = arith.constant 4 : i32
    %776 = arith.addi %c4_i32_309, %0 : i32
    %c0_i32_310 = arith.constant 0 : i32
    %777 = arith.addi %776, %c0_i32_310 : i32
    %c36_i32_311 = arith.constant 36 : i32
    %778 = arith.muli %777, %c36_i32_311 : i32
    %c19_i32_312 = arith.constant 19 : i32
    %779 = arith.addi %778, %c19_i32_312 : i32
    %780 = arith.index_cast %779 : i32 to index
    %781 = memref.load %arg2[%780] : memref<288xf32, #tpu.memory_space<smem>>
    %782 = vector.broadcast %775 : f32 to vector<16x36xf32>
    %783 = arith.mulf %782, %770 : vector<16x36xf32>
    %784 = arith.addf %747, %783 : vector<16x36xf32>
    %785 = vector.broadcast %781 : f32 to vector<16x36xf32>
    %786 = arith.mulf %785, %770 : vector<16x36xf32>
    %787 = arith.addf %750, %786 : vector<16x36xf32>
    %c1_i32_313 = arith.constant 1 : i32
    %788 = arith.addi %0, %c1_i32_313 : i32
    %c36_i32_314 = arith.constant 36 : i32
    %789 = arith.muli %788, %c36_i32_314 : i32
    %c19_i32_315 = arith.constant 19 : i32
    %790 = arith.addi %789, %c19_i32_315 : i32
    %791 = arith.index_cast %790 : i32 to index
    %792 = memref.load %arg2[%791] : memref<288xf32, #tpu.memory_space<smem>>
    %c4_i32_316 = arith.constant 4 : i32
    %793 = arith.addi %c4_i32_316, %0 : i32
    %c1_i32_317 = arith.constant 1 : i32
    %794 = arith.addi %793, %c1_i32_317 : i32
    %c36_i32_318 = arith.constant 36 : i32
    %795 = arith.muli %794, %c36_i32_318 : i32
    %c19_i32_319 = arith.constant 19 : i32
    %796 = arith.addi %795, %c19_i32_319 : i32
    %797 = arith.index_cast %796 : i32 to index
    %798 = memref.load %arg2[%797] : memref<288xf32, #tpu.memory_space<smem>>
    %799 = vector.broadcast %792 : f32 to vector<16x36xf32>
    %800 = arith.mulf %799, %770 : vector<16x36xf32>
    %801 = arith.addf %764, %800 : vector<16x36xf32>
    %802 = vector.broadcast %798 : f32 to vector<16x36xf32>
    %803 = arith.mulf %802, %770 : vector<16x36xf32>
    %804 = arith.addf %767, %803 : vector<16x36xf32>
    %805 = vector.extract_strided_slice %769 {offsets = [2, 0], sizes = [16, 36], strides = [1, 1]} : vector<20x36xf32> to vector<16x36xf32>
    %c0_i32_320 = arith.constant 0 : i32
    %806 = arith.addi %0, %c0_i32_320 : i32
    %c36_i32_321 = arith.constant 36 : i32
    %807 = arith.muli %806, %c36_i32_321 : i32
    %c22_i32 = arith.constant 22 : i32
    %808 = arith.addi %807, %c22_i32 : i32
    %809 = arith.index_cast %808 : i32 to index
    %810 = memref.load %arg2[%809] : memref<288xf32, #tpu.memory_space<smem>>
    %c4_i32_322 = arith.constant 4 : i32
    %811 = arith.addi %c4_i32_322, %0 : i32
    %c0_i32_323 = arith.constant 0 : i32
    %812 = arith.addi %811, %c0_i32_323 : i32
    %c36_i32_324 = arith.constant 36 : i32
    %813 = arith.muli %812, %c36_i32_324 : i32
    %c22_i32_325 = arith.constant 22 : i32
    %814 = arith.addi %813, %c22_i32_325 : i32
    %815 = arith.index_cast %814 : i32 to index
    %816 = memref.load %arg2[%815] : memref<288xf32, #tpu.memory_space<smem>>
    %817 = vector.broadcast %810 : f32 to vector<16x36xf32>
    %818 = arith.mulf %817, %805 : vector<16x36xf32>
    %819 = arith.addf %784, %818 : vector<16x36xf32>
    %820 = vector.broadcast %816 : f32 to vector<16x36xf32>
    %821 = arith.mulf %820, %805 : vector<16x36xf32>
    %822 = arith.addf %787, %821 : vector<16x36xf32>
    %c1_i32_326 = arith.constant 1 : i32
    %823 = arith.addi %0, %c1_i32_326 : i32
    %c36_i32_327 = arith.constant 36 : i32
    %824 = arith.muli %823, %c36_i32_327 : i32
    %c22_i32_328 = arith.constant 22 : i32
    %825 = arith.addi %824, %c22_i32_328 : i32
    %826 = arith.index_cast %825 : i32 to index
    %827 = memref.load %arg2[%826] : memref<288xf32, #tpu.memory_space<smem>>
    %c4_i32_329 = arith.constant 4 : i32
    %828 = arith.addi %c4_i32_329, %0 : i32
    %c1_i32_330 = arith.constant 1 : i32
    %829 = arith.addi %828, %c1_i32_330 : i32
    %c36_i32_331 = arith.constant 36 : i32
    %830 = arith.muli %829, %c36_i32_331 : i32
    %c22_i32_332 = arith.constant 22 : i32
    %831 = arith.addi %830, %c22_i32_332 : i32
    %832 = arith.index_cast %831 : i32 to index
    %833 = memref.load %arg2[%832] : memref<288xf32, #tpu.memory_space<smem>>
    %834 = vector.broadcast %827 : f32 to vector<16x36xf32>
    %835 = arith.mulf %834, %805 : vector<16x36xf32>
    %836 = arith.addf %801, %835 : vector<16x36xf32>
    %837 = vector.broadcast %833 : f32 to vector<16x36xf32>
    %838 = arith.mulf %837, %805 : vector<16x36xf32>
    %839 = arith.addf %804, %838 : vector<16x36xf32>
    %840 = vector.extract_strided_slice %769 {offsets = [4, 0], sizes = [16, 36], strides = [1, 1]} : vector<20x36xf32> to vector<16x36xf32>
    %c0_i32_333 = arith.constant 0 : i32
    %841 = arith.addi %0, %c0_i32_333 : i32
    %c36_i32_334 = arith.constant 36 : i32
    %842 = arith.muli %841, %c36_i32_334 : i32
    %c25_i32 = arith.constant 25 : i32
    %843 = arith.addi %842, %c25_i32 : i32
    %844 = arith.index_cast %843 : i32 to index
    %845 = memref.load %arg2[%844] : memref<288xf32, #tpu.memory_space<smem>>
    %c4_i32_335 = arith.constant 4 : i32
    %846 = arith.addi %c4_i32_335, %0 : i32
    %c0_i32_336 = arith.constant 0 : i32
    %847 = arith.addi %846, %c0_i32_336 : i32
    %c36_i32_337 = arith.constant 36 : i32
    %848 = arith.muli %847, %c36_i32_337 : i32
    %c25_i32_338 = arith.constant 25 : i32
    %849 = arith.addi %848, %c25_i32_338 : i32
    %850 = arith.index_cast %849 : i32 to index
    %851 = memref.load %arg2[%850] : memref<288xf32, #tpu.memory_space<smem>>
    %852 = vector.broadcast %845 : f32 to vector<16x36xf32>
    %853 = arith.mulf %852, %840 : vector<16x36xf32>
    %854 = arith.addf %819, %853 : vector<16x36xf32>
    %855 = vector.broadcast %851 : f32 to vector<16x36xf32>
    %856 = arith.mulf %855, %840 : vector<16x36xf32>
    %857 = arith.addf %822, %856 : vector<16x36xf32>
    %c1_i32_339 = arith.constant 1 : i32
    %858 = arith.addi %0, %c1_i32_339 : i32
    %c36_i32_340 = arith.constant 36 : i32
    %859 = arith.muli %858, %c36_i32_340 : i32
    %c25_i32_341 = arith.constant 25 : i32
    %860 = arith.addi %859, %c25_i32_341 : i32
    %861 = arith.index_cast %860 : i32 to index
    %862 = memref.load %arg2[%861] : memref<288xf32, #tpu.memory_space<smem>>
    %c4_i32_342 = arith.constant 4 : i32
    %863 = arith.addi %c4_i32_342, %0 : i32
    %c1_i32_343 = arith.constant 1 : i32
    %864 = arith.addi %863, %c1_i32_343 : i32
    %c36_i32_344 = arith.constant 36 : i32
    %865 = arith.muli %864, %c36_i32_344 : i32
    %c25_i32_345 = arith.constant 25 : i32
    %866 = arith.addi %865, %c25_i32_345 : i32
    %867 = arith.index_cast %866 : i32 to index
    %868 = memref.load %arg2[%867] : memref<288xf32, #tpu.memory_space<smem>>
    %869 = vector.broadcast %862 : f32 to vector<16x36xf32>
    %870 = arith.mulf %869, %840 : vector<16x36xf32>
    %871 = arith.addf %836, %870 : vector<16x36xf32>
    %872 = vector.broadcast %868 : f32 to vector<16x36xf32>
    %873 = arith.mulf %872, %840 : vector<16x36xf32>
    %874 = arith.addf %839, %873 : vector<16x36xf32>
    %c0_346 = arith.constant 0 : index
    %c2_347 = arith.constant 2 : index
    %c0_348 = arith.constant 0 : index
    %c4_349 = arith.constant 4 : index
    %875 = vector.load %arg4[%c0_346, %c2_347, %c0_348, %c4_349] : memref<1x4x20x40xf32, #tpu.memory_space<vmem>>, vector<1x1x20x36xf32>
    %876 = vector.shape_cast %875 : vector<1x1x20x36xf32> to vector<20x36xf32>
    %877 = vector.extract_strided_slice %876 {offsets = [0, 0], sizes = [16, 36], strides = [1, 1]} : vector<20x36xf32> to vector<16x36xf32>
    %c0_i32_350 = arith.constant 0 : i32
    %878 = arith.addi %0, %c0_i32_350 : i32
    %c36_i32_351 = arith.constant 36 : i32
    %879 = arith.muli %878, %c36_i32_351 : i32
    %c20_i32 = arith.constant 20 : i32
    %880 = arith.addi %879, %c20_i32 : i32
    %881 = arith.index_cast %880 : i32 to index
    %882 = memref.load %arg2[%881] : memref<288xf32, #tpu.memory_space<smem>>
    %c4_i32_352 = arith.constant 4 : i32
    %883 = arith.addi %c4_i32_352, %0 : i32
    %c0_i32_353 = arith.constant 0 : i32
    %884 = arith.addi %883, %c0_i32_353 : i32
    %c36_i32_354 = arith.constant 36 : i32
    %885 = arith.muli %884, %c36_i32_354 : i32
    %c20_i32_355 = arith.constant 20 : i32
    %886 = arith.addi %885, %c20_i32_355 : i32
    %887 = arith.index_cast %886 : i32 to index
    %888 = memref.load %arg2[%887] : memref<288xf32, #tpu.memory_space<smem>>
    %889 = vector.broadcast %882 : f32 to vector<16x36xf32>
    %890 = arith.mulf %889, %877 : vector<16x36xf32>
    %891 = arith.addf %854, %890 : vector<16x36xf32>
    %892 = vector.broadcast %888 : f32 to vector<16x36xf32>
    %893 = arith.mulf %892, %877 : vector<16x36xf32>
    %894 = arith.addf %857, %893 : vector<16x36xf32>
    %c1_i32_356 = arith.constant 1 : i32
    %895 = arith.addi %0, %c1_i32_356 : i32
    %c36_i32_357 = arith.constant 36 : i32
    %896 = arith.muli %895, %c36_i32_357 : i32
    %c20_i32_358 = arith.constant 20 : i32
    %897 = arith.addi %896, %c20_i32_358 : i32
    %898 = arith.index_cast %897 : i32 to index
    %899 = memref.load %arg2[%898] : memref<288xf32, #tpu.memory_space<smem>>
    %c4_i32_359 = arith.constant 4 : i32
    %900 = arith.addi %c4_i32_359, %0 : i32
    %c1_i32_360 = arith.constant 1 : i32
    %901 = arith.addi %900, %c1_i32_360 : i32
    %c36_i32_361 = arith.constant 36 : i32
    %902 = arith.muli %901, %c36_i32_361 : i32
    %c20_i32_362 = arith.constant 20 : i32
    %903 = arith.addi %902, %c20_i32_362 : i32
    %904 = arith.index_cast %903 : i32 to index
    %905 = memref.load %arg2[%904] : memref<288xf32, #tpu.memory_space<smem>>
    %906 = vector.broadcast %899 : f32 to vector<16x36xf32>
    %907 = arith.mulf %906, %877 : vector<16x36xf32>
    %908 = arith.addf %871, %907 : vector<16x36xf32>
    %909 = vector.broadcast %905 : f32 to vector<16x36xf32>
    %910 = arith.mulf %909, %877 : vector<16x36xf32>
    %911 = arith.addf %874, %910 : vector<16x36xf32>
    %912 = vector.extract_strided_slice %876 {offsets = [2, 0], sizes = [16, 36], strides = [1, 1]} : vector<20x36xf32> to vector<16x36xf32>
    %c0_i32_363 = arith.constant 0 : i32
    %913 = arith.addi %0, %c0_i32_363 : i32
    %c36_i32_364 = arith.constant 36 : i32
    %914 = arith.muli %913, %c36_i32_364 : i32
    %c23_i32 = arith.constant 23 : i32
    %915 = arith.addi %914, %c23_i32 : i32
    %916 = arith.index_cast %915 : i32 to index
    %917 = memref.load %arg2[%916] : memref<288xf32, #tpu.memory_space<smem>>
    %c4_i32_365 = arith.constant 4 : i32
    %918 = arith.addi %c4_i32_365, %0 : i32
    %c0_i32_366 = arith.constant 0 : i32
    %919 = arith.addi %918, %c0_i32_366 : i32
    %c36_i32_367 = arith.constant 36 : i32
    %920 = arith.muli %919, %c36_i32_367 : i32
    %c23_i32_368 = arith.constant 23 : i32
    %921 = arith.addi %920, %c23_i32_368 : i32
    %922 = arith.index_cast %921 : i32 to index
    %923 = memref.load %arg2[%922] : memref<288xf32, #tpu.memory_space<smem>>
    %924 = vector.broadcast %917 : f32 to vector<16x36xf32>
    %925 = arith.mulf %924, %912 : vector<16x36xf32>
    %926 = arith.addf %891, %925 : vector<16x36xf32>
    %927 = vector.broadcast %923 : f32 to vector<16x36xf32>
    %928 = arith.mulf %927, %912 : vector<16x36xf32>
    %929 = arith.addf %894, %928 : vector<16x36xf32>
    %c1_i32_369 = arith.constant 1 : i32
    %930 = arith.addi %0, %c1_i32_369 : i32
    %c36_i32_370 = arith.constant 36 : i32
    %931 = arith.muli %930, %c36_i32_370 : i32
    %c23_i32_371 = arith.constant 23 : i32
    %932 = arith.addi %931, %c23_i32_371 : i32
    %933 = arith.index_cast %932 : i32 to index
    %934 = memref.load %arg2[%933] : memref<288xf32, #tpu.memory_space<smem>>
    %c4_i32_372 = arith.constant 4 : i32
    %935 = arith.addi %c4_i32_372, %0 : i32
    %c1_i32_373 = arith.constant 1 : i32
    %936 = arith.addi %935, %c1_i32_373 : i32
    %c36_i32_374 = arith.constant 36 : i32
    %937 = arith.muli %936, %c36_i32_374 : i32
    %c23_i32_375 = arith.constant 23 : i32
    %938 = arith.addi %937, %c23_i32_375 : i32
    %939 = arith.index_cast %938 : i32 to index
    %940 = memref.load %arg2[%939] : memref<288xf32, #tpu.memory_space<smem>>
    %941 = vector.broadcast %934 : f32 to vector<16x36xf32>
    %942 = arith.mulf %941, %912 : vector<16x36xf32>
    %943 = arith.addf %908, %942 : vector<16x36xf32>
    %944 = vector.broadcast %940 : f32 to vector<16x36xf32>
    %945 = arith.mulf %944, %912 : vector<16x36xf32>
    %946 = arith.addf %911, %945 : vector<16x36xf32>
    %947 = vector.extract_strided_slice %876 {offsets = [4, 0], sizes = [16, 36], strides = [1, 1]} : vector<20x36xf32> to vector<16x36xf32>
    %c0_i32_376 = arith.constant 0 : i32
    %948 = arith.addi %0, %c0_i32_376 : i32
    %c36_i32_377 = arith.constant 36 : i32
    %949 = arith.muli %948, %c36_i32_377 : i32
    %c26_i32 = arith.constant 26 : i32
    %950 = arith.addi %949, %c26_i32 : i32
    %951 = arith.index_cast %950 : i32 to index
    %952 = memref.load %arg2[%951] : memref<288xf32, #tpu.memory_space<smem>>
    %c4_i32_378 = arith.constant 4 : i32
    %953 = arith.addi %c4_i32_378, %0 : i32
    %c0_i32_379 = arith.constant 0 : i32
    %954 = arith.addi %953, %c0_i32_379 : i32
    %c36_i32_380 = arith.constant 36 : i32
    %955 = arith.muli %954, %c36_i32_380 : i32
    %c26_i32_381 = arith.constant 26 : i32
    %956 = arith.addi %955, %c26_i32_381 : i32
    %957 = arith.index_cast %956 : i32 to index
    %958 = memref.load %arg2[%957] : memref<288xf32, #tpu.memory_space<smem>>
    %959 = vector.broadcast %952 : f32 to vector<16x36xf32>
    %960 = arith.mulf %959, %947 : vector<16x36xf32>
    %961 = arith.addf %926, %960 : vector<16x36xf32>
    %962 = vector.broadcast %958 : f32 to vector<16x36xf32>
    %963 = arith.mulf %962, %947 : vector<16x36xf32>
    %964 = arith.addf %929, %963 : vector<16x36xf32>
    %c1_i32_382 = arith.constant 1 : i32
    %965 = arith.addi %0, %c1_i32_382 : i32
    %c36_i32_383 = arith.constant 36 : i32
    %966 = arith.muli %965, %c36_i32_383 : i32
    %c26_i32_384 = arith.constant 26 : i32
    %967 = arith.addi %966, %c26_i32_384 : i32
    %968 = arith.index_cast %967 : i32 to index
    %969 = memref.load %arg2[%968] : memref<288xf32, #tpu.memory_space<smem>>
    %c4_i32_385 = arith.constant 4 : i32
    %970 = arith.addi %c4_i32_385, %0 : i32
    %c1_i32_386 = arith.constant 1 : i32
    %971 = arith.addi %970, %c1_i32_386 : i32
    %c36_i32_387 = arith.constant 36 : i32
    %972 = arith.muli %971, %c36_i32_387 : i32
    %c26_i32_388 = arith.constant 26 : i32
    %973 = arith.addi %972, %c26_i32_388 : i32
    %974 = arith.index_cast %973 : i32 to index
    %975 = memref.load %arg2[%974] : memref<288xf32, #tpu.memory_space<smem>>
    %976 = vector.broadcast %969 : f32 to vector<16x36xf32>
    %977 = arith.mulf %976, %947 : vector<16x36xf32>
    %978 = arith.addf %943, %977 : vector<16x36xf32>
    %979 = vector.broadcast %975 : f32 to vector<16x36xf32>
    %980 = arith.mulf %979, %947 : vector<16x36xf32>
    %981 = arith.addf %946, %980 : vector<16x36xf32>
    %c0_389 = arith.constant 0 : index
    %c3 = arith.constant 3 : index
    %c0_390 = arith.constant 0 : index
    %c0_391 = arith.constant 0 : index
    %982 = vector.load %arg4[%c0_389, %c3, %c0_390, %c0_391] : memref<1x4x20x40xf32, #tpu.memory_space<vmem>>, vector<1x1x20x36xf32>
    %983 = vector.shape_cast %982 : vector<1x1x20x36xf32> to vector<20x36xf32>
    %984 = vector.extract_strided_slice %983 {offsets = [0, 0], sizes = [16, 36], strides = [1, 1]} : vector<20x36xf32> to vector<16x36xf32>
    %c0_i32_392 = arith.constant 0 : i32
    %985 = arith.addi %0, %c0_i32_392 : i32
    %c36_i32_393 = arith.constant 36 : i32
    %986 = arith.muli %985, %c36_i32_393 : i32
    %c27_i32 = arith.constant 27 : i32
    %987 = arith.addi %986, %c27_i32 : i32
    %988 = arith.index_cast %987 : i32 to index
    %989 = memref.load %arg2[%988] : memref<288xf32, #tpu.memory_space<smem>>
    %c4_i32_394 = arith.constant 4 : i32
    %990 = arith.addi %c4_i32_394, %0 : i32
    %c0_i32_395 = arith.constant 0 : i32
    %991 = arith.addi %990, %c0_i32_395 : i32
    %c36_i32_396 = arith.constant 36 : i32
    %992 = arith.muli %991, %c36_i32_396 : i32
    %c27_i32_397 = arith.constant 27 : i32
    %993 = arith.addi %992, %c27_i32_397 : i32
    %994 = arith.index_cast %993 : i32 to index
    %995 = memref.load %arg2[%994] : memref<288xf32, #tpu.memory_space<smem>>
    %996 = vector.broadcast %989 : f32 to vector<16x36xf32>
    %997 = arith.mulf %996, %984 : vector<16x36xf32>
    %998 = arith.addf %961, %997 : vector<16x36xf32>
    %999 = vector.broadcast %995 : f32 to vector<16x36xf32>
    %1000 = arith.mulf %999, %984 : vector<16x36xf32>
    %1001 = arith.addf %964, %1000 : vector<16x36xf32>
    %c1_i32_398 = arith.constant 1 : i32
    %1002 = arith.addi %0, %c1_i32_398 : i32
    %c36_i32_399 = arith.constant 36 : i32
    %1003 = arith.muli %1002, %c36_i32_399 : i32
    %c27_i32_400 = arith.constant 27 : i32
    %1004 = arith.addi %1003, %c27_i32_400 : i32
    %1005 = arith.index_cast %1004 : i32 to index
    %1006 = memref.load %arg2[%1005] : memref<288xf32, #tpu.memory_space<smem>>
    %c4_i32_401 = arith.constant 4 : i32
    %1007 = arith.addi %c4_i32_401, %0 : i32
    %c1_i32_402 = arith.constant 1 : i32
    %1008 = arith.addi %1007, %c1_i32_402 : i32
    %c36_i32_403 = arith.constant 36 : i32
    %1009 = arith.muli %1008, %c36_i32_403 : i32
    %c27_i32_404 = arith.constant 27 : i32
    %1010 = arith.addi %1009, %c27_i32_404 : i32
    %1011 = arith.index_cast %1010 : i32 to index
    %1012 = memref.load %arg2[%1011] : memref<288xf32, #tpu.memory_space<smem>>
    %1013 = vector.broadcast %1006 : f32 to vector<16x36xf32>
    %1014 = arith.mulf %1013, %984 : vector<16x36xf32>
    %1015 = arith.addf %978, %1014 : vector<16x36xf32>
    %1016 = vector.broadcast %1012 : f32 to vector<16x36xf32>
    %1017 = arith.mulf %1016, %984 : vector<16x36xf32>
    %1018 = arith.addf %981, %1017 : vector<16x36xf32>
    %1019 = vector.extract_strided_slice %983 {offsets = [2, 0], sizes = [16, 36], strides = [1, 1]} : vector<20x36xf32> to vector<16x36xf32>
    %c0_i32_405 = arith.constant 0 : i32
    %1020 = arith.addi %0, %c0_i32_405 : i32
    %c36_i32_406 = arith.constant 36 : i32
    %1021 = arith.muli %1020, %c36_i32_406 : i32
    %c30_i32 = arith.constant 30 : i32
    %1022 = arith.addi %1021, %c30_i32 : i32
    %1023 = arith.index_cast %1022 : i32 to index
    %1024 = memref.load %arg2[%1023] : memref<288xf32, #tpu.memory_space<smem>>
    %c4_i32_407 = arith.constant 4 : i32
    %1025 = arith.addi %c4_i32_407, %0 : i32
    %c0_i32_408 = arith.constant 0 : i32
    %1026 = arith.addi %1025, %c0_i32_408 : i32
    %c36_i32_409 = arith.constant 36 : i32
    %1027 = arith.muli %1026, %c36_i32_409 : i32
    %c30_i32_410 = arith.constant 30 : i32
    %1028 = arith.addi %1027, %c30_i32_410 : i32
    %1029 = arith.index_cast %1028 : i32 to index
    %1030 = memref.load %arg2[%1029] : memref<288xf32, #tpu.memory_space<smem>>
    %1031 = vector.broadcast %1024 : f32 to vector<16x36xf32>
    %1032 = arith.mulf %1031, %1019 : vector<16x36xf32>
    %1033 = arith.addf %998, %1032 : vector<16x36xf32>
    %1034 = vector.broadcast %1030 : f32 to vector<16x36xf32>
    %1035 = arith.mulf %1034, %1019 : vector<16x36xf32>
    %1036 = arith.addf %1001, %1035 : vector<16x36xf32>
    %c1_i32_411 = arith.constant 1 : i32
    %1037 = arith.addi %0, %c1_i32_411 : i32
    %c36_i32_412 = arith.constant 36 : i32
    %1038 = arith.muli %1037, %c36_i32_412 : i32
    %c30_i32_413 = arith.constant 30 : i32
    %1039 = arith.addi %1038, %c30_i32_413 : i32
    %1040 = arith.index_cast %1039 : i32 to index
    %1041 = memref.load %arg2[%1040] : memref<288xf32, #tpu.memory_space<smem>>
    %c4_i32_414 = arith.constant 4 : i32
    %1042 = arith.addi %c4_i32_414, %0 : i32
    %c1_i32_415 = arith.constant 1 : i32
    %1043 = arith.addi %1042, %c1_i32_415 : i32
    %c36_i32_416 = arith.constant 36 : i32
    %1044 = arith.muli %1043, %c36_i32_416 : i32
    %c30_i32_417 = arith.constant 30 : i32
    %1045 = arith.addi %1044, %c30_i32_417 : i32
    %1046 = arith.index_cast %1045 : i32 to index
    %1047 = memref.load %arg2[%1046] : memref<288xf32, #tpu.memory_space<smem>>
    %1048 = vector.broadcast %1041 : f32 to vector<16x36xf32>
    %1049 = arith.mulf %1048, %1019 : vector<16x36xf32>
    %1050 = arith.addf %1015, %1049 : vector<16x36xf32>
    %1051 = vector.broadcast %1047 : f32 to vector<16x36xf32>
    %1052 = arith.mulf %1051, %1019 : vector<16x36xf32>
    %1053 = arith.addf %1018, %1052 : vector<16x36xf32>
    %1054 = vector.extract_strided_slice %983 {offsets = [4, 0], sizes = [16, 36], strides = [1, 1]} : vector<20x36xf32> to vector<16x36xf32>
    %c0_i32_418 = arith.constant 0 : i32
    %1055 = arith.addi %0, %c0_i32_418 : i32
    %c36_i32_419 = arith.constant 36 : i32
    %1056 = arith.muli %1055, %c36_i32_419 : i32
    %c33_i32 = arith.constant 33 : i32
    %1057 = arith.addi %1056, %c33_i32 : i32
    %1058 = arith.index_cast %1057 : i32 to index
    %1059 = memref.load %arg2[%1058] : memref<288xf32, #tpu.memory_space<smem>>
    %c4_i32_420 = arith.constant 4 : i32
    %1060 = arith.addi %c4_i32_420, %0 : i32
    %c0_i32_421 = arith.constant 0 : i32
    %1061 = arith.addi %1060, %c0_i32_421 : i32
    %c36_i32_422 = arith.constant 36 : i32
    %1062 = arith.muli %1061, %c36_i32_422 : i32
    %c33_i32_423 = arith.constant 33 : i32
    %1063 = arith.addi %1062, %c33_i32_423 : i32
    %1064 = arith.index_cast %1063 : i32 to index
    %1065 = memref.load %arg2[%1064] : memref<288xf32, #tpu.memory_space<smem>>
    %1066 = vector.broadcast %1059 : f32 to vector<16x36xf32>
    %1067 = arith.mulf %1066, %1054 : vector<16x36xf32>
    %1068 = arith.addf %1033, %1067 : vector<16x36xf32>
    %1069 = vector.broadcast %1065 : f32 to vector<16x36xf32>
    %1070 = arith.mulf %1069, %1054 : vector<16x36xf32>
    %1071 = arith.addf %1036, %1070 : vector<16x36xf32>
    %c1_i32_424 = arith.constant 1 : i32
    %1072 = arith.addi %0, %c1_i32_424 : i32
    %c36_i32_425 = arith.constant 36 : i32
    %1073 = arith.muli %1072, %c36_i32_425 : i32
    %c33_i32_426 = arith.constant 33 : i32
    %1074 = arith.addi %1073, %c33_i32_426 : i32
    %1075 = arith.index_cast %1074 : i32 to index
    %1076 = memref.load %arg2[%1075] : memref<288xf32, #tpu.memory_space<smem>>
    %c4_i32_427 = arith.constant 4 : i32
    %1077 = arith.addi %c4_i32_427, %0 : i32
    %c1_i32_428 = arith.constant 1 : i32
    %1078 = arith.addi %1077, %c1_i32_428 : i32
    %c36_i32_429 = arith.constant 36 : i32
    %1079 = arith.muli %1078, %c36_i32_429 : i32
    %c33_i32_430 = arith.constant 33 : i32
    %1080 = arith.addi %1079, %c33_i32_430 : i32
    %1081 = arith.index_cast %1080 : i32 to index
    %1082 = memref.load %arg2[%1081] : memref<288xf32, #tpu.memory_space<smem>>
    %1083 = vector.broadcast %1076 : f32 to vector<16x36xf32>
    %1084 = arith.mulf %1083, %1054 : vector<16x36xf32>
    %1085 = arith.addf %1050, %1084 : vector<16x36xf32>
    %1086 = vector.broadcast %1082 : f32 to vector<16x36xf32>
    %1087 = arith.mulf %1086, %1054 : vector<16x36xf32>
    %1088 = arith.addf %1053, %1087 : vector<16x36xf32>
    %c0_431 = arith.constant 0 : index
    %c3_432 = arith.constant 3 : index
    %c0_433 = arith.constant 0 : index
    %c2_434 = arith.constant 2 : index
    %1089 = vector.load %arg4[%c0_431, %c3_432, %c0_433, %c2_434] : memref<1x4x20x40xf32, #tpu.memory_space<vmem>>, vector<1x1x20x36xf32>
    %1090 = vector.shape_cast %1089 : vector<1x1x20x36xf32> to vector<20x36xf32>
    %1091 = vector.extract_strided_slice %1090 {offsets = [0, 0], sizes = [16, 36], strides = [1, 1]} : vector<20x36xf32> to vector<16x36xf32>
    %c0_i32_435 = arith.constant 0 : i32
    %1092 = arith.addi %0, %c0_i32_435 : i32
    %c36_i32_436 = arith.constant 36 : i32
    %1093 = arith.muli %1092, %c36_i32_436 : i32
    %c28_i32 = arith.constant 28 : i32
    %1094 = arith.addi %1093, %c28_i32 : i32
    %1095 = arith.index_cast %1094 : i32 to index
    %1096 = memref.load %arg2[%1095] : memref<288xf32, #tpu.memory_space<smem>>
    %c4_i32_437 = arith.constant 4 : i32
    %1097 = arith.addi %c4_i32_437, %0 : i32
    %c0_i32_438 = arith.constant 0 : i32
    %1098 = arith.addi %1097, %c0_i32_438 : i32
    %c36_i32_439 = arith.constant 36 : i32
    %1099 = arith.muli %1098, %c36_i32_439 : i32
    %c28_i32_440 = arith.constant 28 : i32
    %1100 = arith.addi %1099, %c28_i32_440 : i32
    %1101 = arith.index_cast %1100 : i32 to index
    %1102 = memref.load %arg2[%1101] : memref<288xf32, #tpu.memory_space<smem>>
    %1103 = vector.broadcast %1096 : f32 to vector<16x36xf32>
    %1104 = arith.mulf %1103, %1091 : vector<16x36xf32>
    %1105 = arith.addf %1068, %1104 : vector<16x36xf32>
    %1106 = vector.broadcast %1102 : f32 to vector<16x36xf32>
    %1107 = arith.mulf %1106, %1091 : vector<16x36xf32>
    %1108 = arith.addf %1071, %1107 : vector<16x36xf32>
    %c1_i32_441 = arith.constant 1 : i32
    %1109 = arith.addi %0, %c1_i32_441 : i32
    %c36_i32_442 = arith.constant 36 : i32
    %1110 = arith.muli %1109, %c36_i32_442 : i32
    %c28_i32_443 = arith.constant 28 : i32
    %1111 = arith.addi %1110, %c28_i32_443 : i32
    %1112 = arith.index_cast %1111 : i32 to index
    %1113 = memref.load %arg2[%1112] : memref<288xf32, #tpu.memory_space<smem>>
    %c4_i32_444 = arith.constant 4 : i32
    %1114 = arith.addi %c4_i32_444, %0 : i32
    %c1_i32_445 = arith.constant 1 : i32
    %1115 = arith.addi %1114, %c1_i32_445 : i32
    %c36_i32_446 = arith.constant 36 : i32
    %1116 = arith.muli %1115, %c36_i32_446 : i32
    %c28_i32_447 = arith.constant 28 : i32
    %1117 = arith.addi %1116, %c28_i32_447 : i32
    %1118 = arith.index_cast %1117 : i32 to index
    %1119 = memref.load %arg2[%1118] : memref<288xf32, #tpu.memory_space<smem>>
    %1120 = vector.broadcast %1113 : f32 to vector<16x36xf32>
    %1121 = arith.mulf %1120, %1091 : vector<16x36xf32>
    %1122 = arith.addf %1085, %1121 : vector<16x36xf32>
    %1123 = vector.broadcast %1119 : f32 to vector<16x36xf32>
    %1124 = arith.mulf %1123, %1091 : vector<16x36xf32>
    %1125 = arith.addf %1088, %1124 : vector<16x36xf32>
    %1126 = vector.extract_strided_slice %1090 {offsets = [2, 0], sizes = [16, 36], strides = [1, 1]} : vector<20x36xf32> to vector<16x36xf32>
    %c0_i32_448 = arith.constant 0 : i32
    %1127 = arith.addi %0, %c0_i32_448 : i32
    %c36_i32_449 = arith.constant 36 : i32
    %1128 = arith.muli %1127, %c36_i32_449 : i32
    %c31_i32 = arith.constant 31 : i32
    %1129 = arith.addi %1128, %c31_i32 : i32
    %1130 = arith.index_cast %1129 : i32 to index
    %1131 = memref.load %arg2[%1130] : memref<288xf32, #tpu.memory_space<smem>>
    %c4_i32_450 = arith.constant 4 : i32
    %1132 = arith.addi %c4_i32_450, %0 : i32
    %c0_i32_451 = arith.constant 0 : i32
    %1133 = arith.addi %1132, %c0_i32_451 : i32
    %c36_i32_452 = arith.constant 36 : i32
    %1134 = arith.muli %1133, %c36_i32_452 : i32
    %c31_i32_453 = arith.constant 31 : i32
    %1135 = arith.addi %1134, %c31_i32_453 : i32
    %1136 = arith.index_cast %1135 : i32 to index
    %1137 = memref.load %arg2[%1136] : memref<288xf32, #tpu.memory_space<smem>>
    %1138 = vector.broadcast %1131 : f32 to vector<16x36xf32>
    %1139 = arith.mulf %1138, %1126 : vector<16x36xf32>
    %1140 = arith.addf %1105, %1139 : vector<16x36xf32>
    %1141 = vector.broadcast %1137 : f32 to vector<16x36xf32>
    %1142 = arith.mulf %1141, %1126 : vector<16x36xf32>
    %1143 = arith.addf %1108, %1142 : vector<16x36xf32>
    %c1_i32_454 = arith.constant 1 : i32
    %1144 = arith.addi %0, %c1_i32_454 : i32
    %c36_i32_455 = arith.constant 36 : i32
    %1145 = arith.muli %1144, %c36_i32_455 : i32
    %c31_i32_456 = arith.constant 31 : i32
    %1146 = arith.addi %1145, %c31_i32_456 : i32
    %1147 = arith.index_cast %1146 : i32 to index
    %1148 = memref.load %arg2[%1147] : memref<288xf32, #tpu.memory_space<smem>>
    %c4_i32_457 = arith.constant 4 : i32
    %1149 = arith.addi %c4_i32_457, %0 : i32
    %c1_i32_458 = arith.constant 1 : i32
    %1150 = arith.addi %1149, %c1_i32_458 : i32
    %c36_i32_459 = arith.constant 36 : i32
    %1151 = arith.muli %1150, %c36_i32_459 : i32
    %c31_i32_460 = arith.constant 31 : i32
    %1152 = arith.addi %1151, %c31_i32_460 : i32
    %1153 = arith.index_cast %1152 : i32 to index
    %1154 = memref.load %arg2[%1153] : memref<288xf32, #tpu.memory_space<smem>>
    %1155 = vector.broadcast %1148 : f32 to vector<16x36xf32>
    %1156 = arith.mulf %1155, %1126 : vector<16x36xf32>
    %1157 = arith.addf %1122, %1156 : vector<16x36xf32>
    %1158 = vector.broadcast %1154 : f32 to vector<16x36xf32>
    %1159 = arith.mulf %1158, %1126 : vector<16x36xf32>
    %1160 = arith.addf %1125, %1159 : vector<16x36xf32>
    %1161 = vector.extract_strided_slice %1090 {offsets = [4, 0], sizes = [16, 36], strides = [1, 1]} : vector<20x36xf32> to vector<16x36xf32>
    %c0_i32_461 = arith.constant 0 : i32
    %1162 = arith.addi %0, %c0_i32_461 : i32
    %c36_i32_462 = arith.constant 36 : i32
    %1163 = arith.muli %1162, %c36_i32_462 : i32
    %c34_i32 = arith.constant 34 : i32
    %1164 = arith.addi %1163, %c34_i32 : i32
    %1165 = arith.index_cast %1164 : i32 to index
    %1166 = memref.load %arg2[%1165] : memref<288xf32, #tpu.memory_space<smem>>
    %c4_i32_463 = arith.constant 4 : i32
    %1167 = arith.addi %c4_i32_463, %0 : i32
    %c0_i32_464 = arith.constant 0 : i32
    %1168 = arith.addi %1167, %c0_i32_464 : i32
    %c36_i32_465 = arith.constant 36 : i32
    %1169 = arith.muli %1168, %c36_i32_465 : i32
    %c34_i32_466 = arith.constant 34 : i32
    %1170 = arith.addi %1169, %c34_i32_466 : i32
    %1171 = arith.index_cast %1170 : i32 to index
    %1172 = memref.load %arg2[%1171] : memref<288xf32, #tpu.memory_space<smem>>
    %1173 = vector.broadcast %1166 : f32 to vector<16x36xf32>
    %1174 = arith.mulf %1173, %1161 : vector<16x36xf32>
    %1175 = arith.addf %1140, %1174 : vector<16x36xf32>
    %1176 = vector.broadcast %1172 : f32 to vector<16x36xf32>
    %1177 = arith.mulf %1176, %1161 : vector<16x36xf32>
    %1178 = arith.addf %1143, %1177 : vector<16x36xf32>
    %c1_i32_467 = arith.constant 1 : i32
    %1179 = arith.addi %0, %c1_i32_467 : i32
    %c36_i32_468 = arith.constant 36 : i32
    %1180 = arith.muli %1179, %c36_i32_468 : i32
    %c34_i32_469 = arith.constant 34 : i32
    %1181 = arith.addi %1180, %c34_i32_469 : i32
    %1182 = arith.index_cast %1181 : i32 to index
    %1183 = memref.load %arg2[%1182] : memref<288xf32, #tpu.memory_space<smem>>
    %c4_i32_470 = arith.constant 4 : i32
    %1184 = arith.addi %c4_i32_470, %0 : i32
    %c1_i32_471 = arith.constant 1 : i32
    %1185 = arith.addi %1184, %c1_i32_471 : i32
    %c36_i32_472 = arith.constant 36 : i32
    %1186 = arith.muli %1185, %c36_i32_472 : i32
    %c34_i32_473 = arith.constant 34 : i32
    %1187 = arith.addi %1186, %c34_i32_473 : i32
    %1188 = arith.index_cast %1187 : i32 to index
    %1189 = memref.load %arg2[%1188] : memref<288xf32, #tpu.memory_space<smem>>
    %1190 = vector.broadcast %1183 : f32 to vector<16x36xf32>
    %1191 = arith.mulf %1190, %1161 : vector<16x36xf32>
    %1192 = arith.addf %1157, %1191 : vector<16x36xf32>
    %1193 = vector.broadcast %1189 : f32 to vector<16x36xf32>
    %1194 = arith.mulf %1193, %1161 : vector<16x36xf32>
    %1195 = arith.addf %1160, %1194 : vector<16x36xf32>
    %c0_474 = arith.constant 0 : index
    %c3_475 = arith.constant 3 : index
    %c0_476 = arith.constant 0 : index
    %c4_477 = arith.constant 4 : index
    %1196 = vector.load %arg4[%c0_474, %c3_475, %c0_476, %c4_477] : memref<1x4x20x40xf32, #tpu.memory_space<vmem>>, vector<1x1x20x36xf32>
    %1197 = vector.shape_cast %1196 : vector<1x1x20x36xf32> to vector<20x36xf32>
    %1198 = vector.extract_strided_slice %1197 {offsets = [0, 0], sizes = [16, 36], strides = [1, 1]} : vector<20x36xf32> to vector<16x36xf32>
    %c0_i32_478 = arith.constant 0 : i32
    %1199 = arith.addi %0, %c0_i32_478 : i32
    %c36_i32_479 = arith.constant 36 : i32
    %1200 = arith.muli %1199, %c36_i32_479 : i32
    %c29_i32 = arith.constant 29 : i32
    %1201 = arith.addi %1200, %c29_i32 : i32
    %1202 = arith.index_cast %1201 : i32 to index
    %1203 = memref.load %arg2[%1202] : memref<288xf32, #tpu.memory_space<smem>>
    %c4_i32_480 = arith.constant 4 : i32
    %1204 = arith.addi %c4_i32_480, %0 : i32
    %c0_i32_481 = arith.constant 0 : i32
    %1205 = arith.addi %1204, %c0_i32_481 : i32
    %c36_i32_482 = arith.constant 36 : i32
    %1206 = arith.muli %1205, %c36_i32_482 : i32
    %c29_i32_483 = arith.constant 29 : i32
    %1207 = arith.addi %1206, %c29_i32_483 : i32
    %1208 = arith.index_cast %1207 : i32 to index
    %1209 = memref.load %arg2[%1208] : memref<288xf32, #tpu.memory_space<smem>>
    %1210 = vector.broadcast %1203 : f32 to vector<16x36xf32>
    %1211 = arith.mulf %1210, %1198 : vector<16x36xf32>
    %1212 = arith.addf %1175, %1211 : vector<16x36xf32>
    %1213 = vector.broadcast %1209 : f32 to vector<16x36xf32>
    %1214 = arith.mulf %1213, %1198 : vector<16x36xf32>
    %1215 = arith.addf %1178, %1214 : vector<16x36xf32>
    %c1_i32_484 = arith.constant 1 : i32
    %1216 = arith.addi %0, %c1_i32_484 : i32
    %c36_i32_485 = arith.constant 36 : i32
    %1217 = arith.muli %1216, %c36_i32_485 : i32
    %c29_i32_486 = arith.constant 29 : i32
    %1218 = arith.addi %1217, %c29_i32_486 : i32
    %1219 = arith.index_cast %1218 : i32 to index
    %1220 = memref.load %arg2[%1219] : memref<288xf32, #tpu.memory_space<smem>>
    %c4_i32_487 = arith.constant 4 : i32
    %1221 = arith.addi %c4_i32_487, %0 : i32
    %c1_i32_488 = arith.constant 1 : i32
    %1222 = arith.addi %1221, %c1_i32_488 : i32
    %c36_i32_489 = arith.constant 36 : i32
    %1223 = arith.muli %1222, %c36_i32_489 : i32
    %c29_i32_490 = arith.constant 29 : i32
    %1224 = arith.addi %1223, %c29_i32_490 : i32
    %1225 = arith.index_cast %1224 : i32 to index
    %1226 = memref.load %arg2[%1225] : memref<288xf32, #tpu.memory_space<smem>>
    %1227 = vector.broadcast %1220 : f32 to vector<16x36xf32>
    %1228 = arith.mulf %1227, %1198 : vector<16x36xf32>
    %1229 = arith.addf %1192, %1228 : vector<16x36xf32>
    %1230 = vector.broadcast %1226 : f32 to vector<16x36xf32>
    %1231 = arith.mulf %1230, %1198 : vector<16x36xf32>
    %1232 = arith.addf %1195, %1231 : vector<16x36xf32>
    %1233 = vector.extract_strided_slice %1197 {offsets = [2, 0], sizes = [16, 36], strides = [1, 1]} : vector<20x36xf32> to vector<16x36xf32>
    %c0_i32_491 = arith.constant 0 : i32
    %1234 = arith.addi %0, %c0_i32_491 : i32
    %c36_i32_492 = arith.constant 36 : i32
    %1235 = arith.muli %1234, %c36_i32_492 : i32
    %c32_i32 = arith.constant 32 : i32
    %1236 = arith.addi %1235, %c32_i32 : i32
    %1237 = arith.index_cast %1236 : i32 to index
    %1238 = memref.load %arg2[%1237] : memref<288xf32, #tpu.memory_space<smem>>
    %c4_i32_493 = arith.constant 4 : i32
    %1239 = arith.addi %c4_i32_493, %0 : i32
    %c0_i32_494 = arith.constant 0 : i32
    %1240 = arith.addi %1239, %c0_i32_494 : i32
    %c36_i32_495 = arith.constant 36 : i32
    %1241 = arith.muli %1240, %c36_i32_495 : i32
    %c32_i32_496 = arith.constant 32 : i32
    %1242 = arith.addi %1241, %c32_i32_496 : i32
    %1243 = arith.index_cast %1242 : i32 to index
    %1244 = memref.load %arg2[%1243] : memref<288xf32, #tpu.memory_space<smem>>
    %1245 = vector.broadcast %1238 : f32 to vector<16x36xf32>
    %1246 = arith.mulf %1245, %1233 : vector<16x36xf32>
    %1247 = arith.addf %1212, %1246 : vector<16x36xf32>
    %1248 = vector.broadcast %1244 : f32 to vector<16x36xf32>
    %1249 = arith.mulf %1248, %1233 : vector<16x36xf32>
    %1250 = arith.addf %1215, %1249 : vector<16x36xf32>
    %c1_i32_497 = arith.constant 1 : i32
    %1251 = arith.addi %0, %c1_i32_497 : i32
    %c36_i32_498 = arith.constant 36 : i32
    %1252 = arith.muli %1251, %c36_i32_498 : i32
    %c32_i32_499 = arith.constant 32 : i32
    %1253 = arith.addi %1252, %c32_i32_499 : i32
    %1254 = arith.index_cast %1253 : i32 to index
    %1255 = memref.load %arg2[%1254] : memref<288xf32, #tpu.memory_space<smem>>
    %c4_i32_500 = arith.constant 4 : i32
    %1256 = arith.addi %c4_i32_500, %0 : i32
    %c1_i32_501 = arith.constant 1 : i32
    %1257 = arith.addi %1256, %c1_i32_501 : i32
    %c36_i32_502 = arith.constant 36 : i32
    %1258 = arith.muli %1257, %c36_i32_502 : i32
    %c32_i32_503 = arith.constant 32 : i32
    %1259 = arith.addi %1258, %c32_i32_503 : i32
    %1260 = arith.index_cast %1259 : i32 to index
    %1261 = memref.load %arg2[%1260] : memref<288xf32, #tpu.memory_space<smem>>
    %1262 = vector.broadcast %1255 : f32 to vector<16x36xf32>
    %1263 = arith.mulf %1262, %1233 : vector<16x36xf32>
    %1264 = arith.addf %1229, %1263 : vector<16x36xf32>
    %1265 = vector.broadcast %1261 : f32 to vector<16x36xf32>
    %1266 = arith.mulf %1265, %1233 : vector<16x36xf32>
    %1267 = arith.addf %1232, %1266 : vector<16x36xf32>
    %1268 = vector.extract_strided_slice %1197 {offsets = [4, 0], sizes = [16, 36], strides = [1, 1]} : vector<20x36xf32> to vector<16x36xf32>
    %c0_i32_504 = arith.constant 0 : i32
    %1269 = arith.addi %0, %c0_i32_504 : i32
    %c36_i32_505 = arith.constant 36 : i32
    %1270 = arith.muli %1269, %c36_i32_505 : i32
    %c35_i32 = arith.constant 35 : i32
    %1271 = arith.addi %1270, %c35_i32 : i32
    %1272 = arith.index_cast %1271 : i32 to index
    %1273 = memref.load %arg2[%1272] : memref<288xf32, #tpu.memory_space<smem>>
    %c4_i32_506 = arith.constant 4 : i32
    %1274 = arith.addi %c4_i32_506, %0 : i32
    %c0_i32_507 = arith.constant 0 : i32
    %1275 = arith.addi %1274, %c0_i32_507 : i32
    %c36_i32_508 = arith.constant 36 : i32
    %1276 = arith.muli %1275, %c36_i32_508 : i32
    %c35_i32_509 = arith.constant 35 : i32
    %1277 = arith.addi %1276, %c35_i32_509 : i32
    %1278 = arith.index_cast %1277 : i32 to index
    %1279 = memref.load %arg2[%1278] : memref<288xf32, #tpu.memory_space<smem>>
    %1280 = vector.broadcast %1273 : f32 to vector<16x36xf32>
    %1281 = arith.mulf %1280, %1268 : vector<16x36xf32>
    %1282 = arith.addf %1247, %1281 : vector<16x36xf32>
    %1283 = vector.broadcast %1279 : f32 to vector<16x36xf32>
    %1284 = arith.mulf %1283, %1268 : vector<16x36xf32>
    %1285 = arith.addf %1250, %1284 : vector<16x36xf32>
    %c1_i32_510 = arith.constant 1 : i32
    %1286 = arith.addi %0, %c1_i32_510 : i32
    %c36_i32_511 = arith.constant 36 : i32
    %1287 = arith.muli %1286, %c36_i32_511 : i32
    %c35_i32_512 = arith.constant 35 : i32
    %1288 = arith.addi %1287, %c35_i32_512 : i32
    %1289 = arith.index_cast %1288 : i32 to index
    %1290 = memref.load %arg2[%1289] : memref<288xf32, #tpu.memory_space<smem>>
    %c4_i32_513 = arith.constant 4 : i32
    %1291 = arith.addi %c4_i32_513, %0 : i32
    %c1_i32_514 = arith.constant 1 : i32
    %1292 = arith.addi %1291, %c1_i32_514 : i32
    %c36_i32_515 = arith.constant 36 : i32
    %1293 = arith.muli %1292, %c36_i32_515 : i32
    %c35_i32_516 = arith.constant 35 : i32
    %1294 = arith.addi %1293, %c35_i32_516 : i32
    %1295 = arith.index_cast %1294 : i32 to index
    %1296 = memref.load %arg2[%1295] : memref<288xf32, #tpu.memory_space<smem>>
    %1297 = vector.broadcast %1290 : f32 to vector<16x36xf32>
    %1298 = arith.mulf %1297, %1268 : vector<16x36xf32>
    %1299 = arith.addf %1264, %1298 : vector<16x36xf32>
    %1300 = vector.broadcast %1296 : f32 to vector<16x36xf32>
    %1301 = arith.mulf %1300, %1268 : vector<16x36xf32>
    %1302 = arith.addf %1267, %1301 : vector<16x36xf32>
    %cst = arith.constant 2.000000e-01 : f32
    %1303 = vector.broadcast %cst : f32 to vector<16x36xf32>
    %1304 = arith.mulf %1303, %1282 : vector<16x36xf32>
    %1305 = arith.maximumf %1282, %1304 : vector<16x36xf32>
    %cst_517 = arith.constant 0.000000e+00 : f32
    %1306 = vector.broadcast %cst_517 : f32 to vector<16x36xf32>
    %1307 = arith.subf %1306, %1285 : vector<16x36xf32>
    %1308 = math.exp %1307 : vector<16x36xf32>
    %cst_518 = arith.constant 1.000000e+00 : f32
    %1309 = vector.broadcast %cst_518 : f32 to vector<16x36xf32>
    %1310 = arith.addf %1309, %1308 : vector<16x36xf32>
    %1311 = tpu.reciprocal %1310 {approx = true} : vector<16x36xf32> -> vector<16x36xf32>
    %1312 = arith.mulf %1310, %1311 : vector<16x36xf32>
    %cst_519 = arith.constant 2.000000e+00 : f32
    %1313 = vector.broadcast %cst_519 : f32 to vector<16x36xf32>
    %1314 = arith.subf %1313, %1312 : vector<16x36xf32>
    %1315 = arith.mulf %1311, %1314 : vector<16x36xf32>
    %1316 = arith.mulf %1305, %1315 : vector<16x36xf32>
    %1317 = vector.extract_strided_slice %1316 {offsets = [0, 0], sizes = [16, 16], strides = [1, 1]} : vector<16x36xf32> to vector<16x16xf32>
    %c0_520 = arith.constant 0 : index
    %c0_521 = arith.constant 0 : index
    %c0_522 = arith.constant 0 : index
    %c0_523 = arith.constant 0 : index
    %1318 = vector.load %arg5[%c0_520, %c0_521, %c0_522, %c0_523] : memref<2x2x16x16xf32, #tpu.memory_space<vmem>>, vector<1x1x16x16xf32>
    %1319 = vector.shape_cast %1318 : vector<1x1x16x16xf32> to vector<16x16xf32>
    %1320 = vector.shape_cast %1317 : vector<16x16xf32> to vector<1x1x16x16xf32>
    tpu.vector_store %arg5[%c0_520, %c0_521, %c0_522, %c0_523], %1320 {strides = array<i32>} : memref<2x2x16x16xf32, #tpu.memory_space<vmem>>, vector<1x1x16x16xf32>,
    %1321 = vector.extract_strided_slice %1316 {offsets = [0, 20], sizes = [16, 16], strides = [1, 1]} : vector<16x36xf32> to vector<16x16xf32>
    %c1_524 = arith.constant 1 : index
    %c0_525 = arith.constant 0 : index
    %c0_526 = arith.constant 0 : index
    %c0_527 = arith.constant 0 : index
    %1322 = vector.load %arg5[%c1_524, %c0_525, %c0_526, %c0_527] : memref<2x2x16x16xf32, #tpu.memory_space<vmem>>, vector<1x1x16x16xf32>
    %1323 = vector.shape_cast %1322 : vector<1x1x16x16xf32> to vector<16x16xf32>
    %1324 = vector.shape_cast %1321 : vector<16x16xf32> to vector<1x1x16x16xf32>
    tpu.vector_store %arg5[%c1_524, %c0_525, %c0_526, %c0_527], %1324 {strides = array<i32>} : memref<2x2x16x16xf32, #tpu.memory_space<vmem>>, vector<1x1x16x16xf32>,
    %cst_528 = arith.constant 2.000000e-01 : f32
    %1325 = vector.broadcast %cst_528 : f32 to vector<16x36xf32>
    %1326 = arith.mulf %1325, %1299 : vector<16x36xf32>
    %1327 = arith.maximumf %1299, %1326 : vector<16x36xf32>
    %cst_529 = arith.constant 0.000000e+00 : f32
    %1328 = vector.broadcast %cst_529 : f32 to vector<16x36xf32>
    %1329 = arith.subf %1328, %1302 : vector<16x36xf32>
    %1330 = math.exp %1329 : vector<16x36xf32>
    %cst_530 = arith.constant 1.000000e+00 : f32
    %1331 = vector.broadcast %cst_530 : f32 to vector<16x36xf32>
    %1332 = arith.addf %1331, %1330 : vector<16x36xf32>
    %1333 = tpu.reciprocal %1332 {approx = true} : vector<16x36xf32> -> vector<16x36xf32>
    %1334 = arith.mulf %1332, %1333 : vector<16x36xf32>
    %cst_531 = arith.constant 2.000000e+00 : f32
    %1335 = vector.broadcast %cst_531 : f32 to vector<16x36xf32>
    %1336 = arith.subf %1335, %1334 : vector<16x36xf32>
    %1337 = arith.mulf %1333, %1336 : vector<16x36xf32>
    %1338 = arith.mulf %1327, %1337 : vector<16x36xf32>
    %1339 = vector.extract_strided_slice %1338 {offsets = [0, 0], sizes = [16, 16], strides = [1, 1]} : vector<16x36xf32> to vector<16x16xf32>
    %c0_532 = arith.constant 0 : index
    %c1_533 = arith.constant 1 : index
    %c0_534 = arith.constant 0 : index
    %c0_535 = arith.constant 0 : index
    %1340 = vector.load %arg5[%c0_532, %c1_533, %c0_534, %c0_535] : memref<2x2x16x16xf32, #tpu.memory_space<vmem>>, vector<1x1x16x16xf32>
    %1341 = vector.shape_cast %1340 : vector<1x1x16x16xf32> to vector<16x16xf32>
    %1342 = vector.shape_cast %1339 : vector<16x16xf32> to vector<1x1x16x16xf32>
    tpu.vector_store %arg5[%c0_532, %c1_533, %c0_534, %c0_535], %1342 {strides = array<i32>} : memref<2x2x16x16xf32, #tpu.memory_space<vmem>>, vector<1x1x16x16xf32>,
    %1343 = vector.extract_strided_slice %1338 {offsets = [0, 20], sizes = [16, 16], strides = [1, 1]} : vector<16x36xf32> to vector<16x16xf32>
    %c1_536 = arith.constant 1 : index
    %c1_537 = arith.constant 1 : index
    %c0_538 = arith.constant 0 : index
    %c0_539 = arith.constant 0 : index
    %1344 = vector.load %arg5[%c1_536, %c1_537, %c0_538, %c0_539] : memref<2x2x16x16xf32, #tpu.memory_space<vmem>>, vector<1x1x16x16xf32>
    %1345 = vector.shape_cast %1344 : vector<1x1x16x16xf32> to vector<16x16xf32>
    %1346 = vector.shape_cast %1343 : vector<16x16xf32> to vector<1x1x16x16xf32>
    tpu.vector_store %arg5[%c1_536, %c1_537, %c0_538, %c0_539], %1346 {strides = array<i32>} : memref<2x2x16x16xf32, #tpu.memory_space<vmem>>, vector<1x1x16x16xf32>,
    return
  }
  func.func @transform_0(%arg0: i32, %arg1: i32) -> i32 {
    %c0_i32 = arith.constant 0 : i32
    %c0_i32_0 = arith.constant 0 : i32
    return %c0_i32 : i32
  }
  func.func @transform_1(%arg0: i32, %arg1: i32) -> i32 {
    %c0_i32 = arith.constant 0 : i32
    %c0_i32_0 = arith.constant 0 : i32
    return %c0_i32 : i32
  }
  func.func @transform_2(%arg0: i32, %arg1: i32) -> (i32, i32, i32, i32) {
    %c0_i32 = arith.constant 0 : i32
    %c0_i32_0 = arith.constant 0 : i32
    %c0_i32_1 = arith.constant 0 : i32
    %c0_i32_2 = arith.constant 0 : i32
    return %arg0, %c0_i32, %c0_i32_0, %c0_i32_1 : i32, i32, i32, i32
  }
  func.func @transform_3(%arg0: i32, %arg1: i32) -> (i32, i32, i32, i32) {
    %c0_i32 = arith.constant 0 : i32
    %c0_i32_0 = arith.constant 0 : i32
    %c0_i32_1 = arith.constant 0 : i32
    return %arg0, %arg1, %c0_i32, %c0_i32_0 : i32, i32, i32, i32
  }
}

</mosaic_0001>

<llo_original>
// kernel: tpu_custom_call.1
$region0: #{tpu_custom_call.1}
  #allocation0 [shape = 'u32[]', space=smem, size = 0x4, offset = 0x4, fixed_abs, tag = 'smem constant byte address 0x4 - core index']
  #allocation1 [shape = 'u32[144,128]{1,0:T(1,128)}', space=vmem, size = 0x12000, scoped, tag = 'internal scratch']
  #allocation8 [shape = 's32[]', space=sflag, size = 0x4, offset = 0, fixed_abs, tag = 'sflag constant byte address 0x0 - dummy sync flag']
  %s0 = inlined_call_operand.vmem [shape: f32[288], index: 0, kind: input, shape index: {}]
  %s1 = inlined_call_operand.vmem [shape: f32[8], index: 1, kind: input, shape index: {}]
  %s2 = inlined_call_operand.vmem [shape: f32[1,4,20,40], index: 2, kind: input, shape index: {}]
  %s3 = inlined_call_operand.hbm [shape: f32[2,4,16,16], index: 3, kind: output, shape index: {}]
  %s4 = sld [smem:[#allocation0]]
  $region53: #{tpu_custom_call.1} parent=0
    _
  %s6 = ssub.s32 1, %s4
  %s7 = scalar_select 0, %s6, %s4
  $region1: #{tpu_custom_call.1} parent=0
    #allocation2 [shape = 'u8[1536]{0}', space=smem, size = 0x600, scoped, tag = 'input window, operand 0, single buffered']
    #allocation3 [shape = 's32[2]{0}', space=sflag, size = 0x8, scoped, tag = 'scoped memory for tpu_custom_call.1']
    #allocation4 [shape = 's32[2]{0}', space=sflag, size = 0x8, scoped, tag = 'scoped memory for tpu_custom_call.1']
    #allocation5 [shape = 'u8[512]{0}', space=smem, size = 0x200, scoped, tag = 'input window, operand 1, single buffered']
    #allocation6 [shape = 's32[1]{0}', space=sflag, size = 0x4, scoped, tag = 'scoped memory for tpu_custom_call.1']
    #allocation7 [shape = 'u8[65536]{0}', space=vmem, size = 0x10000, scoped, tag = 'output window, operand 0']
    %8 = vsyncpa [#allocation4], 0
    %9 = vsyncpa [#allocation6], 0
    %10 = vsyncpa [#allocation3], 0
    %s11 = scalar_lea.sflag [#allocation3], 1
    %12 = vsyncpa %s11, 0
    loop: start=0, step=1, limit=4
    $region2: #{tpu_custom_call.1} parent=1 // loop_pre_header
      _
    $region3: #{tpu_custom_call.1} parent=1 // loop_header
      %s14 = sphi 0, %s18
      %p15 = scmp.ge.s32.totalorder %s14, 4
      %s21 = sphi 0, %s33
      %s22 = sphi 0, %s29
      %s23 = sphi 0, %s21
      %s24 = sphi 0, %s22
      %s25 = sphi 0, %s23
      %s26 = sphi 0, %s24
      %s34 = sphi 0, %s34
      %s36 = sphi 0, %s34
      %s37 = sphi 0, %s36
      %s51 = sphi 0, %s37
      %s55 = sphi 0, %s55
      %s57 = sphi 0, %s55
      %s58 = sphi 0, %s57
      %s72 = sphi 0, %s58
      %s78 = sphi 0, %s80
      %s81 = sphi 0, %s78
      %s82 = sphi 0, %s81
      %s98 = sphi 0, %s82
      %s106 = sphi 0, %s108
      %s109 = sphi 0, %s106
      %s110 = sphi 0, %s109
      %s126 = sphi 0, %s110
    $region4: #{tpu_custom_call.1} parent=1 // loop_header_branch
      %17 = sbr.rel (%p15) target = $region8
    $region5: #{tpu_custom_call.1} parent=1 // loop_body
      %s19 = ssub.s32 %s14, 1
      %s20 = ssub.s32 %s14, 2
      %s27 = sadd.s32 1, %s22
      %p28 = scmp.ge.s32.totalorder %s27, 2
      %s29 = scalar_select %p28, 0, %s27
      %s30 = sadd.s32 1, %s21
      %s31 = scalar_select %p28, %s30, %s21
      %p32 = scmp.ge.s32.totalorder %s31, 1
      %s33 = scalar_select %p32, 0, %s31
      %s35 = sadd.s32 %s34, 1
      %p38 = scmp.eq.s32.totalorder %s14, 1
      %p39 = scmp.ne.s32.totalorder %s34, %s36
      %p40 = scmp.eq.s32.totalorder %s14, 0
      %p41 = por %p39, %p40
      %p42 = scmp.ne.s32.totalorder %s34, %s36
      %p43 = scmp.eq.s32.totalorder %s19, 1
      %p44 = por %p42, %p43
      %p45 = scmp.ne.s32.totalorder %s36, %s37
      %p46 = scmp.eq.s32.totalorder %s19, 0
      %p47 = por %p45, %p46
      %p48 = scmp.ne.s32.totalorder %s36, %s37
      %p49 = scmp.eq.s32.totalorder %s20, 1
      %p50 = por %p48, %p49
      %p52 = scmp.ne.s32.totalorder %s37, %s51
      %p53 = scmp.eq.s32.totalorder %s20, 0
      %p54 = por %p52, %p53
      %s56 = sadd.s32 %s55, 1
      %p59 = scmp.eq.s32.totalorder %s14, 1
      %p60 = scmp.ne.s32.totalorder %s55, %s57
      %p61 = scmp.eq.s32.totalorder %s14, 0
      %p62 = por %p60, %p61
      %p63 = scmp.ne.s32.totalorder %s55, %s57
      %p64 = scmp.eq.s32.totalorder %s19, 1
      %p65 = por %p63, %p64
      %p66 = scmp.ne.s32.totalorder %s57, %s58
      %p67 = scmp.eq.s32.totalorder %s19, 0
      %p68 = por %p66, %p67
      %p69 = scmp.ne.s32.totalorder %s57, %s58
      %p70 = scmp.eq.s32.totalorder %s20, 1
      %p71 = por %p69, %p70
      %p73 = scmp.ne.s32.totalorder %s58, %s72
      %p74 = scmp.eq.s32.totalorder %s20, 0
      %p75 = por %p73, %p74
      %s76 = ssub.s32 %s21, %s33
      %p77 = scmp.eq.s32.totalorder %s76, 0
      %s79 = sadd.s32 %s78, 1
      %s80 = scalar_select %p77, %s78, %s79
      %p83 = pneg %p77
      %p84 = scmp.eq.s32.totalorder %s14, 1
      %p85 = por %p83, %p84
      %p86 = scmp.ne.s32.totalorder %s78, %s81
      %p87 = scmp.eq.s32.totalorder %s14, 0
      %p88 = por %p86, %p87
      %p89 = scmp.ne.s32.totalorder %s78, %s81
      %p90 = scmp.eq.s32.totalorder %s19, 1
      %p91 = por %p89, %p90
      %p92 = scmp.ne.s32.totalorder %s81, %s82
      %p93 = scmp.eq.s32.totalorder %s19, 0
      %p94 = por %p92, %p93
      %p95 = scmp.ne.s32.totalorder %s81, %s82
      %p96 = scmp.eq.s32.totalorder %s20, 1
      %p97 = por %p95, %p96
      %p99 = scmp.ne.s32.totalorder %s82, %s98
      %p100 = scmp.eq.s32.totalorder %s20, 0
      %p101 = por %p99, %p100
      %s102 = ssub.s32 %s21, %s33
      %s103 = ssub.s32 %s22, %s29
      %s104 = sor.u32 %s102, %s103
      %p105 = scmp.eq.s32.totalorder %s104, 0
      %s107 = sadd.s32 %s106, 1
      %s108 = scalar_select %p105, %s106, %s107
      %p111 = pneg %p105
      %p112 = scmp.eq.s32.totalorder %s14, 1
      %p113 = por %p111, %p112
      %p114 = scmp.ne.s32.totalorder %s106, %s109
      %p115 = scmp.eq.s32.totalorder %s14, 0
      %p116 = por %p114, %p115
      %p117 = scmp.ne.s32.totalorder %s106, %s109
      %p118 = scmp.eq.s32.totalorder %s19, 1
      %p119 = por %p117, %p118
      %p120 = scmp.ne.s32.totalorder %s109, %s110
      %p121 = scmp.eq.s32.totalorder %s19, 0
      %p122 = por %p120, %p121
      %p123 = scmp.ne.s32.totalorder %s109, %s110
      %p124 = scmp.eq.s32.totalorder %s20, 1
      %p125 = por %p123, %p124
      %p127 = scmp.ne.s32.totalorder %s110, %s126
      %p128 = scmp.eq.s32.totalorder %s20, 0
      %p129 = por %p127, %p128
      %p130 = scmp.le.s32.totalorder 1, %s14
      %p131 = scmp.lt.s32.totalorder %s14, 3
      %p132 = pnand %p130, %p131
      %p133 = pneg %p132
      // Predicated region
      $region9: #{tpu_custom_call.1} parent=5 // pred_check
        _
      $region10: #{tpu_custom_call.1} parent=5 // pred_check_branch
        %135 = sbr.rel (%p132) target = $region12
      $region11: #{tpu_custom_call.1} parent=5 // pred_region
        %s136 = ssub.s32 %s14, 1
        // Predicated region
        $region13: #{tpu_custom_call.1} parent=11 // pred_check
          %p137 = pneg %p47
        $region14: #{tpu_custom_call.1} parent=11 // pred_check_branch
          %139 = sbr.rel (%p137) target = $region16
        $region15: #{tpu_custom_call.1} parent=11 // pred_region
          %s141 = ssub.s32 48, 48
          %142 = vsyncadd [#allocation4], %s141
          %s144 = sshll.u32 %s0, 4
          %s145 = int_to_ptr.vmem [resolvable:$true] %s144
          %147 = dma.vmem_to_smem %s145, 48, [#allocation2], [#allocation4]
        $region16: #{tpu_custom_call.1} parent=11 // pred_fallthru
          _
        // Predicated region
        $region17: #{tpu_custom_call.1} parent=11 // pred_check
          %p148 = pneg %p68
        $region18: #{tpu_custom_call.1} parent=11 // pred_check_branch
          %150 = sbr.rel (%p148) target = $region20
        $region19: #{tpu_custom_call.1} parent=11 // pred_region
          %s152 = ssub.s32 16, 16
          %153 = vsyncadd [#allocation6], %s152
          %s155 = sshll.u32 %s1, 4
          %s156 = int_to_ptr.vmem [resolvable:$true] %s155
          %158 = dma.vmem_to_smem %s156, 16, [#allocation5], [#allocation6]
        $region20: #{tpu_custom_call.1} parent=11 // pred_fallthru
          _
        // Predicated region
        $region21: #{tpu_custom_call.1} parent=11 // pred_check
          %p159 = pneg %p94
        $region22: #{tpu_custom_call.1} parent=11 // pred_check_branch
          %161 = sbr.rel (%p159) target = $region24
        $region23: #{tpu_custom_call.1} parent=11 // pred_region
          %p162 = scmp.lt.s32.totalorder %s23, 0
          %s163 = scalar_select %p162, %s23, 0
          %s164 = smul.addr %s163, 12
          %s165 = smul.addr %s164, 8
          %s166 = scalar_lea.vmem %s2, %s165
        $region24: #{tpu_custom_call.1} parent=11 // pred_fallthru
          _
      $region12: #{tpu_custom_call.1} parent=5 // pred_fallthru
        _
      %p167 = scmp.lt.s32.totalorder %s14, 2
      // Predicated region
      $region25: #{tpu_custom_call.1} parent=5 // pred_check
        %p168 = pneg %p167
      $region26: #{tpu_custom_call.1} parent=5 // pred_check_branch
        %170 = sbr.rel (%p168) target = $region28
      $region27: #{tpu_custom_call.1} parent=5 // pred_region
        _
      $region28: #{tpu_custom_call.1} parent=5 // pred_fallthru
        _
      %p171 = scmp.le.s32.totalorder 1, %s14
      %p172 = scmp.lt.s32.totalorder %s14, 3
      %p173 = pnand %p171, %p172
      %p174 = pneg %p173
      // Predicated region
      $region29: #{tpu_custom_call.1} parent=5 // pred_check
        _
      $region30: #{tpu_custom_call.1} parent=5 // pred_check_branch
        %176 = sbr.rel (%p173) target = $region32
      $region31: #{tpu_custom_call.1} parent=5 // pred_region
        %s177 = ssub.s32 %s14, 1
        // Predicated region
        $region33: #{tpu_custom_call.1} parent=31 // pred_check
          %p178 = pneg %p47
        $region34: #{tpu_custom_call.1} parent=31 // pred_check_branch
          %180 = sbr.rel (%p178) target = $region36
        $region35: #{tpu_custom_call.1} parent=31 // pred_region
          %181 = dma.done [#allocation4], 48
        $region36: #{tpu_custom_call.1} parent=31 // pred_fallthru
          _
        // Predicated region
        $region37: #{tpu_custom_call.1} parent=31 // pred_check
          %p182 = pneg %p68
        $region38: #{tpu_custom_call.1} parent=31 // pred_check_branch
          %184 = sbr.rel (%p182) target = $region40
        $region39: #{tpu_custom_call.1} parent=31 // pred_region
          %185 = dma.done [#allocation6], 16
        $region40: #{tpu_custom_call.1} parent=31 // pred_fallthru
          _
        %186 = sfence
        %p187 = pneg %p47
        %p188 = pneg %p44
        %p189 = pneg %p68
        %p190 = pneg %p65
        %p191 = scmp.lt.s32.totalorder %s23, 0
        %s192 = scalar_select %p191, %s23, 0
        %s193 = smul.addr %s192, 12
        %s194 = smul.addr %s193, 8
        %s195 = scalar_lea.vmem %s2, %s194
        %p196 = pneg %p94
        %p197 = pneg %p91
        %p198 = pneg %p122
        %p199 = pneg %p119
        %s200 = sand.u32 %s109, 1
        %s201 = scalar_lea.sflag [#allocation3], %s200
        %s202 = sand.u32 %s109, 1
        %s203 = smul.addr %s202, 64
        %s204 = scalar_lea.vmem [#allocation7], %s203
        %p205 = scmp.lt.s32.totalorder %s23, 0
        %s206 = scalar_select %p205, %s23, 0
        %s207 = smul.addr %s206, 12
        %s208 = smul.addr %s207, 8
        %s209 = scalar_lea.vmem %s2, %s208
        %s210 = smul.u32 2, %s23
        %s211 = smul.u32 2, %s24
        %s212 = smul.u32 %s24, 2
        %s213 = sld [smem:[#allocation5 + %s212]]
        %v214 = vstv %s213
        %s215 = sadd.s32 %s212, 4
        %s216 = sld [smem:[#allocation5 + %s215]]
        %v217 = vstv %s216
        %s218 = sadd.s32 %s212, 1
        %s219 = sld [smem:[#allocation5 + %s218]]
        %v220 = vstv %s219
        %s221 = sadd.s32 %s212, 5
        %s222 = sld [smem:[#allocation5 + %s221]]
        %v223 = vstv %s222
        %v224 = vld [vmem:[%s209] sm:$0xff]
        %v225 = vld [vmem:[%s209 + $0x8] sm:$0xff]
        %v226 = vld [vmem:[%s209 + $0x10] sm:$0xf]
        %s227 = smul.u32 %s24, 72
        %s228 = sld [smem:[#allocation2 + %s227]]
        %s229 = smul.u32 %s215, 36
        %s230 = sld [smem:[#allocation2 + %s229]]
        %v231 = vstv %s228
        %v232 = vmul.f32 %v231, %v224
        %v233 = vmul.f32 %v231, %v225
        %v234 = vadd.f32 %v214, %v232
        %v235 = vadd.f32 %v214, %v233
        %v236 = vstv %s230
        %v237 = vmul.f32 %v236, %v224
        %v238 = vmul.f32 %v236, %v225
        %v239 = vadd.f32 %v217, %v237
        %v240 = vadd.f32 %v217, %v238
        %s241 = smul.u32 %s218, 36
        %s242 = sld [smem:[#allocation2 + %s241]]
        %s243 = smul.u32 %s221, 36
        %s244 = sld [smem:[#allocation2 + %s243]]
        %v245 = vstv %s242
        %v246 = vmul.f32 %v245, %v224
        %v247 = vmul.f32 %v245, %v225
        %v248 = vadd.f32 %v220, %v246
        %v249 = vadd.f32 %v220, %v247
        %v250 = vstv %s244
        %v251 = vmul.f32 %v250, %v224
        %v252 = vmul.f32 %v250, %v225
        %v253 = vadd.f32 %v223, %v251
        %v254 = vadd.f32 %v223, %v252
        %s255 = sadd.s32 %s227, 3
        %s256 = sld [smem:[#allocation2 + %s255]]
        %s257 = sadd.s32 %s229, 3
        %s258 = sld [smem:[#allocation2 + %s257]]
        %v259 = vstv %s256
        %v260 = vmul.f32 %v259, %v224
        %v261 = vmul.f32 %v259, %v225
        %v262 = vmul.f32 %v259, %v226
        %vm266 = vcmask 1045504
        %v267 = vrot.slane %v260, 2
        %v268 = vrot.slane %v261, 2
        %v269 = vsel %vm266, %v267, %v268
        %v270 = vrot.slane %v262, 2
        %v271 = vsel %vm266, %v268, %v270
        %v274 = vadd.f32 %v234, %v269
        %v275 = vadd.f32 %v235, %v271
        %v276 = vstv %s258
        %v277 = vmul.f32 %v276, %v224
        %v278 = vmul.f32 %v276, %v225
        %v279 = vmul.f32 %v276, %v226
        %v283 = vrot.slane %v277, 2
        %v284 = vrot.slane %v278, 2
        %v285 = vsel %vm266, %v283, %v284
        %v286 = vrot.slane %v279, 2
        %v287 = vsel %vm266, %v284, %v286
        %v290 = vadd.f32 %v239, %v285
        %v291 = vadd.f32 %v240, %v287
        %s292 = sadd.s32 %s241, 3
        %s293 = sld [smem:[#allocation2 + %s292]]
        %s294 = sadd.s32 %s243, 3
        %s295 = sld [smem:[#allocation2 + %s294]]
        %v296 = vstv %s293
        %v297 = vmul.f32 %v296, %v224
        %v298 = vmul.f32 %v296, %v225
        %v299 = vmul.f32 %v296, %v226
        %v303 = vrot.slane %v297, 2
        %v304 = vrot.slane %v298, 2
        %v305 = vsel %vm266, %v303, %v304
        %v306 = vrot.slane %v299, 2
        %v307 = vsel %vm266, %v304, %v306
        %v310 = vadd.f32 %v248, %v305
        %v311 = vadd.f32 %v249, %v307
        %v312 = vstv %s295
        %v313 = vmul.f32 %v312, %v224
        %v314 = vmul.f32 %v312, %v225
        %v315 = vmul.f32 %v312, %v226
        %v319 = vrot.slane %v313, 2
        %v320 = vrot.slane %v314, 2
        %v321 = vsel %vm266, %v319, %v320
        %v322 = vrot.slane %v315, 2
        %v323 = vsel %vm266, %v320, %v322
        %v326 = vadd.f32 %v253, %v321
        %v327 = vadd.f32 %v254, %v323
        %s328 = sadd.s32 %s227, 6
        %s329 = sld [smem:[#allocation2 + %s328]]
        %s330 = sadd.s32 %s229, 6
        %s331 = sld [smem:[#allocation2 + %s330]]
        %v332 = vstv %s329
        %v333 = vmul.f32 %v332, %v224
        %v334 = vmul.f32 %v332, %v225
        %v335 = vmul.f32 %v332, %v226
        %vm339 = vcmask 1043456
        %v340 = vrot.slane %v333, 4
        %v341 = vrot.slane %v334, 4
        %v342 = vsel %vm339, %v340, %v341
        %v343 = vrot.slane %v335, 4
        %v344 = vsel %vm339, %v341, %v343
        %v347 = vadd.f32 %v274, %v342
        %v348 = vadd.f32 %v275, %v344
        %v349 = vstv %s331
        %v350 = vmul.f32 %v349, %v224
        %v351 = vmul.f32 %v349, %v225
        %v352 = vmul.f32 %v349, %v226
        %v356 = vrot.slane %v350, 4
        %v357 = vrot.slane %v351, 4
        %v358 = vsel %vm339, %v356, %v357
        %v359 = vrot.slane %v352, 4
        %v360 = vsel %vm339, %v357, %v359
        %v363 = vadd.f32 %v290, %v358
        %v364 = vadd.f32 %v291, %v360
        %s365 = sadd.s32 %s241, 6
        %s366 = sld [smem:[#allocation2 + %s365]]
        %s367 = sadd.s32 %s243, 6
        %s368 = sld [smem:[#allocation2 + %s367]]
        %v369 = vstv %s366
        %v370 = vmul.f32 %v369, %v224
        %v371 = vmul.f32 %v369, %v225
        %v372 = vmul.f32 %v369, %v226
        %v376 = vrot.slane %v370, 4
        %v377 = vrot.slane %v371, 4
        %v378 = vsel %vm339, %v376, %v377
        %v379 = vrot.slane %v372, 4
        %v380 = vsel %vm339, %v377, %v379
        %v383 = vadd.f32 %v310, %v378
        %v384 = vadd.f32 %v311, %v380
        %v385 = vstv %s368
        %v386 = vmul.f32 %v385, %v224
        %v387 = vmul.f32 %v385, %v225
        %v388 = vmul.f32 %v385, %v226
        %v392 = vrot.slane %v386, 4
        %v393 = vrot.slane %v387, 4
        %v394 = vsel %vm339, %v392, %v393
        %v395 = vrot.slane %v388, 4
        %v396 = vsel %vm339, %v393, %v395
        %v399 = vadd.f32 %v326, %v394
        %v400 = vadd.f32 %v327, %v396
        %s401 = sadd.s32 %s227, 1
        %s402 = sld [smem:[#allocation2 + %s401]]
        %s403 = sadd.s32 %s229, 1
        %s404 = sld [smem:[#allocation2 + %s403]]
        %v405 = vstv %s402
        %v406 = vmul.f32 %v405, %v224
        %v407 = vmul.f32 %v405, %v225
        %410 = vrot.lane.b32.xlu0 %v406, 126
        %v411 = vpop.permute.xlu0 %410
        %412 = vrot.lane.b32.xlu0 %v407, 126
        %v413 = vpop.permute.xlu0 %412
        %v416 = vadd.f32 %v347, %v411
        %v417 = vadd.f32 %v348, %v413
        %v418 = vstv %s404
        %v419 = vmul.f32 %v418, %v224
        %v420 = vmul.f32 %v418, %v225
        %423 = vrot.lane.b32.xlu0 %v419, 126
        %v424 = vpop.permute.xlu0 %423
        %425 = vrot.lane.b32.xlu0 %v420, 126
        %v426 = vpop.permute.xlu0 %425
        %v429 = vadd.f32 %v363, %v424
        %v430 = vadd.f32 %v364, %v426
        %s431 = sadd.s32 %s241, 1
        %s432 = sld [smem:[#allocation2 + %s431]]
        %s433 = sadd.s32 %s243, 1
        %s434 = sld [smem:[#allocation2 + %s433]]
        %v435 = vstv %s432
        %v436 = vmul.f32 %v435, %v224
        %v437 = vmul.f32 %v435, %v225
        %440 = vrot.lane.b32.xlu0 %v436, 126
        %v441 = vpop.permute.xlu0 %440
        %442 = vrot.lane.b32.xlu0 %v437, 126
        %v443 = vpop.permute.xlu0 %442
        %v446 = vadd.f32 %v383, %v441
        %v447 = vadd.f32 %v384, %v443
        %v448 = vstv %s434
        %v449 = vmul.f32 %v448, %v224
        %v450 = vmul.f32 %v448, %v225
        %453 = vrot.lane.b32.xlu0 %v449, 126
        %v454 = vpop.permute.xlu0 %453
        %455 = vrot.lane.b32.xlu0 %v450, 126
        %v456 = vpop.permute.xlu0 %455
        %v459 = vadd.f32 %v399, %v454
        %v460 = vadd.f32 %v400, %v456
        %s461 = sadd.s32 %s227, 4
        %s462 = sld [smem:[#allocation2 + %s461]]
        %s463 = sadd.s32 %s229, 4
        %s464 = sld [smem:[#allocation2 + %s463]]
        %v465 = vstv %s462
        %v466 = vmul.f32 %v465, %v224
        %v467 = vmul.f32 %v465, %v225
        %v468 = vmul.f32 %v465, %v226
        %v472 = vrot.slane %v466, 2
        %v473 = vrot.slane %v467, 2
        %v474 = vsel %vm266, %v472, %v473
        %v475 = vrot.slane %v468, 2
        %v476 = vsel %vm266, %v473, %v475
        %477 = vrot.lane.b32.xlu0 %v474, 126
        %v478 = vpop.permute.xlu0 %477
        %479 = vrot.lane.b32.xlu0 %v476, 126
        %v480 = vpop.permute.xlu0 %479
        %v483 = vadd.f32 %v416, %v478
        %v484 = vadd.f32 %v417, %v480
        %v485 = vstv %s464
        %v486 = vmul.f32 %v485, %v224
        %v487 = vmul.f32 %v485, %v225
        %v488 = vmul.f32 %v485, %v226
        %v492 = vrot.slane %v486, 2
        %v493 = vrot.slane %v487, 2
        %v494 = vsel %vm266, %v492, %v493
        %v495 = vrot.slane %v488, 2
        %v496 = vsel %vm266, %v493, %v495
        %497 = vrot.lane.b32.xlu0 %v494, 126
        %v498 = vpop.permute.xlu0 %497
        %499 = vrot.lane.b32.xlu0 %v496, 126
        %v500 = vpop.permute.xlu0 %499
        %v503 = vadd.f32 %v429, %v498
        %v504 = vadd.f32 %v430, %v500
        %s505 = sadd.s32 %s241, 4
        %s506 = sld [smem:[#allocation2 + %s505]]
        %s507 = sadd.s32 %s243, 4
        %s508 = sld [smem:[#allocation2 + %s507]]
        %v509 = vstv %s506
        %v510 = vmul.f32 %v509, %v224
        %v511 = vmul.f32 %v509, %v225
        %v512 = vmul.f32 %v509, %v226
        %v516 = vrot.slane %v510, 2
        %v517 = vrot.slane %v511, 2
        %v518 = vsel %vm266, %v516, %v517
        %v519 = vrot.slane %v512, 2
        %v520 = vsel %vm266, %v517, %v519
        %521 = vrot.lane.b32.xlu0 %v518, 126
        %v522 = vpop.permute.xlu0 %521
        %523 = vrot.lane.b32.xlu0 %v520, 126
        %v524 = vpop.permute.xlu0 %523
        %v527 = vadd.f32 %v446, %v522
        %v528 = vadd.f32 %v447, %v524
        %v529 = vstv %s508
        %v530 = vmul.f32 %v529, %v224
        %v531 = vmul.f32 %v529, %v225
        %v532 = vmul.f32 %v529, %v226
        %v536 = vrot.slane %v530, 2
        %v537 = vrot.slane %v531, 2
        %v538 = vsel %vm266, %v536, %v537
        %v539 = vrot.slane %v532, 2
        %v540 = vsel %vm266, %v537, %v539
        %541 = vrot.lane.b32.xlu0 %v538, 126
        %v542 = vpop.permute.xlu0 %541
        %543 = vrot.lane.b32.xlu0 %v540, 126
        %v544 = vpop.permute.xlu0 %543
        %v547 = vadd.f32 %v459, %v542
        %v548 = vadd.f32 %v460, %v544
        %s549 = sadd.s32 %s227, 7
        %s550 = sld [smem:[#allocation2 + %s549]]
        %s551 = sadd.s32 %s229, 7
        %s552 = sld [smem:[#allocation2 + %s551]]
        %v553 = vstv %s550
        %v554 = vmul.f32 %v553, %v224
        %v555 = vmul.f32 %v553, %v225
        %v556 = vmul.f32 %v553, %v226
        %v560 = vrot.slane %v554, 4
        %v561 = vrot.slane %v555, 4
        %v562 = vsel %vm339, %v560, %v561
        %v563 = vrot.slane %v556, 4
        %v564 = vsel %vm339, %v561, %v563
        %565 = vrot.lane.b32.xlu0 %v562, 126
        %v566 = vpop.permute.xlu0 %565
        %567 = vrot.lane.b32.xlu0 %v564, 126
        %v568 = vpop.permute.xlu0 %567
        %v571 = vadd.f32 %v483, %v566
        %v572 = vadd.f32 %v484, %v568
        %v573 = vstv %s552
        %v574 = vmul.f32 %v573, %v224
        %v575 = vmul.f32 %v573, %v225
        %v576 = vmul.f32 %v573, %v226
        %v580 = vrot.slane %v574, 4
        %v581 = vrot.slane %v575, 4
        %v582 = vsel %vm339, %v580, %v581
        %v583 = vrot.slane %v576, 4
        %v584 = vsel %vm339, %v581, %v583
        %585 = vrot.lane.b32.xlu0 %v582, 126
        %v586 = vpop.permute.xlu0 %585
        %587 = vrot.lane.b32.xlu0 %v584, 126
        %v588 = vpop.permute.xlu0 %587
        %v591 = vadd.f32 %v503, %v586
        %v592 = vadd.f32 %v504, %v588
        %s593 = sadd.s32 %s241, 7
        %s594 = sld [smem:[#allocation2 + %s593]]
        %s595 = sadd.s32 %s243, 7
        %s596 = sld [smem:[#allocation2 + %s595]]
        %v597 = vstv %s594
        %v598 = vmul.f32 %v597, %v224
        %v599 = vmul.f32 %v597, %v225
        %v600 = vmul.f32 %v597, %v226
        %v604 = vrot.slane %v598, 4
        %v605 = vrot.slane %v599, 4
        %v606 = vsel %vm339, %v604, %v605
        %v607 = vrot.slane %v600, 4
        %v608 = vsel %vm339, %v605, %v607
        %609 = vrot.lane.b32.xlu0 %v606, 126
        %v610 = vpop.permute.xlu0 %609
        %611 = vrot.lane.b32.xlu0 %v608, 126
        %v612 = vpop.permute.xlu0 %611
        %v615 = vadd.f32 %v527, %v610
        %v616 = vadd.f32 %v528, %v612
        %v617 = vstv %s596
        %v618 = vmul.f32 %v617, %v224
        %v619 = vmul.f32 %v617, %v225
        %v620 = vmul.f32 %v617, %v226
        %v624 = vrot.slane %v618, 4
        %v625 = vrot.slane %v619, 4
        %v626 = vsel %vm339, %v624, %v625
        %v627 = vrot.slane %v620, 4
        %v628 = vsel %vm339, %v625, %v627
        %629 = vrot.lane.b32.xlu0 %v626, 126
        %v630 = vpop.permute.xlu0 %629
        %631 = vrot.lane.b32.xlu0 %v628, 126
        %v632 = vpop.permute.xlu0 %631
        %v635 = vadd.f32 %v547, %v630
        %v636 = vadd.f32 %v548, %v632
        %s637 = sadd.s32 %s227, 2
        %s638 = sld [smem:[#allocation2 + %s637]]
        %s639 = sadd.s32 %s229, 2
        %s640 = sld [smem:[#allocation2 + %s639]]
        %v641 = vstv %s638
        %v642 = vmul.f32 %v641, %v224
        %v643 = vmul.f32 %v641, %v225
        %646 = vrot.lane.b32.xlu0 %v642, 124
        %v647 = vpop.permute.xlu0 %646
        %648 = vrot.lane.b32.xlu0 %v643, 124
        %v649 = vpop.permute.xlu0 %648
        %v652 = vadd.f32 %v571, %v647
        %v653 = vadd.f32 %v572, %v649
        %v654 = vstv %s640
        %v655 = vmul.f32 %v654, %v224
        %v656 = vmul.f32 %v654, %v225
        %659 = vrot.lane.b32.xlu0 %v655, 124
        %v660 = vpop.permute.xlu0 %659
        %661 = vrot.lane.b32.xlu0 %v656, 124
        %v662 = vpop.permute.xlu0 %661
        %v665 = vadd.f32 %v591, %v660
        %v666 = vadd.f32 %v592, %v662
        %s667 = sadd.s32 %s241, 2
        %s668 = sld [smem:[#allocation2 + %s667]]
        %s669 = sadd.s32 %s243, 2
        %s670 = sld [smem:[#allocation2 + %s669]]
        %v671 = vstv %s668
        %v672 = vmul.f32 %v671, %v224
        %v673 = vmul.f32 %v671, %v225
        %676 = vrot.lane.b32.xlu0 %v672, 124
        %v677 = vpop.permute.xlu0 %676
        %678 = vrot.lane.b32.xlu0 %v673, 124
        %v679 = vpop.permute.xlu0 %678
        %v682 = vadd.f32 %v615, %v677
        %v683 = vadd.f32 %v616, %v679
        %v684 = vstv %s670
        %v685 = vmul.f32 %v684, %v224
        %v686 = vmul.f32 %v684, %v225
        %689 = vrot.lane.b32.xlu0 %v685, 124
        %v690 = vpop.permute.xlu0 %689
        %691 = vrot.lane.b32.xlu0 %v686, 124
        %v692 = vpop.permute.xlu0 %691
        %v695 = vadd.f32 %v635, %v690
        %v696 = vadd.f32 %v636, %v692
        %s697 = sadd.s32 %s227, 5
        %s698 = sld [smem:[#allocation2 + %s697]]
        %s699 = sadd.s32 %s229, 5
        %s700 = sld [smem:[#allocation2 + %s699]]
        %v701 = vstv %s698
        %v702 = vmul.f32 %v701, %v224
        %v703 = vmul.f32 %v701, %v225
        %v704 = vmul.f32 %v701, %v226
        %v708 = vrot.slane %v702, 2
        %v709 = vrot.slane %v703, 2
        %v710 = vsel %vm266, %v708, %v709
        %v711 = vrot.slane %v704, 2
        %v712 = vsel %vm266, %v709, %v711
        %713 = vrot.lane.b32.xlu0 %v710, 124
        %v714 = vpop.permute.xlu0 %713
        %715 = vrot.lane.b32.xlu0 %v712, 124
        %v716 = vpop.permute.xlu0 %715
        %v719 = vadd.f32 %v652, %v714
        %v720 = vadd.f32 %v653, %v716
        %v721 = vstv %s700
        %v722 = vmul.f32 %v721, %v224
        %v723 = vmul.f32 %v721, %v225
        %v724 = vmul.f32 %v721, %v226
        %v728 = vrot.slane %v722, 2
        %v729 = vrot.slane %v723, 2
        %v730 = vsel %vm266, %v728, %v729
        %v731 = vrot.slane %v724, 2
        %v732 = vsel %vm266, %v729, %v731
        %733 = vrot.lane.b32.xlu0 %v730, 124
        %v734 = vpop.permute.xlu0 %733
        %735 = vrot.lane.b32.xlu0 %v732, 124
        %v736 = vpop.permute.xlu0 %735
        %v739 = vadd.f32 %v665, %v734
        %v740 = vadd.f32 %v666, %v736
        %s741 = sadd.s32 %s241, 5
        %s742 = sld [smem:[#allocation2 + %s741]]
        %s743 = sadd.s32 %s243, 5
        %s744 = sld [smem:[#allocation2 + %s743]]
        %v745 = vstv %s742
        %v746 = vmul.f32 %v745, %v224
        %v747 = vmul.f32 %v745, %v225
        %v748 = vmul.f32 %v745, %v226
        %v752 = vrot.slane %v746, 2
        %v753 = vrot.slane %v747, 2
        %v754 = vsel %vm266, %v752, %v753
        %v755 = vrot.slane %v748, 2
        %v756 = vsel %vm266, %v753, %v755
        %757 = vrot.lane.b32.xlu0 %v754, 124
        %v758 = vpop.permute.xlu0 %757
        %759 = vrot.lane.b32.xlu0 %v756, 124
        %v760 = vpop.permute.xlu0 %759
        %v763 = vadd.f32 %v682, %v758
        %v764 = vadd.f32 %v683, %v760
        %v765 = vstv %s744
        %v766 = vmul.f32 %v765, %v224
        %v767 = vmul.f32 %v765, %v225
        %v768 = vmul.f32 %v765, %v226
        %v772 = vrot.slane %v766, 2
        %v773 = vrot.slane %v767, 2
        %v774 = vsel %vm266, %v772, %v773
        %v775 = vrot.slane %v768, 2
        %v776 = vsel %vm266, %v773, %v775
        %777 = vrot.lane.b32.xlu0 %v774, 124
        %v778 = vpop.permute.xlu0 %777
        %779 = vrot.lane.b32.xlu0 %v776, 124
        %v780 = vpop.permute.xlu0 %779
        %v783 = vadd.f32 %v695, %v778
        %v784 = vadd.f32 %v696, %v780
        %s785 = sadd.s32 %s227, 8
        %s786 = sld [smem:[#allocation2 + %s785]]
        %s787 = sadd.s32 %s229, 8
        %s788 = sld [smem:[#allocation2 + %s787]]
        %v789 = vstv %s786
        %v790 = vmul.f32 %v789, %v224
        %v791 = vmul.f32 %v789, %v225
        %v792 = vmul.f32 %v789, %v226
        %v796 = vrot.slane %v790, 4
        %v797 = vrot.slane %v791, 4
        %v798 = vsel %vm339, %v796, %v797
        %v799 = vrot.slane %v792, 4
        %v800 = vsel %vm339, %v797, %v799
        %801 = vrot.lane.b32.xlu0 %v798, 124
        %v802 = vpop.permute.xlu0 %801
        %803 = vrot.lane.b32.xlu0 %v800, 124
        %v804 = vpop.permute.xlu0 %803
        %v807 = vadd.f32 %v719, %v802
        %v808 = vadd.f32 %v720, %v804
        %v809 = vstv %s788
        %v810 = vmul.f32 %v809, %v224
        %v811 = vmul.f32 %v809, %v225
        %v812 = vmul.f32 %v809, %v226
        %v816 = vrot.slane %v810, 4
        %v817 = vrot.slane %v811, 4
        %v818 = vsel %vm339, %v816, %v817
        %v819 = vrot.slane %v812, 4
        %v820 = vsel %vm339, %v817, %v819
        %821 = vrot.lane.b32.xlu0 %v818, 124
        %v822 = vpop.permute.xlu0 %821
        %823 = vrot.lane.b32.xlu0 %v820, 124
        %v824 = vpop.permute.xlu0 %823
        %v827 = vadd.f32 %v739, %v822
        %v828 = vadd.f32 %v740, %v824
        %s829 = sadd.s32 %s241, 8
        %s830 = sld [smem:[#allocation2 + %s829]]
        %s831 = sadd.s32 %s243, 8
        %s832 = sld [smem:[#allocation2 + %s831]]
        %v833 = vstv %s830
        %v834 = vmul.f32 %v833, %v224
        %v835 = vmul.f32 %v833, %v225
        %v836 = vmul.f32 %v833, %v226
        %v840 = vrot.slane %v834, 4
        %v841 = vrot.slane %v835, 4
        %v842 = vsel %vm339, %v840, %v841
        %v843 = vrot.slane %v836, 4
        %v844 = vsel %vm339, %v841, %v843
        %845 = vrot.lane.b32.xlu0 %v842, 124
        %v846 = vpop.permute.xlu0 %845
        %847 = vrot.lane.b32.xlu0 %v844, 124
        %v848 = vpop.permute.xlu0 %847
        %v851 = vadd.f32 %v763, %v846
        %v852 = vadd.f32 %v764, %v848
        %v853 = vstv %s832
        %v854 = vmul.f32 %v853, %v224
        %v855 = vmul.f32 %v853, %v225
        %v856 = vmul.f32 %v853, %v226
        %v860 = vrot.slane %v854, 4
        %v861 = vrot.slane %v855, 4
        %v862 = vsel %vm339, %v860, %v861
        %v863 = vrot.slane %v856, 4
        %v864 = vsel %vm339, %v861, %v863
        %865 = vrot.lane.b32.xlu0 %v862, 124
        %v866 = vpop.permute.xlu0 %865
        %867 = vrot.lane.b32.xlu0 %v864, 124
        %v868 = vpop.permute.xlu0 %867
        %v871 = vadd.f32 %v783, %v866
        %v872 = vadd.f32 %v784, %v868
        %s873 = scalar_lea.vmem %s209, 24
        %v874 = vld [vmem:[%s873] sm:$0xff]
        %v875 = vld [vmem:[%s873 + $0x8] sm:$0xff]
        %v876 = vld [vmem:[%s873 + $0x10] sm:$0xf]
        %s877 = sadd.s32 %s227, 9
        %s878 = sld [smem:[#allocation2 + %s877]]
        %s879 = sadd.s32 %s229, 9
        %s880 = sld [smem:[#allocation2 + %s879]]
        %v881 = vstv %s878
        %v882 = vmul.f32 %v881, %v874
        %v883 = vmul.f32 %v881, %v875
        %v884 = vadd.f32 %v807, %v882
        %v885 = vadd.f32 %v808, %v883
        %v886 = vstv %s880
        %v887 = vmul.f32 %v886, %v874
        %v888 = vmul.f32 %v886, %v875
        %v889 = vadd.f32 %v827, %v887
        %v890 = vadd.f32 %v828, %v888
        %s891 = sadd.s32 %s241, 9
        %s892 = sld [smem:[#allocation2 + %s891]]
        %s893 = sadd.s32 %s243, 9
        %s894 = sld [smem:[#allocation2 + %s893]]
        %v895 = vstv %s892
        %v896 = vmul.f32 %v895, %v874
        %v897 = vmul.f32 %v895, %v875
        %v898 = vadd.f32 %v851, %v896
        %v899 = vadd.f32 %v852, %v897
        %v900 = vstv %s894
        %v901 = vmul.f32 %v900, %v874
        %v902 = vmul.f32 %v900, %v875
        %v903 = vadd.f32 %v871, %v901
        %v904 = vadd.f32 %v872, %v902
        %s905 = sadd.s32 %s227, 12
        %s906 = sld [smem:[#allocation2 + %s905]]
        %s907 = sadd.s32 %s229, 12
        %s908 = sld [smem:[#allocation2 + %s907]]
        %v909 = vstv %s906
        %v910 = vmul.f32 %v909, %v874
        %v911 = vmul.f32 %v909, %v875
        %v912 = vmul.f32 %v909, %v876
        %v916 = vrot.slane %v910, 2
        %v917 = vrot.slane %v911, 2
        %v918 = vsel %vm266, %v916, %v917
        %v919 = vrot.slane %v912, 2
        %v920 = vsel %vm266, %v917, %v919
        %v923 = vadd.f32 %v884, %v918
        %v924 = vadd.f32 %v885, %v920
        %v925 = vstv %s908
        %v926 = vmul.f32 %v925, %v874
        %v927 = vmul.f32 %v925, %v875
        %v928 = vmul.f32 %v925, %v876
        %v932 = vrot.slane %v926, 2
        %v933 = vrot.slane %v927, 2
        %v934 = vsel %vm266, %v932, %v933
        %v935 = vrot.slane %v928, 2
        %v936 = vsel %vm266, %v933, %v935
        %v939 = vadd.f32 %v889, %v934
        %v940 = vadd.f32 %v890, %v936
        %s941 = sadd.s32 %s241, 12
        %s942 = sld [smem:[#allocation2 + %s941]]
        %s943 = sadd.s32 %s243, 12
        %s944 = sld [smem:[#allocation2 + %s943]]
        %v945 = vstv %s942
        %v946 = vmul.f32 %v945, %v874
        %v947 = vmul.f32 %v945, %v875
        %v948 = vmul.f32 %v945, %v876
        %v952 = vrot.slane %v946, 2
        %v953 = vrot.slane %v947, 2
        %v954 = vsel %vm266, %v952, %v953
        %v955 = vrot.slane %v948, 2
        %v956 = vsel %vm266, %v953, %v955
        %v959 = vadd.f32 %v898, %v954
        %v960 = vadd.f32 %v899, %v956
        %v961 = vstv %s944
        %v962 = vmul.f32 %v961, %v874
        %v963 = vmul.f32 %v961, %v875
        %v964 = vmul.f32 %v961, %v876
        %v968 = vrot.slane %v962, 2
        %v969 = vrot.slane %v963, 2
        %v970 = vsel %vm266, %v968, %v969
        %v971 = vrot.slane %v964, 2
        %v972 = vsel %vm266, %v969, %v971
        %v975 = vadd.f32 %v903, %v970
        %v976 = vadd.f32 %v904, %v972
        %s977 = sadd.s32 %s227, 15
        %s978 = sld [smem:[#allocation2 + %s977]]
        %s979 = sadd.s32 %s229, 15
        %s980 = sld [smem:[#allocation2 + %s979]]
        %v981 = vstv %s978
        %v982 = vmul.f32 %v981, %v874
        %v983 = vmul.f32 %v981, %v875
        %v984 = vmul.f32 %v981, %v876
        %v988 = vrot.slane %v982, 4
        %v989 = vrot.slane %v983, 4
        %v990 = vsel %vm339, %v988, %v989
        %v991 = vrot.slane %v984, 4
        %v992 = vsel %vm339, %v989, %v991
        %v995 = vadd.f32 %v923, %v990
        %v996 = vadd.f32 %v924, %v992
        %v997 = vstv %s980
        %v998 = vmul.f32 %v997, %v874
        %v999 = vmul.f32 %v997, %v875
        %v1000 = vmul.f32 %v997, %v876
        %v1004 = vrot.slane %v998, 4
        %v1005 = vrot.slane %v999, 4
        %v1006 = vsel %vm339, %v1004, %v1005
        %v1007 = vrot.slane %v1000, 4
        %v1008 = vsel %vm339, %v1005, %v1007
        %v1011 = vadd.f32 %v939, %v1006
        %v1012 = vadd.f32 %v940, %v1008
        %s1013 = sadd.s32 %s241, 15
        %s1014 = sld [smem:[#allocation2 + %s1013]]
        %s1015 = sadd.s32 %s243, 15
        %s1016 = sld [smem:[#allocation2 + %s1015]]
        %v1017 = vstv %s1014
        %v1018 = vmul.f32 %v1017, %v874
        %v1019 = vmul.f32 %v1017, %v875
        %v1020 = vmul.f32 %v1017, %v876
        %v1024 = vrot.slane %v1018, 4
        %v1025 = vrot.slane %v1019, 4
        %v1026 = vsel %vm339, %v1024, %v1025
        %v1027 = vrot.slane %v1020, 4
        %v1028 = vsel %vm339, %v1025, %v1027
        %v1031 = vadd.f32 %v959, %v1026
        %v1032 = vadd.f32 %v960, %v1028
        %v1033 = vstv %s1016
        %v1034 = vmul.f32 %v1033, %v874
        %v1035 = vmul.f32 %v1033, %v875
        %v1036 = vmul.f32 %v1033, %v876
        %v1040 = vrot.slane %v1034, 4
        %v1041 = vrot.slane %v1035, 4
        %v1042 = vsel %vm339, %v1040, %v1041
        %v1043 = vrot.slane %v1036, 4
        %v1044 = vsel %vm339, %v1041, %v1043
        %v1047 = vadd.f32 %v975, %v1042
        %v1048 = vadd.f32 %v976, %v1044
        %s1049 = sadd.s32 %s227, 10
        %s1050 = sld [smem:[#allocation2 + %s1049]]
        %s1051 = sadd.s32 %s229, 10
        %s1052 = sld [smem:[#allocation2 + %s1051]]
        %v1053 = vstv %s1050
        %v1054 = vmul.f32 %v1053, %v874
        %v1055 = vmul.f32 %v1053, %v875
        %1058 = vrot.lane.b32.xlu0 %v1054, 126
        %v1059 = vpop.permute.xlu0 %1058
        %1060 = vrot.lane.b32.xlu0 %v1055, 126
        %v1061 = vpop.permute.xlu0 %1060
        %v1064 = vadd.f32 %v995, %v1059
        %v1065 = vadd.f32 %v996, %v1061
        %v1066 = vstv %s1052
        %v1067 = vmul.f32 %v1066, %v874
        %v1068 = vmul.f32 %v1066, %v875
        %1071 = vrot.lane.b32.xlu0 %v1067, 126
        %v1072 = vpop.permute.xlu0 %1071
        %1073 = vrot.lane.b32.xlu0 %v1068, 126
        %v1074 = vpop.permute.xlu0 %1073
        %v1077 = vadd.f32 %v1011, %v1072
        %v1078 = vadd.f32 %v1012, %v1074
        %s1079 = sadd.s32 %s241, 10
        %s1080 = sld [smem:[#allocation2 + %s1079]]
        %s1081 = sadd.s32 %s243, 10
        %s1082 = sld [smem:[#allocation2 + %s1081]]
        %v1083 = vstv %s1080
        %v1084 = vmul.f32 %v1083, %v874
        %v1085 = vmul.f32 %v1083, %v875
        %1088 = vrot.lane.b32.xlu0 %v1084, 126
        %v1089 = vpop.permute.xlu0 %1088
        %1090 = vrot.lane.b32.xlu0 %v1085, 126
        %v1091 = vpop.permute.xlu0 %1090
        %v1094 = vadd.f32 %v1031, %v1089
        %v1095 = vadd.f32 %v1032, %v1091
        %v1096 = vstv %s1082
        %v1097 = vmul.f32 %v1096, %v874
        %v1098 = vmul.f32 %v1096, %v875
        %1101 = vrot.lane.b32.xlu0 %v1097, 126
        %v1102 = vpop.permute.xlu0 %1101
        %1103 = vrot.lane.b32.xlu0 %v1098, 126
        %v1104 = vpop.permute.xlu0 %1103
        %v1107 = vadd.f32 %v1047, %v1102
        %v1108 = vadd.f32 %v1048, %v1104
        %s1109 = sadd.s32 %s227, 13
        %s1110 = sld [smem:[#allocation2 + %s1109]]
        %s1111 = sadd.s32 %s229, 13
        %s1112 = sld [smem:[#allocation2 + %s1111]]
        %v1113 = vstv %s1110
        %v1114 = vmul.f32 %v1113, %v874
        %v1115 = vmul.f32 %v1113, %v875
        %v1116 = vmul.f32 %v1113, %v876
        %v1120 = vrot.slane %v1114, 2
        %v1121 = vrot.slane %v1115, 2
        %v1122 = vsel %vm266, %v1120, %v1121
        %v1123 = vrot.slane %v1116, 2
        %v1124 = vsel %vm266, %v1121, %v1123
        %1125 = vrot.lane.b32.xlu0 %v1122, 126
        %v1126 = vpop.permute.xlu0 %1125
        %1127 = vrot.lane.b32.xlu0 %v1124, 126
        %v1128 = vpop.permute.xlu0 %1127
        %v1131 = vadd.f32 %v1064, %v1126
        %v1132 = vadd.f32 %v1065, %v1128
        %v1133 = vstv %s1112
        %v1134 = vmul.f32 %v1133, %v874
        %v1135 = vmul.f32 %v1133, %v875
        %v1136 = vmul.f32 %v1133, %v876
        %v1140 = vrot.slane %v1134, 2
        %v1141 = vrot.slane %v1135, 2
        %v1142 = vsel %vm266, %v1140, %v1141
        %v1143 = vrot.slane %v1136, 2
        %v1144 = vsel %vm266, %v1141, %v1143
        %1145 = vrot.lane.b32.xlu0 %v1142, 126
        %v1146 = vpop.permute.xlu0 %1145
        %1147 = vrot.lane.b32.xlu0 %v1144, 126
        %v1148 = vpop.permute.xlu0 %1147
        %v1151 = vadd.f32 %v1077, %v1146
        %v1152 = vadd.f32 %v1078, %v1148
        %s1153 = sadd.s32 %s241, 13
        %s1154 = sld [smem:[#allocation2 + %s1153]]
        %s1155 = sadd.s32 %s243, 13
        %s1156 = sld [smem:[#allocation2 + %s1155]]
        %v1157 = vstv %s1154
        %v1158 = vmul.f32 %v1157, %v874
        %v1159 = vmul.f32 %v1157, %v875
        %v1160 = vmul.f32 %v1157, %v876
        %v1164 = vrot.slane %v1158, 2
        %v1165 = vrot.slane %v1159, 2
        %v1166 = vsel %vm266, %v1164, %v1165
        %v1167 = vrot.slane %v1160, 2
        %v1168 = vsel %vm266, %v1165, %v1167
        %1169 = vrot.lane.b32.xlu0 %v1166, 126
        %v1170 = vpop.permute.xlu0 %1169
        %1171 = vrot.lane.b32.xlu0 %v1168, 126
        %v1172 = vpop.permute.xlu0 %1171
        %v1175 = vadd.f32 %v1094, %v1170
        %v1176 = vadd.f32 %v1095, %v1172
        %v1177 = vstv %s1156
        %v1178 = vmul.f32 %v1177, %v874
        %v1179 = vmul.f32 %v1177, %v875
        %v1180 = vmul.f32 %v1177, %v876
        %v1184 = vrot.slane %v1178, 2
        %v1185 = vrot.slane %v1179, 2
        %v1186 = vsel %vm266, %v1184, %v1185
        %v1187 = vrot.slane %v1180, 2
        %v1188 = vsel %vm266, %v1185, %v1187
        %1189 = vrot.lane.b32.xlu0 %v1186, 126
        %v1190 = vpop.permute.xlu0 %1189
        %1191 = vrot.lane.b32.xlu0 %v1188, 126
        %v1192 = vpop.permute.xlu0 %1191
        %v1195 = vadd.f32 %v1107, %v1190
        %v1196 = vadd.f32 %v1108, %v1192
        %s1197 = sadd.s32 %s227, 16
        %s1198 = sld [smem:[#allocation2 + %s1197]]
        %s1199 = sadd.s32 %s229, 16
        %s1200 = sld [smem:[#allocation2 + %s1199]]
        %v1201 = vstv %s1198
        %v1202 = vmul.f32 %v1201, %v874
        %v1203 = vmul.f32 %v1201, %v875
        %v1204 = vmul.f32 %v1201, %v876
        %v1208 = vrot.slane %v1202, 4
        %v1209 = vrot.slane %v1203, 4
        %v1210 = vsel %vm339, %v1208, %v1209
        %v1211 = vrot.slane %v1204, 4
        %v1212 = vsel %vm339, %v1209, %v1211
        %1213 = vrot.lane.b32.xlu0 %v1210, 126
        %v1214 = vpop.permute.xlu0 %1213
        %1215 = vrot.lane.b32.xlu0 %v1212, 126
        %v1216 = vpop.permute.xlu0 %1215
        %v1219 = vadd.f32 %v1131, %v1214
        %v1220 = vadd.f32 %v1132, %v1216
        %v1221 = vstv %s1200
        %v1222 = vmul.f32 %v1221, %v874
        %v1223 = vmul.f32 %v1221, %v875
        %v1224 = vmul.f32 %v1221, %v876
        %v1228 = vrot.slane %v1222, 4
        %v1229 = vrot.slane %v1223, 4
        %v1230 = vsel %vm339, %v1228, %v1229
        %v1231 = vrot.slane %v1224, 4
        %v1232 = vsel %vm339, %v1229, %v1231
        %1233 = vrot.lane.b32.xlu0 %v1230, 126
        %v1234 = vpop.permute.xlu0 %1233
        %1235 = vrot.lane.b32.xlu0 %v1232, 126
        %v1236 = vpop.permute.xlu0 %1235
        %v1239 = vadd.f32 %v1151, %v1234
        %v1240 = vadd.f32 %v1152, %v1236
        %s1241 = sadd.s32 %s241, 16
        %s1242 = sld [smem:[#allocation2 + %s1241]]
        %s1243 = sadd.s32 %s243, 16
        %s1244 = sld [smem:[#allocation2 + %s1243]]
        %v1245 = vstv %s1242
        %v1246 = vmul.f32 %v1245, %v874
        %v1247 = vmul.f32 %v1245, %v875
        %v1248 = vmul.f32 %v1245, %v876
        %v1252 = vrot.slane %v1246, 4
        %v1253 = vrot.slane %v1247, 4
        %v1254 = vsel %vm339, %v1252, %v1253
        %v1255 = vrot.slane %v1248, 4
        %v1256 = vsel %vm339, %v1253, %v1255
        %1257 = vrot.lane.b32.xlu0 %v1254, 126
        %v1258 = vpop.permute.xlu0 %1257
        %1259 = vrot.lane.b32.xlu0 %v1256, 126
        %v1260 = vpop.permute.xlu0 %1259
        %v1263 = vadd.f32 %v1175, %v1258
        %v1264 = vadd.f32 %v1176, %v1260
        %v1265 = vstv %s1244
        %v1266 = vmul.f32 %v1265, %v874
        %v1267 = vmul.f32 %v1265, %v875
        %v1268 = vmul.f32 %v1265, %v876
        %v1272 = vrot.slane %v1266, 4
        %v1273 = vrot.slane %v1267, 4
        %v1274 = vsel %vm339, %v1272, %v1273
        %v1275 = vrot.slane %v1268, 4
        %v1276 = vsel %vm339, %v1273, %v1275
        %1277 = vrot.lane.b32.xlu0 %v1274, 126
        %v1278 = vpop.permute.xlu0 %1277
        %1279 = vrot.lane.b32.xlu0 %v1276, 126
        %v1280 = vpop.permute.xlu0 %1279
        %v1283 = vadd.f32 %v1195, %v1278
        %v1284 = vadd.f32 %v1196, %v1280
        %s1285 = sadd.s32 %s227, 11
        %s1286 = sld [smem:[#allocation2 + %s1285]]
        %s1287 = sadd.s32 %s229, 11
        %s1288 = sld [smem:[#allocation2 + %s1287]]
        %v1289 = vstv %s1286
        %v1290 = vmul.f32 %v1289, %v874
        %v1291 = vmul.f32 %v1289, %v875
        %1294 = vrot.lane.b32.xlu0 %v1290, 124
        %v1295 = vpop.permute.xlu0 %1294
        %1296 = vrot.lane.b32.xlu0 %v1291, 124
        %v1297 = vpop.permute.xlu0 %1296
        %v1300 = vadd.f32 %v1219, %v1295
        %v1301 = vadd.f32 %v1220, %v1297
        %v1302 = vstv %s1288
        %v1303 = vmul.f32 %v1302, %v874
        %v1304 = vmul.f32 %v1302, %v875
        %1307 = vrot.lane.b32.xlu0 %v1303, 124
        %v1308 = vpop.permute.xlu0 %1307
        %1309 = vrot.lane.b32.xlu0 %v1304, 124
        %v1310 = vpop.permute.xlu0 %1309
        %v1313 = vadd.f32 %v1239, %v1308
        %v1314 = vadd.f32 %v1240, %v1310
        %s1315 = sadd.s32 %s241, 11
        %s1316 = sld [smem:[#allocation2 + %s1315]]
        %s1317 = sadd.s32 %s243, 11
        %s1318 = sld [smem:[#allocation2 + %s1317]]
        %v1319 = vstv %s1316
        %v1320 = vmul.f32 %v1319, %v874
        %v1321 = vmul.f32 %v1319, %v875
        %1324 = vrot.lane.b32.xlu0 %v1320, 124
        %v1325 = vpop.permute.xlu0 %1324
        %1326 = vrot.lane.b32.xlu0 %v1321, 124
        %v1327 = vpop.permute.xlu0 %1326
        %v1330 = vadd.f32 %v1263, %v1325
        %v1331 = vadd.f32 %v1264, %v1327
        %v1332 = vstv %s1318
        %v1333 = vmul.f32 %v1332, %v874
        %v1334 = vmul.f32 %v1332, %v875
        %1337 = vrot.lane.b32.xlu0 %v1333, 124
        %v1338 = vpop.permute.xlu0 %1337
        %1339 = vrot.lane.b32.xlu0 %v1334, 124
        %v1340 = vpop.permute.xlu0 %1339
        %v1343 = vadd.f32 %v1283, %v1338
        %v1344 = vadd.f32 %v1284, %v1340
        %s1345 = sadd.s32 %s227, 14
        %s1346 = sld [smem:[#allocation2 + %s1345]]
        %s1347 = sadd.s32 %s229, 14
        %s1348 = sld [smem:[#allocation2 + %s1347]]
        %v1349 = vstv %s1346
        %v1350 = vmul.f32 %v1349, %v874
        %v1351 = vmul.f32 %v1349, %v875
        %v1352 = vmul.f32 %v1349, %v876
        %v1356 = vrot.slane %v1350, 2
        %v1357 = vrot.slane %v1351, 2
        %v1358 = vsel %vm266, %v1356, %v1357
        %v1359 = vrot.slane %v1352, 2
        %v1360 = vsel %vm266, %v1357, %v1359
        %1361 = vrot.lane.b32.xlu0 %v1358, 124
        %v1362 = vpop.permute.xlu0 %1361
        %1363 = vrot.lane.b32.xlu0 %v1360, 124
        %v1364 = vpop.permute.xlu0 %1363
        %v1367 = vadd.f32 %v1300, %v1362
        %v1368 = vadd.f32 %v1301, %v1364
        %v1369 = vstv %s1348
        %v1370 = vmul.f32 %v1369, %v874
        %v1371 = vmul.f32 %v1369, %v875
        %v1372 = vmul.f32 %v1369, %v876
        %v1376 = vrot.slane %v1370, 2
        %v1377 = vrot.slane %v1371, 2
        %v1378 = vsel %vm266, %v1376, %v1377
        %v1379 = vrot.slane %v1372, 2
        %v1380 = vsel %vm266, %v1377, %v1379
        %1381 = vrot.lane.b32.xlu0 %v1378, 124
        %v1382 = vpop.permute.xlu0 %1381
        %1383 = vrot.lane.b32.xlu0 %v1380, 124
        %v1384 = vpop.permute.xlu0 %1383
        %v1387 = vadd.f32 %v1313, %v1382
        %v1388 = vadd.f32 %v1314, %v1384
        %s1389 = sadd.s32 %s241, 14
        %s1390 = sld [smem:[#allocation2 + %s1389]]
        %s1391 = sadd.s32 %s243, 14
        %s1392 = sld [smem:[#allocation2 + %s1391]]
        %v1393 = vstv %s1390
        %v1394 = vmul.f32 %v1393, %v874
        %v1395 = vmul.f32 %v1393, %v875
        %v1396 = vmul.f32 %v1393, %v876
        %v1400 = vrot.slane %v1394, 2
        %v1401 = vrot.slane %v1395, 2
        %v1402 = vsel %vm266, %v1400, %v1401
        %v1403 = vrot.slane %v1396, 2
        %v1404 = vsel %vm266, %v1401, %v1403
        %1405 = vrot.lane.b32.xlu0 %v1402, 124
        %v1406 = vpop.permute.xlu0 %1405
        %1407 = vrot.lane.b32.xlu0 %v1404, 124
        %v1408 = vpop.permute.xlu0 %1407
        %v1411 = vadd.f32 %v1330, %v1406
        %v1412 = vadd.f32 %v1331, %v1408
        %v1413 = vstv %s1392
        %v1414 = vmul.f32 %v1413, %v874
        %v1415 = vmul.f32 %v1413, %v875
        %v1416 = vmul.f32 %v1413, %v876
        %v1420 = vrot.slane %v1414, 2
        %v1421 = vrot.slane %v1415, 2
        %v1422 = vsel %vm266, %v1420, %v1421
        %v1423 = vrot.slane %v1416, 2
        %v1424 = vsel %vm266, %v1421, %v1423
        %1425 = vrot.lane.b32.xlu0 %v1422, 124
        %v1426 = vpop.permute.xlu0 %1425
        %1427 = vrot.lane.b32.xlu0 %v1424, 124
        %v1428 = vpop.permute.xlu0 %1427
        %v1431 = vadd.f32 %v1343, %v1426
        %v1432 = vadd.f32 %v1344, %v1428
        %s1433 = sadd.s32 %s227, 17
        %s1434 = sld [smem:[#allocation2 + %s1433]]
        %s1435 = sadd.s32 %s229, 17
        %s1436 = sld [smem:[#allocation2 + %s1435]]
        %v1437 = vstv %s1434
        %v1438 = vmul.f32 %v1437, %v874
        %v1439 = vmul.f32 %v1437, %v875
        %v1440 = vmul.f32 %v1437, %v876
        %v1444 = vrot.slane %v1438, 4
        %v1445 = vrot.slane %v1439, 4
        %v1446 = vsel %vm339, %v1444, %v1445
        %v1447 = vrot.slane %v1440, 4
        %v1448 = vsel %vm339, %v1445, %v1447
        %1449 = vrot.lane.b32.xlu0 %v1446, 124
        %v1450 = vpop.permute.xlu0 %1449
        %1451 = vrot.lane.b32.xlu0 %v1448, 124
        %v1452 = vpop.permute.xlu0 %1451
        %v1455 = vadd.f32 %v1367, %v1450
        %v1456 = vadd.f32 %v1368, %v1452
        %v1457 = vstv %s1436
        %v1458 = vmul.f32 %v1457, %v874
        %v1459 = vmul.f32 %v1457, %v875
        %v1460 = vmul.f32 %v1457, %v876
        %v1464 = vrot.slane %v1458, 4
        %v1465 = vrot.slane %v1459, 4
        %v1466 = vsel %vm339, %v1464, %v1465
        %v1467 = vrot.slane %v1460, 4
        %v1468 = vsel %vm339, %v1465, %v1467
        %1469 = vrot.lane.b32.xlu0 %v1466, 124
        %v1470 = vpop.permute.xlu0 %1469
        %1471 = vrot.lane.b32.xlu0 %v1468, 124
        %v1472 = vpop.permute.xlu0 %1471
        %v1475 = vadd.f32 %v1387, %v1470
        %v1476 = vadd.f32 %v1388, %v1472
        %s1477 = sadd.s32 %s241, 17
        %s1478 = sld [smem:[#allocation2 + %s1477]]
        %s1479 = sadd.s32 %s243, 17
        %s1480 = sld [smem:[#allocation2 + %s1479]]
        %v1481 = vstv %s1478
        %v1482 = vmul.f32 %v1481, %v874
        %v1483 = vmul.f32 %v1481, %v875
        %v1484 = vmul.f32 %v1481, %v876
        %v1488 = vrot.slane %v1482, 4
        %v1489 = vrot.slane %v1483, 4
        %v1490 = vsel %vm339, %v1488, %v1489
        %v1491 = vrot.slane %v1484, 4
        %v1492 = vsel %vm339, %v1489, %v1491
        %1493 = vrot.lane.b32.xlu0 %v1490, 124
        %v1494 = vpop.permute.xlu0 %1493
        %1495 = vrot.lane.b32.xlu0 %v1492, 124
        %v1496 = vpop.permute.xlu0 %1495
        %v1499 = vadd.f32 %v1411, %v1494
        %v1500 = vadd.f32 %v1412, %v1496
        %v1501 = vstv %s1480
        %v1502 = vmul.f32 %v1501, %v874
        %v1503 = vmul.f32 %v1501, %v875
        %v1504 = vmul.f32 %v1501, %v876
        %v1508 = vrot.slane %v1502, 4
        %v1509 = vrot.slane %v1503, 4
        %v1510 = vsel %vm339, %v1508, %v1509
        %v1511 = vrot.slane %v1504, 4
        %v1512 = vsel %vm339, %v1509, %v1511
        %1513 = vrot.lane.b32.xlu0 %v1510, 124
        %v1514 = vpop.permute.xlu0 %1513
        %1515 = vrot.lane.b32.xlu0 %v1512, 124
        %v1516 = vpop.permute.xlu0 %1515
        %v1519 = vadd.f32 %v1431, %v1514
        %v1520 = vadd.f32 %v1432, %v1516
        %s1521 = scalar_lea.vmem %s209, 48
        %v1522 = vld [vmem:[%s1521] sm:$0xff]
        %v1523 = vld [vmem:[%s1521 + $0x8] sm:$0xff]
        %v1524 = vld [vmem:[%s1521 + $0x10] sm:$0xf]
        %s1525 = sadd.s32 %s227, 18
        %s1526 = sld [smem:[#allocation2 + %s1525]]
        %s1527 = sadd.s32 %s229, 18
        %s1528 = sld [smem:[#allocation2 + %s1527]]
        %v1529 = vstv %s1526
        %v1530 = vmul.f32 %v1529, %v1522
        %v1531 = vmul.f32 %v1529, %v1523
        %v1532 = vadd.f32 %v1455, %v1530
        %v1533 = vadd.f32 %v1456, %v1531
        %v1534 = vstv %s1528
        %v1535 = vmul.f32 %v1534, %v1522
        %v1536 = vmul.f32 %v1534, %v1523
        %v1537 = vadd.f32 %v1475, %v1535
        %v1538 = vadd.f32 %v1476, %v1536
        %s1539 = sadd.s32 %s241, 18
        %s1540 = sld [smem:[#allocation2 + %s1539]]
        %s1541 = sadd.s32 %s243, 18
        %s1542 = sld [smem:[#allocation2 + %s1541]]
        %v1543 = vstv %s1540
        %v1544 = vmul.f32 %v1543, %v1522
        %v1545 = vmul.f32 %v1543, %v1523
        %v1546 = vadd.f32 %v1499, %v1544
        %v1547 = vadd.f32 %v1500, %v1545
        %v1548 = vstv %s1542
        %v1549 = vmul.f32 %v1548, %v1522
        %v1550 = vmul.f32 %v1548, %v1523
        %v1551 = vadd.f32 %v1519, %v1549
        %v1552 = vadd.f32 %v1520, %v1550
        %s1553 = sadd.s32 %s227, 21
        %s1554 = sld [smem:[#allocation2 + %s1553]]
        %s1555 = sadd.s32 %s229, 21
        %s1556 = sld [smem:[#allocation2 + %s1555]]
        %v1557 = vstv %s1554
        %v1558 = vmul.f32 %v1557, %v1522
        %v1559 = vmul.f32 %v1557, %v1523
        %v1560 = vmul.f32 %v1557, %v1524
        %v1564 = vrot.slane %v1558, 2
        %v1565 = vrot.slane %v1559, 2
        %v1566 = vsel %vm266, %v1564, %v1565
        %v1567 = vrot.slane %v1560, 2
        %v1568 = vsel %vm266, %v1565, %v1567
        %v1571 = vadd.f32 %v1532, %v1566
        %v1572 = vadd.f32 %v1533, %v1568
        %v1573 = vstv %s1556
        %v1574 = vmul.f32 %v1573, %v1522
        %v1575 = vmul.f32 %v1573, %v1523
        %v1576 = vmul.f32 %v1573, %v1524
        %v1580 = vrot.slane %v1574, 2
        %v1581 = vrot.slane %v1575, 2
        %v1582 = vsel %vm266, %v1580, %v1581
        %v1583 = vrot.slane %v1576, 2
        %v1584 = vsel %vm266, %v1581, %v1583
        %v1587 = vadd.f32 %v1537, %v1582
        %v1588 = vadd.f32 %v1538, %v1584
        %s1589 = sadd.s32 %s241, 21
        %s1590 = sld [smem:[#allocation2 + %s1589]]
        %s1591 = sadd.s32 %s243, 21
        %s1592 = sld [smem:[#allocation2 + %s1591]]
        %v1593 = vstv %s1590
        %v1594 = vmul.f32 %v1593, %v1522
        %v1595 = vmul.f32 %v1593, %v1523
        %v1596 = vmul.f32 %v1593, %v1524
        %v1600 = vrot.slane %v1594, 2
        %v1601 = vrot.slane %v1595, 2
        %v1602 = vsel %vm266, %v1600, %v1601
        %v1603 = vrot.slane %v1596, 2
        %v1604 = vsel %vm266, %v1601, %v1603
        %v1607 = vadd.f32 %v1546, %v1602
        %v1608 = vadd.f32 %v1547, %v1604
        %v1609 = vstv %s1592
        %v1610 = vmul.f32 %v1609, %v1522
        %v1611 = vmul.f32 %v1609, %v1523
        %v1612 = vmul.f32 %v1609, %v1524
        %v1616 = vrot.slane %v1610, 2
        %v1617 = vrot.slane %v1611, 2
        %v1618 = vsel %vm266, %v1616, %v1617
        %v1619 = vrot.slane %v1612, 2
        %v1620 = vsel %vm266, %v1617, %v1619
        %v1623 = vadd.f32 %v1551, %v1618
        %v1624 = vadd.f32 %v1552, %v1620
        %s1625 = sadd.s32 %s227, 24
        %s1626 = sld [smem:[#allocation2 + %s1625]]
        %s1627 = sadd.s32 %s229, 24
        %s1628 = sld [smem:[#allocation2 + %s1627]]
        %v1629 = vstv %s1626
        %v1630 = vmul.f32 %v1629, %v1522
        %v1631 = vmul.f32 %v1629, %v1523
        %v1632 = vmul.f32 %v1629, %v1524
        %v1636 = vrot.slane %v1630, 4
        %v1637 = vrot.slane %v1631, 4
        %v1638 = vsel %vm339, %v1636, %v1637
        %v1639 = vrot.slane %v1632, 4
        %v1640 = vsel %vm339, %v1637, %v1639
        %v1643 = vadd.f32 %v1571, %v1638
        %v1644 = vadd.f32 %v1572, %v1640
        %v1645 = vstv %s1628
        %v1646 = vmul.f32 %v1645, %v1522
        %v1647 = vmul.f32 %v1645, %v1523
        %v1648 = vmul.f32 %v1645, %v1524
        %v1652 = vrot.slane %v1646, 4
        %v1653 = vrot.slane %v1647, 4
        %v1654 = vsel %vm339, %v1652, %v1653
        %v1655 = vrot.slane %v1648, 4
        %v1656 = vsel %vm339, %v1653, %v1655
        %v1659 = vadd.f32 %v1587, %v1654
        %v1660 = vadd.f32 %v1588, %v1656
        %s1661 = sadd.s32 %s241, 24
        %s1662 = sld [smem:[#allocation2 + %s1661]]
        %s1663 = sadd.s32 %s243, 24
        %s1664 = sld [smem:[#allocation2 + %s1663]]
        %v1665 = vstv %s1662
        %v1666 = vmul.f32 %v1665, %v1522
        %v1667 = vmul.f32 %v1665, %v1523
        %v1668 = vmul.f32 %v1665, %v1524
        %v1672 = vrot.slane %v1666, 4
        %v1673 = vrot.slane %v1667, 4
        %v1674 = vsel %vm339, %v1672, %v1673
        %v1675 = vrot.slane %v1668, 4
        %v1676 = vsel %vm339, %v1673, %v1675
        %v1679 = vadd.f32 %v1607, %v1674
        %v1680 = vadd.f32 %v1608, %v1676
        %v1681 = vstv %s1664
        %v1682 = vmul.f32 %v1681, %v1522
        %v1683 = vmul.f32 %v1681, %v1523
        %v1684 = vmul.f32 %v1681, %v1524
        %v1688 = vrot.slane %v1682, 4
        %v1689 = vrot.slane %v1683, 4
        %v1690 = vsel %vm339, %v1688, %v1689
        %v1691 = vrot.slane %v1684, 4
        %v1692 = vsel %vm339, %v1689, %v1691
        %v1695 = vadd.f32 %v1623, %v1690
        %v1696 = vadd.f32 %v1624, %v1692
        %s1697 = sadd.s32 %s227, 19
        %s1698 = sld [smem:[#allocation2 + %s1697]]
        %s1699 = sadd.s32 %s229, 19
        %s1700 = sld [smem:[#allocation2 + %s1699]]
        %v1701 = vstv %s1698
        %v1702 = vmul.f32 %v1701, %v1522
        %v1703 = vmul.f32 %v1701, %v1523
        %1706 = vrot.lane.b32.xlu0 %v1702, 126
        %v1707 = vpop.permute.xlu0 %1706
        %1708 = vrot.lane.b32.xlu0 %v1703, 126
        %v1709 = vpop.permute.xlu0 %1708
        %v1712 = vadd.f32 %v1643, %v1707
        %v1713 = vadd.f32 %v1644, %v1709
        %v1714 = vstv %s1700
        %v1715 = vmul.f32 %v1714, %v1522
        %v1716 = vmul.f32 %v1714, %v1523
        %1719 = vrot.lane.b32.xlu0 %v1715, 126
        %v1720 = vpop.permute.xlu0 %1719
        %1721 = vrot.lane.b32.xlu0 %v1716, 126
        %v1722 = vpop.permute.xlu0 %1721
        %v1725 = vadd.f32 %v1659, %v1720
        %v1726 = vadd.f32 %v1660, %v1722
        %s1727 = sadd.s32 %s241, 19
        %s1728 = sld [smem:[#allocation2 + %s1727]]
        %s1729 = sadd.s32 %s243, 19
        %s1730 = sld [smem:[#allocation2 + %s1729]]
        %v1731 = vstv %s1728
        %v1732 = vmul.f32 %v1731, %v1522
        %v1733 = vmul.f32 %v1731, %v1523
        %1736 = vrot.lane.b32.xlu0 %v1732, 126
        %v1737 = vpop.permute.xlu0 %1736
        %1738 = vrot.lane.b32.xlu0 %v1733, 126
        %v1739 = vpop.permute.xlu0 %1738
        %v1742 = vadd.f32 %v1679, %v1737
        %v1743 = vadd.f32 %v1680, %v1739
        %v1744 = vstv %s1730
        %v1745 = vmul.f32 %v1744, %v1522
        %v1746 = vmul.f32 %v1744, %v1523
        %1749 = vrot.lane.b32.xlu0 %v1745, 126
        %v1750 = vpop.permute.xlu0 %1749
        %1751 = vrot.lane.b32.xlu0 %v1746, 126
        %v1752 = vpop.permute.xlu0 %1751
        %v1755 = vadd.f32 %v1695, %v1750
        %v1756 = vadd.f32 %v1696, %v1752
        %s1757 = sadd.s32 %s227, 22
        %s1758 = sld [smem:[#allocation2 + %s1757]]
        %s1759 = sadd.s32 %s229, 22
        %s1760 = sld [smem:[#allocation2 + %s1759]]
        %v1761 = vstv %s1758
        %v1762 = vmul.f32 %v1761, %v1522
        %v1763 = vmul.f32 %v1761, %v1523
        %v1764 = vmul.f32 %v1761, %v1524
        %v1768 = vrot.slane %v1762, 2
        %v1769 = vrot.slane %v1763, 2
        %v1770 = vsel %vm266, %v1768, %v1769
        %v1771 = vrot.slane %v1764, 2
        %v1772 = vsel %vm266, %v1769, %v1771
        %1773 = vrot.lane.b32.xlu0 %v1770, 126
        %v1774 = vpop.permute.xlu0 %1773
        %1775 = vrot.lane.b32.xlu0 %v1772, 126
        %v1776 = vpop.permute.xlu0 %1775
        %v1779 = vadd.f32 %v1712, %v1774
        %v1780 = vadd.f32 %v1713, %v1776
        %v1781 = vstv %s1760
        %v1782 = vmul.f32 %v1781, %v1522
        %v1783 = vmul.f32 %v1781, %v1523
        %v1784 = vmul.f32 %v1781, %v1524
        %v1788 = vrot.slane %v1782, 2
        %v1789 = vrot.slane %v1783, 2
        %v1790 = vsel %vm266, %v1788, %v1789
        %v1791 = vrot.slane %v1784, 2
        %v1792 = vsel %vm266, %v1789, %v1791
        %1793 = vrot.lane.b32.xlu0 %v1790, 126
        %v1794 = vpop.permute.xlu0 %1793
        %1795 = vrot.lane.b32.xlu0 %v1792, 126
        %v1796 = vpop.permute.xlu0 %1795
        %v1799 = vadd.f32 %v1725, %v1794
        %v1800 = vadd.f32 %v1726, %v1796
        %s1801 = sadd.s32 %s241, 22
        %s1802 = sld [smem:[#allocation2 + %s1801]]
        %s1803 = sadd.s32 %s243, 22
        %s1804 = sld [smem:[#allocation2 + %s1803]]
        %v1805 = vstv %s1802
        %v1806 = vmul.f32 %v1805, %v1522
        %v1807 = vmul.f32 %v1805, %v1523
        %v1808 = vmul.f32 %v1805, %v1524
        %v1812 = vrot.slane %v1806, 2
        %v1813 = vrot.slane %v1807, 2
        %v1814 = vsel %vm266, %v1812, %v1813
        %v1815 = vrot.slane %v1808, 2
        %v1816 = vsel %vm266, %v1813, %v1815
        %1817 = vrot.lane.b32.xlu0 %v1814, 126
        %v1818 = vpop.permute.xlu0 %1817
        %1819 = vrot.lane.b32.xlu0 %v1816, 126
        %v1820 = vpop.permute.xlu0 %1819
        %v1823 = vadd.f32 %v1742, %v1818
        %v1824 = vadd.f32 %v1743, %v1820
        %v1825 = vstv %s1804
        %v1826 = vmul.f32 %v1825, %v1522
        %v1827 = vmul.f32 %v1825, %v1523
        %v1828 = vmul.f32 %v1825, %v1524
        %v1832 = vrot.slane %v1826, 2
        %v1833 = vrot.slane %v1827, 2
        %v1834 = vsel %vm266, %v1832, %v1833
        %v1835 = vrot.slane %v1828, 2
        %v1836 = vsel %vm266, %v1833, %v1835
        %1837 = vrot.lane.b32.xlu0 %v1834, 126
        %v1838 = vpop.permute.xlu0 %1837
        %1839 = vrot.lane.b32.xlu0 %v1836, 126
        %v1840 = vpop.permute.xlu0 %1839
        %v1843 = vadd.f32 %v1755, %v1838
        %v1844 = vadd.f32 %v1756, %v1840
        %s1845 = sadd.s32 %s227, 25
        %s1846 = sld [smem:[#allocation2 + %s1845]]
        %s1847 = sadd.s32 %s229, 25
        %s1848 = sld [smem:[#allocation2 + %s1847]]
        %v1849 = vstv %s1846
        %v1850 = vmul.f32 %v1849, %v1522
        %v1851 = vmul.f32 %v1849, %v1523
        %v1852 = vmul.f32 %v1849, %v1524
        %v1856 = vrot.slane %v1850, 4
        %v1857 = vrot.slane %v1851, 4
        %v1858 = vsel %vm339, %v1856, %v1857
        %v1859 = vrot.slane %v1852, 4
        %v1860 = vsel %vm339, %v1857, %v1859
        %1861 = vrot.lane.b32.xlu0 %v1858, 126
        %v1862 = vpop.permute.xlu0 %1861
        %1863 = vrot.lane.b32.xlu0 %v1860, 126
        %v1864 = vpop.permute.xlu0 %1863
        %v1867 = vadd.f32 %v1779, %v1862
        %v1868 = vadd.f32 %v1780, %v1864
        %v1869 = vstv %s1848
        %v1870 = vmul.f32 %v1869, %v1522
        %v1871 = vmul.f32 %v1869, %v1523
        %v1872 = vmul.f32 %v1869, %v1524
        %v1876 = vrot.slane %v1870, 4
        %v1877 = vrot.slane %v1871, 4
        %v1878 = vsel %vm339, %v1876, %v1877
        %v1879 = vrot.slane %v1872, 4
        %v1880 = vsel %vm339, %v1877, %v1879
        %1881 = vrot.lane.b32.xlu0 %v1878, 126
        %v1882 = vpop.permute.xlu0 %1881
        %1883 = vrot.lane.b32.xlu0 %v1880, 126
        %v1884 = vpop.permute.xlu0 %1883
        %v1887 = vadd.f32 %v1799, %v1882
        %v1888 = vadd.f32 %v1800, %v1884
        %s1889 = sadd.s32 %s241, 25
        %s1890 = sld [smem:[#allocation2 + %s1889]]
        %s1891 = sadd.s32 %s243, 25
        %s1892 = sld [smem:[#allocation2 + %s1891]]
        %v1893 = vstv %s1890
        %v1894 = vmul.f32 %v1893, %v1522
        %v1895 = vmul.f32 %v1893, %v1523
        %v1896 = vmul.f32 %v1893, %v1524
        %v1900 = vrot.slane %v1894, 4
        %v1901 = vrot.slane %v1895, 4
        %v1902 = vsel %vm339, %v1900, %v1901
        %v1903 = vrot.slane %v1896, 4
        %v1904 = vsel %vm339, %v1901, %v1903
        %1905 = vrot.lane.b32.xlu0 %v1902, 126
        %v1906 = vpop.permute.xlu0 %1905
        %1907 = vrot.lane.b32.xlu0 %v1904, 126
        %v1908 = vpop.permute.xlu0 %1907
        %v1911 = vadd.f32 %v1823, %v1906
        %v1912 = vadd.f32 %v1824, %v1908
        %v1913 = vstv %s1892
        %v1914 = vmul.f32 %v1913, %v1522
        %v1915 = vmul.f32 %v1913, %v1523
        %v1916 = vmul.f32 %v1913, %v1524
        %v1920 = vrot.slane %v1914, 4
        %v1921 = vrot.slane %v1915, 4
        %v1922 = vsel %vm339, %v1920, %v1921
        %v1923 = vrot.slane %v1916, 4
        %v1924 = vsel %vm339, %v1921, %v1923
        %1925 = vrot.lane.b32.xlu0 %v1922, 126
        %v1926 = vpop.permute.xlu0 %1925
        %1927 = vrot.lane.b32.xlu0 %v1924, 126
        %v1928 = vpop.permute.xlu0 %1927
        %v1931 = vadd.f32 %v1843, %v1926
        %v1932 = vadd.f32 %v1844, %v1928
        %s1933 = sadd.s32 %s227, 20
        %s1934 = sld [smem:[#allocation2 + %s1933]]
        %s1935 = sadd.s32 %s229, 20
        %s1936 = sld [smem:[#allocation2 + %s1935]]
        %v1937 = vstv %s1934
        %v1938 = vmul.f32 %v1937, %v1522
        %v1939 = vmul.f32 %v1937, %v1523
        %1942 = vrot.lane.b32.xlu0 %v1938, 124
        %v1943 = vpop.permute.xlu0 %1942
        %1944 = vrot.lane.b32.xlu0 %v1939, 124
        %v1945 = vpop.permute.xlu0 %1944
        %v1948 = vadd.f32 %v1867, %v1943
        %v1949 = vadd.f32 %v1868, %v1945
        %v1950 = vstv %s1936
        %v1951 = vmul.f32 %v1950, %v1522
        %v1952 = vmul.f32 %v1950, %v1523
        %1955 = vrot.lane.b32.xlu0 %v1951, 124
        %v1956 = vpop.permute.xlu0 %1955
        %1957 = vrot.lane.b32.xlu0 %v1952, 124
        %v1958 = vpop.permute.xlu0 %1957
        %v1961 = vadd.f32 %v1887, %v1956
        %v1962 = vadd.f32 %v1888, %v1958
        %s1963 = sadd.s32 %s241, 20
        %s1964 = sld [smem:[#allocation2 + %s1963]]
        %s1965 = sadd.s32 %s243, 20
        %s1966 = sld [smem:[#allocation2 + %s1965]]
        %v1967 = vstv %s1964
        %v1968 = vmul.f32 %v1967, %v1522
        %v1969 = vmul.f32 %v1967, %v1523
        %1972 = vrot.lane.b32.xlu0 %v1968, 124
        %v1973 = vpop.permute.xlu0 %1972
        %1974 = vrot.lane.b32.xlu0 %v1969, 124
        %v1975 = vpop.permute.xlu0 %1974
        %v1978 = vadd.f32 %v1911, %v1973
        %v1979 = vadd.f32 %v1912, %v1975
        %v1980 = vstv %s1966
        %v1981 = vmul.f32 %v1980, %v1522
        %v1982 = vmul.f32 %v1980, %v1523
        %1985 = vrot.lane.b32.xlu0 %v1981, 124
        %v1986 = vpop.permute.xlu0 %1985
        %1987 = vrot.lane.b32.xlu0 %v1982, 124
        %v1988 = vpop.permute.xlu0 %1987
        %v1991 = vadd.f32 %v1931, %v1986
        %v1992 = vadd.f32 %v1932, %v1988
        %s1993 = sadd.s32 %s227, 23
        %s1994 = sld [smem:[#allocation2 + %s1993]]
        %s1995 = sadd.s32 %s229, 23
        %s1996 = sld [smem:[#allocation2 + %s1995]]
        %v1997 = vstv %s1994
        %v1998 = vmul.f32 %v1997, %v1522
        %v1999 = vmul.f32 %v1997, %v1523
        %v2000 = vmul.f32 %v1997, %v1524
        %v2004 = vrot.slane %v1998, 2
        %v2005 = vrot.slane %v1999, 2
        %v2006 = vsel %vm266, %v2004, %v2005
        %v2007 = vrot.slane %v2000, 2
        %v2008 = vsel %vm266, %v2005, %v2007
        %2009 = vrot.lane.b32.xlu0 %v2006, 124
        %v2010 = vpop.permute.xlu0 %2009
        %2011 = vrot.lane.b32.xlu0 %v2008, 124
        %v2012 = vpop.permute.xlu0 %2011
        %v2015 = vadd.f32 %v1948, %v2010
        %v2016 = vadd.f32 %v1949, %v2012
        %v2017 = vstv %s1996
        %v2018 = vmul.f32 %v2017, %v1522
        %v2019 = vmul.f32 %v2017, %v1523
        %v2020 = vmul.f32 %v2017, %v1524
        %v2024 = vrot.slane %v2018, 2
        %v2025 = vrot.slane %v2019, 2
        %v2026 = vsel %vm266, %v2024, %v2025
        %v2027 = vrot.slane %v2020, 2
        %v2028 = vsel %vm266, %v2025, %v2027
        %2029 = vrot.lane.b32.xlu0 %v2026, 124
        %v2030 = vpop.permute.xlu0 %2029
        %2031 = vrot.lane.b32.xlu0 %v2028, 124
        %v2032 = vpop.permute.xlu0 %2031
        %v2035 = vadd.f32 %v1961, %v2030
        %v2036 = vadd.f32 %v1962, %v2032
        %s2037 = sadd.s32 %s241, 23
        %s2038 = sld [smem:[#allocation2 + %s2037]]
        %s2039 = sadd.s32 %s243, 23
        %s2040 = sld [smem:[#allocation2 + %s2039]]
        %v2041 = vstv %s2038
        %v2042 = vmul.f32 %v2041, %v1522
        %v2043 = vmul.f32 %v2041, %v1523
        %v2044 = vmul.f32 %v2041, %v1524
        %v2048 = vrot.slane %v2042, 2
        %v2049 = vrot.slane %v2043, 2
        %v2050 = vsel %vm266, %v2048, %v2049
        %v2051 = vrot.slane %v2044, 2
        %v2052 = vsel %vm266, %v2049, %v2051
        %2053 = vrot.lane.b32.xlu0 %v2050, 124
        %v2054 = vpop.permute.xlu0 %2053
        %2055 = vrot.lane.b32.xlu0 %v2052, 124
        %v2056 = vpop.permute.xlu0 %2055
        %v2059 = vadd.f32 %v1978, %v2054
        %v2060 = vadd.f32 %v1979, %v2056
        %v2061 = vstv %s2040
        %v2062 = vmul.f32 %v2061, %v1522
        %v2063 = vmul.f32 %v2061, %v1523
        %v2064 = vmul.f32 %v2061, %v1524
        %v2068 = vrot.slane %v2062, 2
        %v2069 = vrot.slane %v2063, 2
        %v2070 = vsel %vm266, %v2068, %v2069
        %v2071 = vrot.slane %v2064, 2
        %v2072 = vsel %vm266, %v2069, %v2071
        %2073 = vrot.lane.b32.xlu0 %v2070, 124
        %v2074 = vpop.permute.xlu0 %2073
        %2075 = vrot.lane.b32.xlu0 %v2072, 124
        %v2076 = vpop.permute.xlu0 %2075
        %v2079 = vadd.f32 %v1991, %v2074
        %v2080 = vadd.f32 %v1992, %v2076
        %s2081 = sadd.s32 %s227, 26
        %s2082 = sld [smem:[#allocation2 + %s2081]]
        %s2083 = sadd.s32 %s229, 26
        %s2084 = sld [smem:[#allocation2 + %s2083]]
        %v2085 = vstv %s2082
        %v2086 = vmul.f32 %v2085, %v1522
        %v2087 = vmul.f32 %v2085, %v1523
        %v2088 = vmul.f32 %v2085, %v1524
        %v2092 = vrot.slane %v2086, 4
        %v2093 = vrot.slane %v2087, 4
        %v2094 = vsel %vm339, %v2092, %v2093
        %v2095 = vrot.slane %v2088, 4
        %v2096 = vsel %vm339, %v2093, %v2095
        %2097 = vrot.lane.b32.xlu0 %v2094, 124
        %v2098 = vpop.permute.xlu0 %2097
        %2099 = vrot.lane.b32.xlu0 %v2096, 124
        %v2100 = vpop.permute.xlu0 %2099
        %v2103 = vadd.f32 %v2015, %v2098
        %v2104 = vadd.f32 %v2016, %v2100
        %v2105 = vstv %s2084
        %v2106 = vmul.f32 %v2105, %v1522
        %v2107 = vmul.f32 %v2105, %v1523
        %v2108 = vmul.f32 %v2105, %v1524
        %v2112 = vrot.slane %v2106, 4
        %v2113 = vrot.slane %v2107, 4
        %v2114 = vsel %vm339, %v2112, %v2113
        %v2115 = vrot.slane %v2108, 4
        %v2116 = vsel %vm339, %v2113, %v2115
        %2117 = vrot.lane.b32.xlu0 %v2114, 124
        %v2118 = vpop.permute.xlu0 %2117
        %2119 = vrot.lane.b32.xlu0 %v2116, 124
        %v2120 = vpop.permute.xlu0 %2119
        %v2123 = vadd.f32 %v2035, %v2118
        %v2124 = vadd.f32 %v2036, %v2120
        %s2125 = sadd.s32 %s241, 26
        %s2126 = sld [smem:[#allocation2 + %s2125]]
        %s2127 = sadd.s32 %s243, 26
        %s2128 = sld [smem:[#allocation2 + %s2127]]
        %v2129 = vstv %s2126
        %v2130 = vmul.f32 %v2129, %v1522
        %v2131 = vmul.f32 %v2129, %v1523
        %v2132 = vmul.f32 %v2129, %v1524
        %v2136 = vrot.slane %v2130, 4
        %v2137 = vrot.slane %v2131, 4
        %v2138 = vsel %vm339, %v2136, %v2137
        %v2139 = vrot.slane %v2132, 4
        %v2140 = vsel %vm339, %v2137, %v2139
        %2141 = vrot.lane.b32.xlu0 %v2138, 124
        %v2142 = vpop.permute.xlu0 %2141
        %2143 = vrot.lane.b32.xlu0 %v2140, 124
        %v2144 = vpop.permute.xlu0 %2143
        %v2147 = vadd.f32 %v2059, %v2142
        %v2148 = vadd.f32 %v2060, %v2144
        %v2149 = vstv %s2128
        %v2150 = vmul.f32 %v2149, %v1522
        %v2151 = vmul.f32 %v2149, %v1523
        %v2152 = vmul.f32 %v2149, %v1524
        %v2156 = vrot.slane %v2150, 4
        %v2157 = vrot.slane %v2151, 4
        %v2158 = vsel %vm339, %v2156, %v2157
        %v2159 = vrot.slane %v2152, 4
        %v2160 = vsel %vm339, %v2157, %v2159
        %2161 = vrot.lane.b32.xlu0 %v2158, 124
        %v2162 = vpop.permute.xlu0 %2161
        %2163 = vrot.lane.b32.xlu0 %v2160, 124
        %v2164 = vpop.permute.xlu0 %2163
        %v2167 = vadd.f32 %v2079, %v2162
        %v2168 = vadd.f32 %v2080, %v2164
        %s2169 = scalar_lea.vmem %s209, 72
        %v2170 = vld [vmem:[%s2169] sm:$0xff]
        %v2171 = vld [vmem:[%s2169 + $0x8] sm:$0xff]
        %v2172 = vld [vmem:[%s2169 + $0x10] sm:$0xf]
        %s2173 = sadd.s32 %s227, 27
        %s2174 = sld [smem:[#allocation2 + %s2173]]
        %s2175 = sadd.s32 %s229, 27
        %s2176 = sld [smem:[#allocation2 + %s2175]]
        %v2177 = vstv %s2174
        %v2178 = vmul.f32 %v2177, %v2170
        %v2179 = vmul.f32 %v2177, %v2171
        %v2180 = vadd.f32 %v2103, %v2178
        %v2181 = vadd.f32 %v2104, %v2179
        %v2182 = vstv %s2176
        %v2183 = vmul.f32 %v2182, %v2170
        %v2184 = vmul.f32 %v2182, %v2171
        %v2185 = vadd.f32 %v2123, %v2183
        %v2186 = vadd.f32 %v2124, %v2184
        %s2187 = sadd.s32 %s241, 27
        %s2188 = sld [smem:[#allocation2 + %s2187]]
        %s2189 = sadd.s32 %s243, 27
        %s2190 = sld [smem:[#allocation2 + %s2189]]
        %v2191 = vstv %s2188
        %v2192 = vmul.f32 %v2191, %v2170
        %v2193 = vmul.f32 %v2191, %v2171
        %v2194 = vadd.f32 %v2147, %v2192
        %v2195 = vadd.f32 %v2148, %v2193
        %v2196 = vstv %s2190
        %v2197 = vmul.f32 %v2196, %v2170
        %v2198 = vmul.f32 %v2196, %v2171
        %v2199 = vadd.f32 %v2167, %v2197
        %v2200 = vadd.f32 %v2168, %v2198
        %s2201 = sadd.s32 %s227, 30
        %s2202 = sld [smem:[#allocation2 + %s2201]]
        %s2203 = sadd.s32 %s229, 30
        %s2204 = sld [smem:[#allocation2 + %s2203]]
        %v2205 = vstv %s2202
        %v2206 = vmul.f32 %v2205, %v2170
        %v2207 = vmul.f32 %v2205, %v2171
        %v2208 = vmul.f32 %v2205, %v2172
        %v2212 = vrot.slane %v2206, 2
        %v2213 = vrot.slane %v2207, 2
        %v2214 = vsel %vm266, %v2212, %v2213
        %v2215 = vrot.slane %v2208, 2
        %v2216 = vsel %vm266, %v2213, %v2215
        %v2219 = vadd.f32 %v2180, %v2214
        %v2220 = vadd.f32 %v2181, %v2216
        %v2221 = vstv %s2204
        %v2222 = vmul.f32 %v2221, %v2170
        %v2223 = vmul.f32 %v2221, %v2171
        %v2224 = vmul.f32 %v2221, %v2172
        %v2228 = vrot.slane %v2222, 2
        %v2229 = vrot.slane %v2223, 2
        %v2230 = vsel %vm266, %v2228, %v2229
        %v2231 = vrot.slane %v2224, 2
        %v2232 = vsel %vm266, %v2229, %v2231
        %v2235 = vadd.f32 %v2185, %v2230
        %v2236 = vadd.f32 %v2186, %v2232
        %s2237 = sadd.s32 %s241, 30
        %s2238 = sld [smem:[#allocation2 + %s2237]]
        %s2239 = sadd.s32 %s243, 30
        %s2240 = sld [smem:[#allocation2 + %s2239]]
        %v2241 = vstv %s2238
        %v2242 = vmul.f32 %v2241, %v2170
        %v2243 = vmul.f32 %v2241, %v2171
        %v2244 = vmul.f32 %v2241, %v2172
        %v2248 = vrot.slane %v2242, 2
        %v2249 = vrot.slane %v2243, 2
        %v2250 = vsel %vm266, %v2248, %v2249
        %v2251 = vrot.slane %v2244, 2
        %v2252 = vsel %vm266, %v2249, %v2251
        %v2255 = vadd.f32 %v2194, %v2250
        %v2256 = vadd.f32 %v2195, %v2252
        %v2257 = vstv %s2240
        %v2258 = vmul.f32 %v2257, %v2170
        %v2259 = vmul.f32 %v2257, %v2171
        %v2260 = vmul.f32 %v2257, %v2172
        %v2264 = vrot.slane %v2258, 2
        %v2265 = vrot.slane %v2259, 2
        %v2266 = vsel %vm266, %v2264, %v2265
        %v2267 = vrot.slane %v2260, 2
        %v2268 = vsel %vm266, %v2265, %v2267
        %v2271 = vadd.f32 %v2199, %v2266
        %v2272 = vadd.f32 %v2200, %v2268
        %s2273 = sadd.s32 %s227, 33
        %s2274 = sld [smem:[#allocation2 + %s2273]]
        %s2275 = sadd.s32 %s229, 33
        %s2276 = sld [smem:[#allocation2 + %s2275]]
        %v2277 = vstv %s2274
        %v2278 = vmul.f32 %v2277, %v2170
        %v2279 = vmul.f32 %v2277, %v2171
        %v2280 = vmul.f32 %v2277, %v2172
        %v2284 = vrot.slane %v2278, 4
        %v2285 = vrot.slane %v2279, 4
        %v2286 = vsel %vm339, %v2284, %v2285
        %v2287 = vrot.slane %v2280, 4
        %v2288 = vsel %vm339, %v2285, %v2287
        %v2291 = vadd.f32 %v2219, %v2286
        %v2292 = vadd.f32 %v2220, %v2288
        %v2293 = vstv %s2276
        %v2294 = vmul.f32 %v2293, %v2170
        %v2295 = vmul.f32 %v2293, %v2171
        %v2296 = vmul.f32 %v2293, %v2172
        %v2300 = vrot.slane %v2294, 4
        %v2301 = vrot.slane %v2295, 4
        %v2302 = vsel %vm339, %v2300, %v2301
        %v2303 = vrot.slane %v2296, 4
        %v2304 = vsel %vm339, %v2301, %v2303
        %v2307 = vadd.f32 %v2235, %v2302
        %v2308 = vadd.f32 %v2236, %v2304
        %s2309 = sadd.s32 %s241, 33
        %s2310 = sld [smem:[#allocation2 + %s2309]]
        %s2311 = sadd.s32 %s243, 33
        %s2312 = sld [smem:[#allocation2 + %s2311]]
        %v2313 = vstv %s2310
        %v2314 = vmul.f32 %v2313, %v2170
        %v2315 = vmul.f32 %v2313, %v2171
        %v2316 = vmul.f32 %v2313, %v2172
        %v2320 = vrot.slane %v2314, 4
        %v2321 = vrot.slane %v2315, 4
        %v2322 = vsel %vm339, %v2320, %v2321
        %v2323 = vrot.slane %v2316, 4
        %v2324 = vsel %vm339, %v2321, %v2323
        %v2327 = vadd.f32 %v2255, %v2322
        %v2328 = vadd.f32 %v2256, %v2324
        %v2329 = vstv %s2312
        %v2330 = vmul.f32 %v2329, %v2170
        %v2331 = vmul.f32 %v2329, %v2171
        %v2332 = vmul.f32 %v2329, %v2172
        %v2336 = vrot.slane %v2330, 4
        %v2337 = vrot.slane %v2331, 4
        %v2338 = vsel %vm339, %v2336, %v2337
        %v2339 = vrot.slane %v2332, 4
        %v2340 = vsel %vm339, %v2337, %v2339
        %v2343 = vadd.f32 %v2271, %v2338
        %v2344 = vadd.f32 %v2272, %v2340
        %s2345 = sadd.s32 %s227, 28
        %s2346 = sld [smem:[#allocation2 + %s2345]]
        %s2347 = sadd.s32 %s229, 28
        %s2348 = sld [smem:[#allocation2 + %s2347]]
        %v2349 = vstv %s2346
        %v2350 = vmul.f32 %v2349, %v2170
        %v2351 = vmul.f32 %v2349, %v2171
        %2354 = vrot.lane.b32.xlu0 %v2350, 126
        %v2355 = vpop.permute.xlu0 %2354
        %2356 = vrot.lane.b32.xlu0 %v2351, 126
        %v2357 = vpop.permute.xlu0 %2356
        %v2360 = vadd.f32 %v2291, %v2355
        %v2361 = vadd.f32 %v2292, %v2357
        %v2362 = vstv %s2348
        %v2363 = vmul.f32 %v2362, %v2170
        %v2364 = vmul.f32 %v2362, %v2171
        %2367 = vrot.lane.b32.xlu0 %v2363, 126
        %v2368 = vpop.permute.xlu0 %2367
        %2369 = vrot.lane.b32.xlu0 %v2364, 126
        %v2370 = vpop.permute.xlu0 %2369
        %v2373 = vadd.f32 %v2307, %v2368
        %v2374 = vadd.f32 %v2308, %v2370
        %s2375 = sadd.s32 %s241, 28
        %s2376 = sld [smem:[#allocation2 + %s2375]]
        %s2377 = sadd.s32 %s243, 28
        %s2378 = sld [smem:[#allocation2 + %s2377]]
        %v2379 = vstv %s2376
        %v2380 = vmul.f32 %v2379, %v2170
        %v2381 = vmul.f32 %v2379, %v2171
        %2384 = vrot.lane.b32.xlu0 %v2380, 126
        %v2385 = vpop.permute.xlu0 %2384
        %2386 = vrot.lane.b32.xlu0 %v2381, 126
        %v2387 = vpop.permute.xlu0 %2386
        %v2390 = vadd.f32 %v2327, %v2385
        %v2391 = vadd.f32 %v2328, %v2387
        %v2392 = vstv %s2378
        %v2393 = vmul.f32 %v2392, %v2170
        %v2394 = vmul.f32 %v2392, %v2171
        %2397 = vrot.lane.b32.xlu0 %v2393, 126
        %v2398 = vpop.permute.xlu0 %2397
        %2399 = vrot.lane.b32.xlu0 %v2394, 126
        %v2400 = vpop.permute.xlu0 %2399
        %v2403 = vadd.f32 %v2343, %v2398
        %v2404 = vadd.f32 %v2344, %v2400
        %s2405 = sadd.s32 %s227, 31
        %s2406 = sld [smem:[#allocation2 + %s2405]]
        %s2407 = sadd.s32 %s229, 31
        %s2408 = sld [smem:[#allocation2 + %s2407]]
        %v2409 = vstv %s2406
        %v2410 = vmul.f32 %v2409, %v2170
        %v2411 = vmul.f32 %v2409, %v2171
        %v2412 = vmul.f32 %v2409, %v2172
        %v2416 = vrot.slane %v2410, 2
        %v2417 = vrot.slane %v2411, 2
        %v2418 = vsel %vm266, %v2416, %v2417
        %v2419 = vrot.slane %v2412, 2
        %v2420 = vsel %vm266, %v2417, %v2419
        %2421 = vrot.lane.b32.xlu0 %v2418, 126
        %v2422 = vpop.permute.xlu0 %2421
        %2423 = vrot.lane.b32.xlu0 %v2420, 126
        %v2424 = vpop.permute.xlu0 %2423
        %v2427 = vadd.f32 %v2360, %v2422
        %v2428 = vadd.f32 %v2361, %v2424
        %v2429 = vstv %s2408
        %v2430 = vmul.f32 %v2429, %v2170
        %v2431 = vmul.f32 %v2429, %v2171
        %v2432 = vmul.f32 %v2429, %v2172
        %v2436 = vrot.slane %v2430, 2
        %v2437 = vrot.slane %v2431, 2
        %v2438 = vsel %vm266, %v2436, %v2437
        %v2439 = vrot.slane %v2432, 2
        %v2440 = vsel %vm266, %v2437, %v2439
        %2441 = vrot.lane.b32.xlu0 %v2438, 126
        %v2442 = vpop.permute.xlu0 %2441
        %2443 = vrot.lane.b32.xlu0 %v2440, 126
        %v2444 = vpop.permute.xlu0 %2443
        %v2447 = vadd.f32 %v2373, %v2442
        %v2448 = vadd.f32 %v2374, %v2444
        %s2449 = sadd.s32 %s241, 31
        %s2450 = sld [smem:[#allocation2 + %s2449]]
        %s2451 = sadd.s32 %s243, 31
        %s2452 = sld [smem:[#allocation2 + %s2451]]
        %v2453 = vstv %s2450
        %v2454 = vmul.f32 %v2453, %v2170
        %v2455 = vmul.f32 %v2453, %v2171
        %v2456 = vmul.f32 %v2453, %v2172
        %v2460 = vrot.slane %v2454, 2
        %v2461 = vrot.slane %v2455, 2
        %v2462 = vsel %vm266, %v2460, %v2461
        %v2463 = vrot.slane %v2456, 2
        %v2464 = vsel %vm266, %v2461, %v2463
        %2465 = vrot.lane.b32.xlu0 %v2462, 126
        %v2466 = vpop.permute.xlu0 %2465
        %2467 = vrot.lane.b32.xlu0 %v2464, 126
        %v2468 = vpop.permute.xlu0 %2467
        %v2471 = vadd.f32 %v2390, %v2466
        %v2472 = vadd.f32 %v2391, %v2468
        %v2473 = vstv %s2452
        %v2474 = vmul.f32 %v2473, %v2170
        %v2475 = vmul.f32 %v2473, %v2171
        %v2476 = vmul.f32 %v2473, %v2172
        %v2480 = vrot.slane %v2474, 2
        %v2481 = vrot.slane %v2475, 2
        %v2482 = vsel %vm266, %v2480, %v2481
        %v2483 = vrot.slane %v2476, 2
        %v2484 = vsel %vm266, %v2481, %v2483
        %2485 = vrot.lane.b32.xlu0 %v2482, 126
        %v2486 = vpop.permute.xlu0 %2485
        %2487 = vrot.lane.b32.xlu0 %v2484, 126
        %v2488 = vpop.permute.xlu0 %2487
        %v2491 = vadd.f32 %v2403, %v2486
        %v2492 = vadd.f32 %v2404, %v2488
        %s2493 = sadd.s32 %s227, 34
        %s2494 = sld [smem:[#allocation2 + %s2493]]
        %s2495 = sadd.s32 %s229, 34
        %s2496 = sld [smem:[#allocation2 + %s2495]]
        %v2497 = vstv %s2494
        %v2498 = vmul.f32 %v2497, %v2170
        %v2499 = vmul.f32 %v2497, %v2171
        %v2500 = vmul.f32 %v2497, %v2172
        %v2504 = vrot.slane %v2498, 4
        %v2505 = vrot.slane %v2499, 4
        %v2506 = vsel %vm339, %v2504, %v2505
        %v2507 = vrot.slane %v2500, 4
        %v2508 = vsel %vm339, %v2505, %v2507
        %2509 = vrot.lane.b32.xlu0 %v2506, 126
        %v2510 = vpop.permute.xlu0 %2509
        %2511 = vrot.lane.b32.xlu0 %v2508, 126
        %v2512 = vpop.permute.xlu0 %2511
        %v2515 = vadd.f32 %v2427, %v2510
        %v2516 = vadd.f32 %v2428, %v2512
        %v2517 = vstv %s2496
        %v2518 = vmul.f32 %v2517, %v2170
        %v2519 = vmul.f32 %v2517, %v2171
        %v2520 = vmul.f32 %v2517, %v2172
        %v2524 = vrot.slane %v2518, 4
        %v2525 = vrot.slane %v2519, 4
        %v2526 = vsel %vm339, %v2524, %v2525
        %v2527 = vrot.slane %v2520, 4
        %v2528 = vsel %vm339, %v2525, %v2527
        %2529 = vrot.lane.b32.xlu0 %v2526, 126
        %v2530 = vpop.permute.xlu0 %2529
        %2531 = vrot.lane.b32.xlu0 %v2528, 126
        %v2532 = vpop.permute.xlu0 %2531
        %v2535 = vadd.f32 %v2447, %v2530
        %v2536 = vadd.f32 %v2448, %v2532
        %s2537 = sadd.s32 %s241, 34
        %s2538 = sld [smem:[#allocation2 + %s2537]]
        %s2539 = sadd.s32 %s243, 34
        %s2540 = sld [smem:[#allocation2 + %s2539]]
        %v2541 = vstv %s2538
        %v2542 = vmul.f32 %v2541, %v2170
        %v2543 = vmul.f32 %v2541, %v2171
        %v2544 = vmul.f32 %v2541, %v2172
        %v2548 = vrot.slane %v2542, 4
        %v2549 = vrot.slane %v2543, 4
        %v2550 = vsel %vm339, %v2548, %v2549
        %v2551 = vrot.slane %v2544, 4
        %v2552 = vsel %vm339, %v2549, %v2551
        %2553 = vrot.lane.b32.xlu0 %v2550, 126
        %v2554 = vpop.permute.xlu0 %2553
        %2555 = vrot.lane.b32.xlu0 %v2552, 126
        %v2556 = vpop.permute.xlu0 %2555
        %v2559 = vadd.f32 %v2471, %v2554
        %v2560 = vadd.f32 %v2472, %v2556
        %v2561 = vstv %s2540
        %v2562 = vmul.f32 %v2561, %v2170
        %v2563 = vmul.f32 %v2561, %v2171
        %v2564 = vmul.f32 %v2561, %v2172
        %v2568 = vrot.slane %v2562, 4
        %v2569 = vrot.slane %v2563, 4
        %v2570 = vsel %vm339, %v2568, %v2569
        %v2571 = vrot.slane %v2564, 4
        %v2572 = vsel %vm339, %v2569, %v2571
        %2573 = vrot.lane.b32.xlu0 %v2570, 126
        %v2574 = vpop.permute.xlu0 %2573
        %2575 = vrot.lane.b32.xlu0 %v2572, 126
        %v2576 = vpop.permute.xlu0 %2575
        %v2579 = vadd.f32 %v2491, %v2574
        %v2580 = vadd.f32 %v2492, %v2576
        %s2581 = sadd.s32 %s227, 29
        %s2582 = sld [smem:[#allocation2 + %s2581]]
        %s2583 = sadd.s32 %s229, 29
        %s2584 = sld [smem:[#allocation2 + %s2583]]
        %v2585 = vstv %s2582
        %v2586 = vmul.f32 %v2585, %v2170
        %v2587 = vmul.f32 %v2585, %v2171
        %2590 = vrot.lane.b32.xlu0 %v2586, 124
        %v2591 = vpop.permute.xlu0 %2590
        %2592 = vrot.lane.b32.xlu0 %v2587, 124
        %v2593 = vpop.permute.xlu0 %2592
        %v2596 = vadd.f32 %v2515, %v2591
        %v2597 = vadd.f32 %v2516, %v2593
        %v2598 = vstv %s2584
        %v2599 = vmul.f32 %v2598, %v2170
        %v2600 = vmul.f32 %v2598, %v2171
        %2603 = vrot.lane.b32.xlu0 %v2599, 124
        %v2604 = vpop.permute.xlu0 %2603
        %2605 = vrot.lane.b32.xlu0 %v2600, 124
        %v2606 = vpop.permute.xlu0 %2605
        %v2609 = vadd.f32 %v2535, %v2604
        %v2610 = vadd.f32 %v2536, %v2606
        %s2611 = sadd.s32 %s241, 29
        %s2612 = sld [smem:[#allocation2 + %s2611]]
        %s2613 = sadd.s32 %s243, 29
        %s2614 = sld [smem:[#allocation2 + %s2613]]
        %v2615 = vstv %s2612
        %v2616 = vmul.f32 %v2615, %v2170
        %v2617 = vmul.f32 %v2615, %v2171
        %2620 = vrot.lane.b32.xlu0 %v2616, 124
        %v2621 = vpop.permute.xlu0 %2620
        %2622 = vrot.lane.b32.xlu0 %v2617, 124
        %v2623 = vpop.permute.xlu0 %2622
        %v2626 = vadd.f32 %v2559, %v2621
        %v2627 = vadd.f32 %v2560, %v2623
        %v2628 = vstv %s2614
        %v2629 = vmul.f32 %v2628, %v2170
        %v2630 = vmul.f32 %v2628, %v2171
        %2633 = vrot.lane.b32.xlu0 %v2629, 124
        %v2634 = vpop.permute.xlu0 %2633
        %2635 = vrot.lane.b32.xlu0 %v2630, 124
        %v2636 = vpop.permute.xlu0 %2635
        %v2639 = vadd.f32 %v2579, %v2634
        %v2640 = vadd.f32 %v2580, %v2636
        %s2641 = sadd.s32 %s227, 32
        %s2642 = sld [smem:[#allocation2 + %s2641]]
        %s2643 = sadd.s32 %s229, 32
        %s2644 = sld [smem:[#allocation2 + %s2643]]
        %v2645 = vstv %s2642
        %v2646 = vmul.f32 %v2645, %v2170
        %v2647 = vmul.f32 %v2645, %v2171
        %v2648 = vmul.f32 %v2645, %v2172
        %v2652 = vrot.slane %v2646, 2
        %v2653 = vrot.slane %v2647, 2
        %v2654 = vsel %vm266, %v2652, %v2653
        %v2655 = vrot.slane %v2648, 2
        %v2656 = vsel %vm266, %v2653, %v2655
        %2657 = vrot.lane.b32.xlu0 %v2654, 124
        %v2658 = vpop.permute.xlu0 %2657
        %2659 = vrot.lane.b32.xlu0 %v2656, 124
        %v2660 = vpop.permute.xlu0 %2659
        %v2663 = vadd.f32 %v2596, %v2658
        %v2664 = vadd.f32 %v2597, %v2660
        %v2665 = vstv %s2644
        %v2666 = vmul.f32 %v2665, %v2170
        %v2667 = vmul.f32 %v2665, %v2171
        %v2668 = vmul.f32 %v2665, %v2172
        %v2672 = vrot.slane %v2666, 2
        %v2673 = vrot.slane %v2667, 2
        %v2674 = vsel %vm266, %v2672, %v2673
        %v2675 = vrot.slane %v2668, 2
        %v2676 = vsel %vm266, %v2673, %v2675
        %2677 = vrot.lane.b32.xlu0 %v2674, 124
        %v2678 = vpop.permute.xlu0 %2677
        %2679 = vrot.lane.b32.xlu0 %v2676, 124
        %v2680 = vpop.permute.xlu0 %2679
        %v2683 = vadd.f32 %v2609, %v2678
        %v2684 = vadd.f32 %v2610, %v2680
        %s2685 = sadd.s32 %s241, 32
        %s2686 = sld [smem:[#allocation2 + %s2685]]
        %s2687 = sadd.s32 %s243, 32
        %s2688 = sld [smem:[#allocation2 + %s2687]]
        %v2689 = vstv %s2686
        %v2690 = vmul.f32 %v2689, %v2170
        %v2691 = vmul.f32 %v2689, %v2171
        %v2692 = vmul.f32 %v2689, %v2172
        %v2696 = vrot.slane %v2690, 2
        %v2697 = vrot.slane %v2691, 2
        %v2698 = vsel %vm266, %v2696, %v2697
        %v2699 = vrot.slane %v2692, 2
        %v2700 = vsel %vm266, %v2697, %v2699
        %2701 = vrot.lane.b32.xlu0 %v2698, 124
        %v2702 = vpop.permute.xlu0 %2701
        %2703 = vrot.lane.b32.xlu0 %v2700, 124
        %v2704 = vpop.permute.xlu0 %2703
        %v2707 = vadd.f32 %v2626, %v2702
        %v2708 = vadd.f32 %v2627, %v2704
        %v2709 = vstv %s2688
        %v2710 = vmul.f32 %v2709, %v2170
        %v2711 = vmul.f32 %v2709, %v2171
        %v2712 = vmul.f32 %v2709, %v2172
        %v2716 = vrot.slane %v2710, 2
        %v2717 = vrot.slane %v2711, 2
        %v2718 = vsel %vm266, %v2716, %v2717
        %v2719 = vrot.slane %v2712, 2
        %v2720 = vsel %vm266, %v2717, %v2719
        %2721 = vrot.lane.b32.xlu0 %v2718, 124
        %v2722 = vpop.permute.xlu0 %2721
        %2723 = vrot.lane.b32.xlu0 %v2720, 124
        %v2724 = vpop.permute.xlu0 %2723
        %v2727 = vadd.f32 %v2639, %v2722
        %v2728 = vadd.f32 %v2640, %v2724
        %s2729 = sadd.s32 %s227, 35
        %s2730 = sld [smem:[#allocation2 + %s2729]]
        %s2731 = sadd.s32 %s229, 35
        %s2732 = sld [smem:[#allocation2 + %s2731]]
        %v2733 = vstv %s2730
        %v2734 = vmul.f32 %v2733, %v2170
        %v2735 = vmul.f32 %v2733, %v2171
        %v2736 = vmul.f32 %v2733, %v2172
        %v2740 = vrot.slane %v2734, 4
        %v2741 = vrot.slane %v2735, 4
        %v2742 = vsel %vm339, %v2740, %v2741
        %v2743 = vrot.slane %v2736, 4
        %v2744 = vsel %vm339, %v2741, %v2743
        %2745 = vrot.lane.b32.xlu0 %v2742, 124
        %v2746 = vpop.permute.xlu0 %2745
        %2747 = vrot.lane.b32.xlu0 %v2744, 124
        %v2748 = vpop.permute.xlu0 %2747
        %v2751 = vadd.f32 %v2663, %v2746
        %v2752 = vadd.f32 %v2664, %v2748
        %v2753 = vstv %s2732
        %v2754 = vmul.f32 %v2753, %v2170
        %v2755 = vmul.f32 %v2753, %v2171
        %v2756 = vmul.f32 %v2753, %v2172
        %v2760 = vrot.slane %v2754, 4
        %v2761 = vrot.slane %v2755, 4
        %v2762 = vsel %vm339, %v2760, %v2761
        %v2763 = vrot.slane %v2756, 4
        %v2764 = vsel %vm339, %v2761, %v2763
        %2765 = vrot.lane.b32.xlu0 %v2762, 124
        %v2766 = vpop.permute.xlu0 %2765
        %2767 = vrot.lane.b32.xlu0 %v2764, 124
        %v2768 = vpop.permute.xlu0 %2767
        %v2771 = vadd.f32 %v2683, %v2766
        %v2772 = vadd.f32 %v2684, %v2768
        %s2773 = sadd.s32 %s241, 35
        %s2774 = sld [smem:[#allocation2 + %s2773]]
        %s2775 = sadd.s32 %s243, 35
        %s2776 = sld [smem:[#allocation2 + %s2775]]
        %v2777 = vstv %s2774
        %v2778 = vmul.f32 %v2777, %v2170
        %v2779 = vmul.f32 %v2777, %v2171
        %v2780 = vmul.f32 %v2777, %v2172
        %v2784 = vrot.slane %v2778, 4
        %v2785 = vrot.slane %v2779, 4
        %v2786 = vsel %vm339, %v2784, %v2785
        %v2787 = vrot.slane %v2780, 4
        %v2788 = vsel %vm339, %v2785, %v2787
        %2789 = vrot.lane.b32.xlu0 %v2786, 124
        %v2790 = vpop.permute.xlu0 %2789
        %2791 = vrot.lane.b32.xlu0 %v2788, 124
        %v2792 = vpop.permute.xlu0 %2791
        %v2795 = vadd.f32 %v2707, %v2790
        %v2796 = vadd.f32 %v2708, %v2792
        %v2797 = vstv %s2776
        %v2798 = vmul.f32 %v2797, %v2170
        %v2799 = vmul.f32 %v2797, %v2171
        %v2800 = vmul.f32 %v2797, %v2172
        %v2804 = vrot.slane %v2798, 4
        %v2805 = vrot.slane %v2799, 4
        %v2806 = vsel %vm339, %v2804, %v2805
        %v2807 = vrot.slane %v2800, 4
        %v2808 = vsel %vm339, %v2805, %v2807
        %2809 = vrot.lane.b32.xlu0 %v2806, 124
        %v2810 = vpop.permute.xlu0 %2809
        %2811 = vrot.lane.b32.xlu0 %v2808, 124
        %v2812 = vpop.permute.xlu0 %2811
        %v2815 = vadd.f32 %v2727, %v2810
        %v2816 = vadd.f32 %v2728, %v2812
        %v2817 = vmul.f32 %v2751, 0.2
        %v2818 = vmul.f32 %v2752, 0.2
        %v2819 = vmax.f32 %v2751, %v2817
        %v2820 = vmax.f32 %v2752, %v2818
        %v2821 = vsub.f32 0.0, %v2771
        %v2822 = vsub.f32 0.0, %v2772
        %v2823 = vmul.f32 %v2821, 1.442695
        %v2824 = vpow.pop %v2823
        %v2825 = vmul.f32 %v2822, 1.442695
        %v2826 = vpow.pop %v2825
        %v2827 = vadd.f32 %v2824, 1.0
        %v2828 = vadd.f32 %v2826, 1.0
        %v2829 = vrcp.pop %v2827
        %v2830 = vrcp.pop %v2828
        %v2831 = vmul.f32 %v2827, %v2829
        %v2832 = vmul.f32 %v2828, %v2830
        %v2833 = vsub.f32 2.0, %v2831
        %v2834 = vsub.f32 2.0, %v2832
        %v2835 = vmul.f32 %v2829, %v2833
        %v2836 = vmul.f32 %v2830, %v2834
        %v2837 = vmul.f32 %v2819, %v2835
        %v2838 = vmul.f32 %v2820, %v2836
        %vm2839 = vcmask 130048
        %2840 = vst.msk [vmem:[%s204] sm:$0xff] %vm2839, %v2837
        %2841 = vst.msk [vmem:[%s204 + $0x8] sm:$0xff] %vm2839, %v2838
        %2844 = vrot.lane.b32.xlu0 %v2837, 108
        %v2845 = vpop.permute.xlu0 %2844
        %2846 = vrot.lane.b32.xlu0 %v2838, 108
        %v2847 = vpop.permute.xlu0 %2846
        %s2850 = scalar_lea.vmem %s204, 32 [#allocation7]
        %2851 = vst.msk [vmem:[%s2850] sm:$0xff] %vm2839, %v2845
        %2852 = vst.msk [vmem:[%s2850 + $0x8] sm:$0xff] %vm2839, %v2847
        %v2853 = vmul.f32 %v2795, 0.2
        %v2854 = vmul.f32 %v2796, 0.2
        %v2855 = vmax.f32 %v2795, %v2853
        %v2856 = vmax.f32 %v2796, %v2854
        %v2857 = vsub.f32 0.0, %v2815
        %v2858 = vsub.f32 0.0, %v2816
        %v2859 = vmul.f32 %v2857, 1.442695
        %v2860 = vpow.pop %v2859
        %v2861 = vmul.f32 %v2858, 1.442695
        %v2862 = vpow.pop %v2861
        %v2863 = vadd.f32 %v2860, 1.0
        %v2864 = vadd.f32 %v2862, 1.0
        %v2865 = vrcp.pop %v2863
        %v2866 = vrcp.pop %v2864
        %v2867 = vmul.f32 %v2863, %v2865
        %v2868 = vmul.f32 %v2864, %v2866
        %v2869 = vsub.f32 2.0, %v2867
        %v2870 = vsub.f32 2.0, %v2868
        %v2871 = vmul.f32 %v2865, %v2869
        %v2872 = vmul.f32 %v2866, %v2870
        %v2873 = vmul.f32 %v2855, %v2871
        %v2874 = vmul.f32 %v2856, %v2872
        %s2875 = scalar_lea.vmem %s204, 16 [#allocation7]
        %2876 = vst.msk [vmem:[%s2875] sm:$0xff] %vm2839, %v2873
        %2877 = vst.msk [vmem:[%s2875 + $0x8] sm:$0xff] %vm2839, %v2874
        %2880 = vrot.lane.b32.xlu0 %v2873, 108
        %v2881 = vpop.permute.xlu0 %2880
        %2882 = vrot.lane.b32.xlu0 %v2874, 108
        %v2883 = vpop.permute.xlu0 %2882
        %s2886 = scalar_lea.vmem %s204, 48 [#allocation7]
        %2887 = vst.msk [vmem:[%s2886] sm:$0xff] %vm2839, %v2881
        %2888 = vst.msk [vmem:[%s2886 + $0x8] sm:$0xff] %vm2839, %v2883
        %s2889 = sand.u32 %s109, 1
        %s2890 = scalar_lea.sflag [#allocation3], %s2889
        %s2891 = sand.u32 %s109, 1
        %s2892 = smul.addr %s2891, 64
        %s2893 = scalar_lea.vmem [#allocation7], %s2892
        // Predicated region
        $region41: #{tpu_custom_call.1} parent=31 // pred_check
          %p2894 = pneg %p119
        $region42: #{tpu_custom_call.1} parent=31 // pred_check_branch
          %2896 = sbr.rel (%p2894) target = $region44
        $region43: #{tpu_custom_call.1} parent=31 // pred_region
          #allocation9 [shape = 'u32[6]{0}', space=smem, size = 0x18, scoped, tag = 'DMA stride descriptor']
          %s2897 = smul.u32 2, %s23
          %s2898 = smul.u32 2, %s24
          %s2900 = ssub.s32 1024, 1024
          %2901 = vsyncadd %s2890, %s2900
          %s2902 = smul.addr %s2898, 2
          %s2903 = smul.addr %s2897, 8
          %s2904 = sadd.s32 %s2902, %s2903
          %s2905 = smul.addr %s2904, 128
          %s2906 = scalar_lea.hbm %s3, %s2905
          %s2908 = sshll.u32 1, 14
          %s2909 = sxor.u32 4294967295, %s2908
          %s2912 = sshll.u32 7, 18
          %s2913 = sxor.u32 4294967295, %s2912
          %s2914 = sand.u32 0, %s2913
          %s2916 = sor.u32 %s2914, 0
          %s2917 = sshll.u32 %s2893, 4
          %s2918 = int_to_ptr.vmem [resolvable:$true] %s2917
          %2924 = sst [smem:[#allocation9]] 512
          %s2925 = scalar_lea.smem [#allocation9], 1
          %2926 = sst [smem:[%s2925]] 1024
          %s2927 = scalar_lea.smem [#allocation9], 2
          %2928 = sst [smem:[%s2927]] 4
          %s2929 = scalar_lea.smem [#allocation9], 3
          %2930 = sst [smem:[%s2929]] 128
          %s2931 = scalar_lea.smem [#allocation9], 4
          %2932 = sst [smem:[%s2931]] 128
          %s2933 = scalar_lea.smem [#allocation9], 5
          %2934 = sst [smem:[%s2933]] 8
          %2936 = dma.general %s2918, 1024, %s2906, %s2890, 131072, [#allocation9], %s2916, 0
        $region44: #{tpu_custom_call.1} parent=31 // pred_fallthru
          _
      $region32: #{tpu_custom_call.1} parent=5 // pred_fallthru
        _
      %p2937 = scmp.le.s32.totalorder 2, %s14
      // Predicated region
      $region45: #{tpu_custom_call.1} parent=5 // pred_check
        %p2938 = pneg %p2937
      $region46: #{tpu_custom_call.1} parent=5 // pred_check_branch
        %2940 = sbr.rel (%p2938) target = $region48
      $region47: #{tpu_custom_call.1} parent=5 // pred_region
        %s2941 = ssub.s32 %s14, 2
        // Predicated region
        $region49: #{tpu_custom_call.1} parent=47 // pred_check
          %p2942 = pneg %p125
        $region50: #{tpu_custom_call.1} parent=47 // pred_check_branch
          %2944 = sbr.rel (%p2942) target = $region52
        $region51: #{tpu_custom_call.1} parent=47 // pred_region
          %s2945 = sand.u32 %s110, 1
          %s2946 = scalar_lea.sflag [#allocation3], %s2945
          %s2947 = sand.u32 %s110, 1
          %s2948 = smul.addr %s2947, 64
          %s2949 = scalar_lea.vmem [#allocation7], %s2948
          %2950 = dma.done %s2946, 1024
        $region52: #{tpu_custom_call.1} parent=47 // pred_fallthru
          _
      $region48: #{tpu_custom_call.1} parent=5 // pred_fallthru
        _
    $region6: #{tpu_custom_call.1} parent=1 // loop_footer
      %s18 = sadd.s32 1, %s14
    $region7: #{tpu_custom_call.1} parent=1 // loop_footer_branch
      %13 = sbr.rel target = $region3
    $region8: #{tpu_custom_call.1} parent=1 // loop_exit
      _
    %2951 = vsyncpa [#allocation3], 1
    %s2952 = scalar_lea.sflag [#allocation3], 1
    %2953 = vsyncpa %s2952, 1
    %2954 = vsyncpa [#allocation4], 1
    %s2955 = scalar_lea.sflag [#allocation4], 1
    %2956 = vsyncpa %s2955, 1
    %2957 = vsyncpa [#allocation6], 1

</llo_original>
